<compile_context>
chip_gen: v7x
topology: tpu7x:2x2x1
jax: 0.10.0
libtpu: 0.0.40
codegen_flags: <defaults>
</compile_context>

<pallas_src>
import jax
import jax.numpy as jnp
from jax.experimental import pallas as pl
from jax.experimental.pallas import tpu as pltpu

NGF = 8          # opts.ngf (small synthetic value)
NZ = 8           # opts.nz  (small synthetic value)
EPS = 1e-5       # nn.BatchNorm2d default eps


# ----------------------------- Pallas kernels ------------------------------
def _l1_mm_bn_lrelu_kernel(p_ref, w_ref, g_ref, b_ref, o_ref):
    """Fused deconv1_1 + deconv1_2 (1x1 -> 4x4) + per-branch BN + LeakyReLU.

    w_ref: (2*4ngf, 16*(nz+10)) block weight, p_ref: (16*(nz+10), B*16)
    selection patches, output channel-major (2*4ngf, B*16).
    """
    o = jnp.dot(w_ref[...], p_ref[...], preferred_element_type=jnp.float32)
    mean = jnp.mean(o, axis=1, keepdims=True)                 # per (branch, cout)
    var = jnp.mean(jnp.square(o - mean), axis=1, keepdims=True)
    y = g_ref[...] * (o - mean) * jax.lax.rsqrt(var + EPS) + b_ref[...]
    o_ref[...] = jnp.where(y >= 0.0, y, 0.2 * y).astype(o_ref.dtype)


def _deconv_bn_lrelu_kernel(p_ref, w_ref, g_ref, b_ref, o_ref):
    """Stride-2 transposed conv (4 phases x 4 non-zero taps) + BN + LeakyReLU.

    p_ref: (4, 4*Cin, M) bf16, w_ref: (4, Cout, 4*Cin) bf16,
    g_ref/b_ref: (Cout, 1) f32, o_ref: (4, Cout, M).
    BatchNorm statistics are taken over all 4 phases (= all B*2H*2W pixels).
    """
    acc = [jnp.dot(w_ref[p], p_ref[p], preferred_element_type=jnp.float32)
           for p in range(4)]
    n = 4.0 * acc[0].shape[-1]
    mean = sum(jnp.sum(a, axis=1, keepdims=True) for a in acc) / n
    var = sum(jnp.sum(jnp.square(a - mean), axis=1, keepdims=True)
              for a in acc) / n
    scale = g_ref[...] * jax.lax.rsqrt(var + EPS)
    shift = b_ref[...] - scale * mean
    for p in range(4):
        y = scale * acc[p] + shift
        o_ref[p] = jnp.where(y >= 0.0, y, 0.2 * y).astype(o_ref.dtype)


def _deconv_tanh_kernel(p_ref, w_ref, b_ref, o_ref):
    """One phase of the final stride-2 transposed conv + bias + tanh."""
    o = jnp.dot(w_ref[0], p_ref[0], preferred_element_type=jnp.float32)
    o_ref[0] = jnp.tanh(o + b_ref[...]).astype(o_ref.dtype)


# ----------------------------- pallas_call wrappers -------------------------
def _full_spec(shape):
    n = len(shape)
    return pl.BlockSpec(shape, lambda i, _n=n: (0,) * _n)


def fused_layer1(P, W, gamma, beta):
    C, M = W.shape[0], P.shape[1]
    return pl.pallas_call(
        _l1_mm_bn_lrelu_kernel,
        out_shape=jax.ShapeDtypeStruct((C, M), jnp.bfloat16),
        grid=(1,),
        in_specs=[_full_spec(P.shape), _full_spec(W.shape),
                  _full_spec(gamma.shape), _full_spec(beta.shape)],
        out_specs=_full_spec((C, M)),
    )(P, W, gamma, beta)


def fused_deconv_bn_lrelu(P, Wt, gamma, beta):
    Cout = Wt.shape[1]
    M = P.shape[-1]
    return pl.pallas_call(
        _deconv_bn_lrelu_kernel,
        out_shape=jax.ShapeDtypeStruct((4, Cout, M), jnp.bfloat16),
        grid=(1,),
        in_specs=[_full_spec(P.shape), _full_spec(Wt.shape),
                  _full_spec(gamma.shape), _full_spec(beta.shape)],
        out_specs=_full_spec((4, Cout, M)),
    )(P, Wt, gamma, beta)


def fused_deconv_tanh(P, Wt, bias):
    _, KC, M = P.shape
    Cout = Wt.shape[1]
    return pl.pallas_call(
        _deconv_tanh_kernel,
        out_shape=jax.ShapeDtypeStruct((4, Cout, M), jnp.float32),
        grid=(4,),                                  # one grid step per phase
        in_specs=[pl.BlockSpec((1, KC, M), lambda i: (i, 0, 0)),
                  pl.BlockSpec((1, Cout, KC), lambda i: (i, 0, 0)),
                  pl.BlockSpec((1, 1), lambda i: (0, 0))],
        out_specs=pl.BlockSpec((1, Cout, M), lambda i: (i, 0, 0)),
        compiler_params=pltpu.CompilerParams(
            dimension_semantics=("parallel",)),      # both TCs on v7x
    )(P, Wt, bias)


# ----------------------------- JAX glue (layout only) ------------------------
def phase_patches(a_cm):
    """Channel-major activation (Cin, B, H, W) -> (4, 4*Cin, B*H*W) patches
    for ConvTranspose2d(k=4, s=2, p=1): 4 output phases x 4 non-zero taps."""
    Cin, B, H, W = a_cm.shape
    ap = jnp.pad(a_cm, ((0, 0), (0, 0), (1, 1), (1, 1)))
    M = B * H * W
    phases = []
    for r in (0, 1):
        for s in (0, 1):
            taps = [ap[:, :, r + u:r + u + H, s + v:s + v + W].reshape(Cin, M)
                    for u in (0, 1) for v in (0, 1)]
            phases.append(jnp.concatenate(taps, axis=0))      # rows (u, v, cin)
    return jnp.stack(phases, axis=0)


def deconv_s2_weight(w):
    """PyTorch ConvTranspose2d weight (Cin, Cout, 4, 4) ->
    per-phase matmul weights (4, Cout, 4*Cin), columns ordered (u, v, cin)."""
    mats = []
    for r in (0, 1):
        for s in (0, 1):
            taps = [w[:, :, 3 - 2 * u - r, 3 - 2 * v - s]     # (Cin, Cout)
                    for u in (0, 1) for v in (0, 1)]
            mats.append(jnp.concatenate(taps, axis=0).T)      # (Cout, 4*Cin)
    return jnp.stack(mats, axis=0)


def interleave_phases_cm(o, B, H, W):
    """(4, Cout, B*H*W) phase outputs -> channel-major (Cout, B, 2H, 2W)."""
    Cout = o.shape[1]
    o = o.reshape(2, 2, Cout, B, H, W)
    o = jnp.transpose(o, (2, 3, 4, 0, 5, 1))                  # (c, b, i, r, j, s)
    return o.reshape(Cout, B, 2 * H, 2 * W)


def layer1_patches(noise, label):
    """noise (B, nz), label (B, 10) -> (16*(nz+10), B*16) selection patches."""
    xc = jnp.concatenate([noise, label], axis=1)              # (B, nz+10)
    B, C = xc.shape
    eye = jnp.eye(16, dtype=xc.dtype)
    p = eye[:, None, None, :] * xc.T[None, :, :, None]        # (16, C, B, 16)
    return p.reshape(16 * C, B * 16)


def layer1_weight(w1, w2, nz):
    """Block weight (2*4ngf, 16*(nz+10)) for the fused first layer."""
    C = nz + w2.shape[0]

    def prep(w, lo, hi):
        wt = jnp.transpose(w, (1, 2, 3, 0))                   # (Cout, kh, kw, cin)
        wt = jnp.pad(wt, ((0, 0), (0, 0), (0, 0), (lo, hi)))
        return wt.reshape(wt.shape[0], 16 * C)

    b1 = prep(w1, 0, w2.shape[0])        # noise channels occupy cin [0, nz)
    b2 = prep(w2, nz, 0)                 # label channels occupy cin [nz, nz+10)
    return jnp.concatenate([b1, b2], axis=0)


# ----------------------------- parameters -----------------------------------
def init_params(key):
    keys = iter(jax.random.split(key, 16))

    def deconv(cin, cout, k=4):
        return {"w": 0.02 * jax.random.normal(next(keys), (cin, cout, k, k),
                                              jnp.float32),
                "b": jnp.zeros((cout,), jnp.float32)}

    def bn(c):
        return {"gamma": jnp.ones((c,), jnp.float32),
                "beta": jnp.zeros((c,), jnp.float32)}

    return {
        "deconv1_1": deconv(NZ, NGF * 4),      "bn1_1": bn(NGF * 4),
        "deconv1_2": deconv(10, NGF * 4),      "bn1_2": bn(NGF * 4),
        "deconv2":   deconv(NGF * 8, NGF * 4), "bn2":   bn(NGF * 4),
        "deconv3":   deconv(NGF * 4, NGF * 2), "bn3":   bn(NGF * 2),
        "deconv4":   deconv(NGF * 2, NGF),     "bn4":   bn(NGF),
        "deconv5":   deconv(NGF, 1),
    }


# ----------------------------- forward pass ----------------------------------
def generator_forward(params, input_nchw, label_nchw):
    B = input_nchw.shape[0]
    noise = input_nchw.reshape(B, NZ).astype(jnp.bfloat16)
    label = label_nchw.reshape(B, 10).astype(jnp.bfloat16)

    # ---- layer 1: both 1x1 -> 4x4 deconv branches + BN + LeakyReLU, fused ----
    # (conv biases before training-mode BN are cancelled by mean subtraction)
    P1 = layer1_patches(noise, label)
    W1 = layer1_weight(params["deconv1_1"]["w"],
                       params["deconv1_2"]["w"], NZ).astype(jnp.bfloat16)
    g1 = jnp.concatenate([params["bn1_1"]["gamma"],
                          params["bn1_2"]["gamma"]]).reshape(-1, 1)
    b1 = jnp.concatenate([params["bn1_1"]["beta"],
                          params["bn1_2"]["beta"]]).reshape(-1, 1)
    x = fused_layer1(P1, W1, g1, b1)                       # (8ngf, B*16) bf16
    x = x.reshape(8 * NGF, B, 4, 4)                        # channel-major NHWC->CM

    # ---- stride-2 deconv + BN + LeakyReLU layers ----
    for dc, bn in (("deconv2", "bn2"), ("deconv3", "bn3"), ("deconv4", "bn4")):
        _, Bb, H, W = x.shape
        P = phase_patches(x)                               # (4, 4Cin, B*H*W) bf16
        Wt = deconv_s2_weight(params[dc]["w"]).astype(jnp.bfloat16)
        g = params[bn]["gamma"].reshape(-1, 1)
        b = params[bn]["beta"].reshape(-1, 1)
        o = fused_deconv_bn_lrelu(P, Wt, g, b)             # (4, Cout, B*H*W)
        x = interleave_phases_cm(o, Bb, H, W)              # (Cout, B, 2H, 2W)

    # ---- final stride-2 deconv + bias + tanh ----
    _, Bb, H, W = x.shape
    P = phase_patches(x)                                   # (4, 4*ngf, B*H*W)
    Wt = deconv_s2_weight(params["deconv5"]["w"]).astype(jnp.bfloat16)
    bias = params["deconv5"]["b"].reshape(1, 1)
    o = fused_deconv_tanh(P, Wt, bias)                     # (4, 1, B*H*W) f32
    o = o.reshape(2, 2, 1, Bb, H, W)
    out = jnp.transpose(o, (3, 2, 4, 0, 5, 1)).reshape(Bb, 1, 2 * H, 2 * W)
    return out                                             # NCHW (B, 1, 64, 64)


# ----------------------------- main ------------------------------------------
if __name__ == "__main__":
    key = jax.random.PRNGKey(0)
    kp, ki, kl = jax.random.split(key, 3)
    params = init_params(kp)

    B = 2
    noise = jax.random.normal(ki, (B, NZ, 1, 1), jnp.float32)
    label = jax.nn.one_hot(jax.random.randint(kl, (B,), 0, 10), 10,
                           dtype=jnp.float32).reshape(B, 10, 1, 1)

    out = jax.jit(generator_forward)(params, noise, label)
    jax.block_until_ready(out)
    assert out.shape == (B, 1, 64, 64), out.shape
    assert bool(jnp.all(jnp.isfinite(out)))
    print("KERNEL_OK")
</pallas_src>

<mosaic_0001>
module attributes {stable_mosaic.version = 11 : i64} {
  func.func @_l1_mm_bn_lrelu_kernel(%arg0: i32, %arg1: memref<288x32xbf16, #tpu.memory_space<vmem>>, %arg2: memref<64x288xbf16, #tpu.memory_space<vmem>>, %arg3: memref<64x1xf32, #tpu.memory_space<vmem>>, %arg4: memref<64x1xf32, #tpu.memory_space<vmem>>, %arg5: memref<64x32xbf16, #tpu.memory_space<vmem>>) attributes {dimension_semantics = [#tpu.dimension_semantics<arbitrary>], iteration_bounds = array<i64: 1>, scalar_prefetch = 0 : i64, scratch_operands = 0 : i64, tpu.core_type = #tpu.core_type<tc>, window_params = [{pipeline_mode = #tpu.pipeline_mode<synchronous>, transform_indices = @transform_0, window_bounds = array<i64: 288, 32>}, {pipeline_mode = #tpu.pipeline_mode<synchronous>, transform_indices = @transform_1, window_bounds = array<i64: 64, 288>}, {pipeline_mode = #tpu.pipeline_mode<synchronous>, transform_indices = @transform_2, window_bounds = array<i64: 64, 1>}, {pipeline_mode = #tpu.pipeline_mode<synchronous>, transform_indices = @transform_3, window_bounds = array<i64: 64, 1>}, {pipeline_mode = #tpu.pipeline_mode<synchronous>, transform_indices = @transform_4, window_bounds = array<i64: 64, 32>}]} {
    %c0 = arith.constant 0 : index
    %c0_0 = arith.constant 0 : index
    %0 = vector.load %arg2[%c0, %c0_0] : memref<64x288xbf16, #tpu.memory_space<vmem>>, vector<64x288xbf16>
    %c0_1 = arith.constant 0 : index
    %c0_2 = arith.constant 0 : index
    %1 = vector.load %arg1[%c0_1, %c0_2] : memref<288x32xbf16, #tpu.memory_space<vmem>>, vector<288x32xbf16>
    %cst = arith.constant dense<0.000000e+00> : vector<64x32xf32>
    %2 = tpu.matmul %0, %1, %cst {dimension_numbers = #tpu.dot_dimension_numbers<[1], [0], [0], [1], [0, 0, 1, 1], [], []>} : vector<64x288xbf16>, vector<288x32xbf16>, vector<64x32xf32> -> vector<64x32xf32>
    %cst_3 = arith.constant dense<0.000000e+00> : vector<64xf32>
    %3 = vector.multi_reduction <add>, %2, %cst_3 [1] : vector<64x32xf32> to vector<64xf32>
    %4 = vector.shape_cast %3 : vector<64xf32> to vector<64x1xf32>
    %cst_4 = arith.constant 3.200000e+01 : f32
    %5 = vector.broadcast %cst_4 : f32 to vector<64x1xf32>
    %6 = arith.divf %4, %5 : vector<64x1xf32>
    %7 = vector.broadcast %6 : vector<64x1xf32> to vector<64x32xf32>
    %8 = arith.subf %2, %7 : vector<64x32xf32>
    %9 = arith.mulf %8, %8 : vector<64x32xf32>
    %cst_5 = arith.constant dense<0.000000e+00> : vector<64xf32>
    %10 = vector.multi_reduction <add>, %9, %cst_5 [1] : vector<64x32xf32> to vector<64xf32>
    %11 = vector.shape_cast %10 : vector<64xf32> to vector<64x1xf32>
    %cst_6 = arith.constant 3.200000e+01 : f32
    %12 = vector.broadcast %cst_6 : f32 to vector<64x1xf32>
    %13 = arith.divf %11, %12 : vector<64x1xf32>
    %c0_7 = arith.constant 0 : index
    %c0_8 = arith.constant 0 : index
    %14 = vector.load %arg3[%c0_7, %c0_8] : memref<64x1xf32, #tpu.memory_space<vmem>>, vector<64x1xf32>
    %15 = vector.broadcast %6 : vector<64x1xf32> to vector<64x32xf32>
    %16 = arith.subf %2, %15 : vector<64x32xf32>
    %17 = vector.broadcast %14 : vector<64x1xf32> to vector<64x32xf32>
    %18 = arith.mulf %17, %16 : vector<64x32xf32>
    %cst_9 = arith.constant 9.99999974E-6 : f32
    %19 = vector.broadcast %cst_9 : f32 to vector<64x1xf32>
    %20 = arith.addf %13, %19 : vector<64x1xf32>
    %21 = math.rsqrt %20 : vector<64x1xf32>
    %22 = vector.broadcast %21 : vector<64x1xf32> to vector<64x32xf32>
    %23 = arith.mulf %18, %22 : vector<64x32xf32>
    %c0_10 = arith.constant 0 : index
    %c0_11 = arith.constant 0 : index
    %24 = vector.load %arg4[%c0_10, %c0_11] : memref<64x1xf32, #tpu.memory_space<vmem>>, vector<64x1xf32>
    %25 = vector.broadcast %24 : vector<64x1xf32> to vector<64x32xf32>
    %26 = arith.addf %23, %25 : vector<64x32xf32>
    %cst_12 = arith.constant 0.000000e+00 : f32
    %27 = vector.broadcast %cst_12 : f32 to vector<64x32xf32>
    %28 = arith.cmpf oge, %26, %27 : vector<64x32xf32>
    %cst_13 = arith.constant 2.000000e-01 : f32
    %29 = vector.broadcast %cst_13 : f32 to vector<64x32xf32>
    %30 = arith.mulf %29, %26 : vector<64x32xf32>
    %31 = arith.select %28, %26, %30 : vector<64x32xi1>, vector<64x32xf32>
    %32 = arith.truncf %31 : vector<64x32xf32> to vector<64x32xbf16>
    %c0_14 = arith.constant 0 : index
    %c0_15 = arith.constant 0 : index
    %33 = vector.load %arg5[%c0_14, %c0_15] : memref<64x32xbf16, #tpu.memory_space<vmem>>, vector<64x32xbf16>
    tpu.vector_store %arg5[%c0_14, %c0_15], %32 {strides = array<i32>} : memref<64x32xbf16, #tpu.memory_space<vmem>>, vector<64x32xbf16>,
    return
  }
  func.func @transform_0(%arg0: i32) -> (i32, i32) {
    %c0_i32 = arith.constant 0 : i32
    %c0_i32_0 = arith.constant 0 : i32
    %c0_i32_1 = arith.constant 0 : i32
    return %c0_i32, %c0_i32_0 : i32, i32
  }
  func.func @transform_1(%arg0: i32) -> (i32, i32) {
    %c0_i32 = arith.constant 0 : i32
    %c0_i32_0 = arith.constant 0 : i32
    %c0_i32_1 = arith.constant 0 : i32
    return %c0_i32, %c0_i32_0 : i32, i32
  }
  func.func @transform_2(%arg0: i32) -> (i32, i32) {
    %c0_i32 = arith.constant 0 : i32
    %c0_i32_0 = arith.constant 0 : i32
    %c0_i32_1 = arith.constant 0 : i32
    return %c0_i32, %c0_i32_0 : i32, i32
  }
  func.func @transform_3(%arg0: i32) -> (i32, i32) {
    %c0_i32 = arith.constant 0 : i32
    %c0_i32_0 = arith.constant 0 : i32
    %c0_i32_1 = arith.constant 0 : i32
    return %c0_i32, %c0_i32_0 : i32, i32
  }
  func.func @transform_4(%arg0: i32) -> (i32, i32) {
    %c0_i32 = arith.constant 0 : i32
    %c0_i32_0 = arith.constant 0 : i32
    %c0_i32_1 = arith.constant 0 : i32
    return %c0_i32, %c0_i32_0 : i32, i32
  }
}

module attributes {stable_mosaic.version = 11 : i64} {
  func.func @_deconv_bn_lrelu_kernel(%arg0: i32, %arg1: memref<4x256x32xbf16, #tpu.memory_space<vmem>>, %arg2: memref<4x32x256xbf16, #tpu.memory_space<vmem>>, %arg3: memref<32x1xf32, #tpu.memory_space<vmem>>, %arg4: memref<32x1xf32, #tpu.memory_space<vmem>>, %arg5: memref<4x32x32xbf16, #tpu.memory_space<vmem>>) attributes {dimension_semantics = [#tpu.dimension_semantics<arbitrary>], iteration_bounds = array<i64: 1>, scalar_prefetch = 0 : i64, scratch_operands = 0 : i64, tpu.core_type = #tpu.core_type<tc>, window_params = [{pipeline_mode = #tpu.pipeline_mode<synchronous>, transform_indices = @transform_0, window_bounds = array<i64: 4, 256, 32>}, {pipeline_mode = #tpu.pipeline_mode<synchronous>, transform_indices = @transform_1, window_bounds = array<i64: 4, 32, 256>}, {pipeline_mode = #tpu.pipeline_mode<synchronous>, transform_indices = @transform_2, window_bounds = array<i64: 32, 1>}, {pipeline_mode = #tpu.pipeline_mode<synchronous>, transform_indices = @transform_3, window_bounds = array<i64: 32, 1>}, {pipeline_mode = #tpu.pipeline_mode<synchronous>, transform_indices = @transform_4, window_bounds = array<i64: 4, 32, 32>}]} {
    %c0 = arith.constant 0 : index
    %c0_0 = arith.constant 0 : index
    %c0_1 = arith.constant 0 : index
    %0 = vector.load %arg2[%c0, %c0_0, %c0_1] : memref<4x32x256xbf16, #tpu.memory_space<vmem>>, vector<1x32x256xbf16>
    %1 = vector.shape_cast %0 : vector<1x32x256xbf16> to vector<32x256xbf16>
    %c0_2 = arith.constant 0 : index
    %c0_3 = arith.constant 0 : index
    %c0_4 = arith.constant 0 : index
    %2 = vector.load %arg1[%c0_2, %c0_3, %c0_4] : memref<4x256x32xbf16, #tpu.memory_space<vmem>>, vector<1x256x32xbf16>
    %3 = vector.shape_cast %2 : vector<1x256x32xbf16> to vector<256x32xbf16>
    %cst = arith.constant dense<0.000000e+00> : vector<32x32xf32>
    %4 = tpu.matmul %1, %3, %cst {dimension_numbers = #tpu.dot_dimension_numbers<[1], [0], [0], [1], [0, 0, 1, 1], [], []>} : vector<32x256xbf16>, vector<256x32xbf16>, vector<32x32xf32> -> vector<32x32xf32>
    %c1 = arith.constant 1 : index
    %c0_5 = arith.constant 0 : index
    %c0_6 = arith.constant 0 : index
    %5 = vector.load %arg2[%c1, %c0_5, %c0_6] : memref<4x32x256xbf16, #tpu.memory_space<vmem>>, vector<1x32x256xbf16>
    %6 = vector.shape_cast %5 : vector<1x32x256xbf16> to vector<32x256xbf16>
    %c1_7 = arith.constant 1 : index
    %c0_8 = arith.constant 0 : index
    %c0_9 = arith.constant 0 : index
    %7 = vector.load %arg1[%c1_7, %c0_8, %c0_9] : memref<4x256x32xbf16, #tpu.memory_space<vmem>>, vector<1x256x32xbf16>
    %8 = vector.shape_cast %7 : vector<1x256x32xbf16> to vector<256x32xbf16>
    %cst_10 = arith.constant dense<0.000000e+00> : vector<32x32xf32>
    %9 = tpu.matmul %6, %8, %cst_10 {dimension_numbers = #tpu.dot_dimension_numbers<[1], [0], [0], [1], [0, 0, 1, 1], [], []>} : vector<32x256xbf16>, vector<256x32xbf16>, vector<32x32xf32> -> vector<32x32xf32>
    %c2 = arith.constant 2 : index
    %c0_11 = arith.constant 0 : index
    %c0_12 = arith.constant 0 : index
    %10 = vector.load %arg2[%c2, %c0_11, %c0_12] : memref<4x32x256xbf16, #tpu.memory_space<vmem>>, vector<1x32x256xbf16>
    %11 = vector.shape_cast %10 : vector<1x32x256xbf16> to vector<32x256xbf16>
    %c2_13 = arith.constant 2 : index
    %c0_14 = arith.constant 0 : index
    %c0_15 = arith.constant 0 : index
    %12 = vector.load %arg1[%c2_13, %c0_14, %c0_15] : memref<4x256x32xbf16, #tpu.memory_space<vmem>>, vector<1x256x32xbf16>
    %13 = vector.shape_cast %12 : vector<1x256x32xbf16> to vector<256x32xbf16>
    %cst_16 = arith.constant dense<0.000000e+00> : vector<32x32xf32>
    %14 = tpu.matmul %11, %13, %cst_16 {dimension_numbers = #tpu.dot_dimension_numbers<[1], [0], [0], [1], [0, 0, 1, 1], [], []>} : vector<32x256xbf16>, vector<256x32xbf16>, vector<32x32xf32> -> vector<32x32xf32>
    %c3 = arith.constant 3 : index
    %c0_17 = arith.constant 0 : index
    %c0_18 = arith.constant 0 : index
    %15 = vector.load %arg2[%c3, %c0_17, %c0_18] : memref<4x32x256xbf16, #tpu.memory_space<vmem>>, vector<1x32x256xbf16>
    %16 = vector.shape_cast %15 : vector<1x32x256xbf16> to vector<32x256xbf16>
    %c3_19 = arith.constant 3 : index
    %c0_20 = arith.constant 0 : index
    %c0_21 = arith.constant 0 : index
    %17 = vector.load %arg1[%c3_19, %c0_20, %c0_21] : memref<4x256x32xbf16, #tpu.memory_space<vmem>>, vector<1x256x32xbf16>
    %18 = vector.shape_cast %17 : vector<1x256x32xbf16> to vector<256x32xbf16>
    %cst_22 = arith.constant dense<0.000000e+00> : vector<32x32xf32>
    %19 = tpu.matmul %16, %18, %cst_22 {dimension_numbers = #tpu.dot_dimension_numbers<[1], [0], [0], [1], [0, 0, 1, 1], [], []>} : vector<32x256xbf16>, vector<256x32xbf16>, vector<32x32xf32> -> vector<32x32xf32>
    %cst_23 = arith.constant dense<0.000000e+00> : vector<32xf32>
    %20 = vector.multi_reduction <add>, %4, %cst_23 [1] : vector<32x32xf32> to vector<32xf32>
    %21 = vector.shape_cast %20 : vector<32xf32> to vector<32x1xf32>
    %cst_24 = arith.constant 0.000000e+00 : f32
    %22 = vector.broadcast %cst_24 : f32 to vector<32x1xf32>
    %23 = arith.addf %22, %21 : vector<32x1xf32>
    %cst_25 = arith.constant dense<0.000000e+00> : vector<32xf32>
    %24 = vector.multi_reduction <add>, %9, %cst_25 [1] : vector<32x32xf32> to vector<32xf32>
    %25 = vector.shape_cast %24 : vector<32xf32> to vector<32x1xf32>
    %26 = arith.addf %23, %25 : vector<32x1xf32>
    %cst_26 = arith.constant dense<0.000000e+00> : vector<32xf32>
    %27 = vector.multi_reduction <add>, %14, %cst_26 [1] : vector<32x32xf32> to vector<32xf32>
    %28 = vector.shape_cast %27 : vector<32xf32> to vector<32x1xf32>
    %29 = arith.addf %26, %28 : vector<32x1xf32>
    %cst_27 = arith.constant dense<0.000000e+00> : vector<32xf32>
    %30 = vector.multi_reduction <add>, %19, %cst_27 [1] : vector<32x32xf32> to vector<32xf32>
    %31 = vector.shape_cast %30 : vector<32xf32> to vector<32x1xf32>
    %32 = arith.addf %29, %31 : vector<32x1xf32>
    %cst_28 = arith.constant 1.280000e+02 : f32
    %33 = vector.broadcast %cst_28 : f32 to vector<32x1xf32>
    %34 = arith.divf %32, %33 : vector<32x1xf32>
    %35 = vector.broadcast %34 : vector<32x1xf32> to vector<32x32xf32>
    %36 = arith.subf %4, %35 : vector<32x32xf32>
    %37 = arith.mulf %36, %36 : vector<32x32xf32>
    %cst_29 = arith.constant dense<0.000000e+00> : vector<32xf32>
    %38 = vector.multi_reduction <add>, %37, %cst_29 [1] : vector<32x32xf32> to vector<32xf32>
    %39 = vector.shape_cast %38 : vector<32xf32> to vector<32x1xf32>
    %cst_30 = arith.constant 0.000000e+00 : f32
    %40 = vector.broadcast %cst_30 : f32 to vector<32x1xf32>
    %41 = arith.addf %40, %39 : vector<32x1xf32>
    %42 = vector.broadcast %34 : vector<32x1xf32> to vector<32x32xf32>
    %43 = arith.subf %9, %42 : vector<32x32xf32>
    %44 = arith.mulf %43, %43 : vector<32x32xf32>
    %cst_31 = arith.constant dense<0.000000e+00> : vector<32xf32>
    %45 = vector.multi_reduction <add>, %44, %cst_31 [1] : vector<32x32xf32> to vector<32xf32>
    %46 = vector.shape_cast %45 : vector<32xf32> to vector<32x1xf32>
    %47 = arith.addf %41, %46 : vector<32x1xf32>
    %48 = vector.broadcast %34 : vector<32x1xf32> to vector<32x32xf32>
    %49 = arith.subf %14, %48 : vector<32x32xf32>
    %50 = arith.mulf %49, %49 : vector<32x32xf32>
    %cst_32 = arith.constant dense<0.000000e+00> : vector<32xf32>
    %51 = vector.multi_reduction <add>, %50, %cst_32 [1] : vector<32x32xf32> to vector<32xf32>
    %52 = vector.shape_cast %51 : vector<32xf32> to vector<32x1xf32>
    %53 = arith.addf %47, %52 : vector<32x1xf32>
    %54 = vector.broadcast %34 : vector<32x1xf32> to vector<32x32xf32>
    %55 = arith.subf %19, %54 : vector<32x32xf32>
    %56 = arith.mulf %55, %55 : vector<32x32xf32>
    %cst_33 = arith.constant dense<0.000000e+00> : vector<32xf32>
    %57 = vector.multi_reduction <add>, %56, %cst_33 [1] : vector<32x32xf32> to vector<32xf32>
    %58 = vector.shape_cast %57 : vector<32xf32> to vector<32x1xf32>
    %59 = arith.addf %53, %58 : vector<32x1xf32>
    %cst_34 = arith.constant 1.280000e+02 : f32
    %60 = vector.broadcast %cst_34 : f32 to vector<32x1xf32>
    %61 = arith.divf %59, %60 : vector<32x1xf32>
    %c0_35 = arith.constant 0 : index
    %c0_36 = arith.constant 0 : index
    %62 = vector.load %arg3[%c0_35, %c0_36] : memref<32x1xf32, #tpu.memory_space<vmem>>, vector<32x1xf32>
    %cst_37 = arith.constant 9.99999974E-6 : f32
    %63 = vector.broadcast %cst_37 : f32 to vector<32x1xf32>
    %64 = arith.addf %61, %63 : vector<32x1xf32>
    %65 = math.rsqrt %64 : vector<32x1xf32>
    %66 = arith.mulf %62, %65 : vector<32x1xf32>
    %c0_38 = arith.constant 0 : index
    %c0_39 = arith.constant 0 : index
    %67 = vector.load %arg4[%c0_38, %c0_39] : memref<32x1xf32, #tpu.memory_space<vmem>>, vector<32x1xf32>
    %68 = arith.mulf %66, %34 : vector<32x1xf32>
    %69 = arith.subf %67, %68 : vector<32x1xf32>
    %70 = vector.broadcast %66 : vector<32x1xf32> to vector<32x32xf32>
    %71 = arith.mulf %70, %4 : vector<32x32xf32>
    %72 = vector.broadcast %69 : vector<32x1xf32> to vector<32x32xf32>
    %73 = arith.addf %71, %72 : vector<32x32xf32>
    %cst_40 = arith.constant 0.000000e+00 : f32
    %74 = vector.broadcast %cst_40 : f32 to vector<32x32xf32>
    %75 = arith.cmpf oge, %73, %74 : vector<32x32xf32>
    %cst_41 = arith.constant 2.000000e-01 : f32
    %76 = vector.broadcast %cst_41 : f32 to vector<32x32xf32>
    %77 = arith.mulf %76, %73 : vector<32x32xf32>
    %78 = arith.select %75, %73, %77 : vector<32x32xi1>, vector<32x32xf32>
    %79 = arith.truncf %78 : vector<32x32xf32> to vector<32x32xbf16>
    %c0_42 = arith.constant 0 : index
    %c0_43 = arith.constant 0 : index
    %c0_44 = arith.constant 0 : index
    %80 = vector.load %arg5[%c0_42, %c0_43, %c0_44] : memref<4x32x32xbf16, #tpu.memory_space<vmem>>, vector<1x32x32xbf16>
    %81 = vector.shape_cast %80 : vector<1x32x32xbf16> to vector<32x32xbf16>
    %82 = vector.shape_cast %79 : vector<32x32xbf16> to vector<1x32x32xbf16>
    tpu.vector_store %arg5[%c0_42, %c0_43, %c0_44], %82 {strides = array<i32>} : memref<4x32x32xbf16, #tpu.memory_space<vmem>>, vector<1x32x32xbf16>,
    %83 = vector.broadcast %66 : vector<32x1xf32> to vector<32x32xf32>
    %84 = arith.mulf %83, %9 : vector<32x32xf32>
    %85 = vector.broadcast %69 : vector<32x1xf32> to vector<32x32xf32>
    %86 = arith.addf %84, %85 : vector<32x32xf32>
    %cst_45 = arith.constant 0.000000e+00 : f32
    %87 = vector.broadcast %cst_45 : f32 to vector<32x32xf32>
    %88 = arith.cmpf oge, %86, %87 : vector<32x32xf32>
    %cst_46 = arith.constant 2.000000e-01 : f32
    %89 = vector.broadcast %cst_46 : f32 to vector<32x32xf32>
    %90 = arith.mulf %89, %86 : vector<32x32xf32>
    %91 = arith.select %88, %86, %90 : vector<32x32xi1>, vector<32x32xf32>
    %92 = arith.truncf %91 : vector<32x32xf32> to vector<32x32xbf16>
    %c1_47 = arith.constant 1 : index
    %c0_48 = arith.constant 0 : index
    %c0_49 = arith.constant 0 : index
    %93 = vector.load %arg5[%c1_47, %c0_48, %c0_49] : memref<4x32x32xbf16, #tpu.memory_space<vmem>>, vector<1x32x32xbf16>
    %94 = vector.shape_cast %93 : vector<1x32x32xbf16> to vector<32x32xbf16>
    %95 = vector.shape_cast %92 : vector<32x32xbf16> to vector<1x32x32xbf16>
    tpu.vector_store %arg5[%c1_47, %c0_48, %c0_49], %95 {strides = array<i32>} : memref<4x32x32xbf16, #tpu.memory_space<vmem>>, vector<1x32x32xbf16>,
    %96 = vector.broadcast %66 : vector<32x1xf32> to vector<32x32xf32>
    %97 = arith.mulf %96, %14 : vector<32x32xf32>
    %98 = vector.broadcast %69 : vector<32x1xf32> to vector<32x32xf32>
    %99 = arith.addf %97, %98 : vector<32x32xf32>
    %cst_50 = arith.constant 0.000000e+00 : f32
    %100 = vector.broadcast %cst_50 : f32 to vector<32x32xf32>
    %101 = arith.cmpf oge, %99, %100 : vector<32x32xf32>
    %cst_51 = arith.constant 2.000000e-01 : f32
    %102 = vector.broadcast %cst_51 : f32 to vector<32x32xf32>
    %103 = arith.mulf %102, %99 : vector<32x32xf32>
    %104 = arith.select %101, %99, %103 : vector<32x32xi1>, vector<32x32xf32>
    %105 = arith.truncf %104 : vector<32x32xf32> to vector<32x32xbf16>
    %c2_52 = arith.constant 2 : index
    %c0_53 = arith.constant 0 : index
    %c0_54 = arith.constant 0 : index
    %106 = vector.load %arg5[%c2_52, %c0_53, %c0_54] : memref<4x32x32xbf16, #tpu.memory_space<vmem>>, vector<1x32x32xbf16>
    %107 = vector.shape_cast %106 : vector<1x32x32xbf16> to vector<32x32xbf16>
    %108 = vector.shape_cast %105 : vector<32x32xbf16> to vector<1x32x32xbf16>
    tpu.vector_store %arg5[%c2_52, %c0_53, %c0_54], %108 {strides = array<i32>} : memref<4x32x32xbf16, #tpu.memory_space<vmem>>, vector<1x32x32xbf16>,
    %109 = vector.broadcast %66 : vector<32x1xf32> to vector<32x32xf32>
    %110 = arith.mulf %109, %19 : vector<32x32xf32>
    %111 = vector.broadcast %69 : vector<32x1xf32> to vector<32x32xf32>
    %112 = arith.addf %110, %111 : vector<32x32xf32>
    %cst_55 = arith.constant 0.000000e+00 : f32
    %113 = vector.broadcast %cst_55 : f32 to vector<32x32xf32>
    %114 = arith.cmpf oge, %112, %113 : vector<32x32xf32>
    %cst_56 = arith.constant 2.000000e-01 : f32
    %115 = vector.broadcast %cst_56 : f32 to vector<32x32xf32>
    %116 = arith.mulf %115, %112 : vector<32x32xf32>
    %117 = arith.select %114, %112, %116 : vector<32x32xi1>, vector<32x32xf32>
    %118 = arith.truncf %117 : vector<32x32xf32> to vector<32x32xbf16>
    %c3_57 = arith.constant 3 : index
    %c0_58 = arith.constant 0 : index
    %c0_59 = arith.constant 0 : index
    %119 = vector.load %arg5[%c3_57, %c0_58, %c0_59] : memref<4x32x32xbf16, #tpu.memory_space<vmem>>, vector<1x32x32xbf16>
    %120 = vector.shape_cast %119 : vector<1x32x32xbf16> to vector<32x32xbf16>
    %121 = vector.shape_cast %118 : vector<32x32xbf16> to vector<1x32x32xbf16>
    tpu.vector_store %arg5[%c3_57, %c0_58, %c0_59], %121 {strides = array<i32>} : memref<4x32x32xbf16, #tpu.memory_space<vmem>>, vector<1x32x32xbf16>,
    return
  }
  func.func @transform_0(%arg0: i32) -> (i32, i32, i32) {
    %c0_i32 = arith.constant 0 : i32
    %c0_i32_0 = arith.constant 0 : i32
    %c0_i32_1 = arith.constant 0 : i32
    %c0_i32_2 = arith.constant 0 : i32
    return %c0_i32, %c0_i32_0, %c0_i32_1 : i32, i32, i32
  }
  func.func @transform_1(%arg0: i32) -> (i32, i32, i32) {
    %c0_i32 = arith.constant 0 : i32
    %c0_i32_0 = arith.constant 0 : i32
    %c0_i32_1 = arith.constant 0 : i32
    %c0_i32_2 = arith.constant 0 : i32
    return %c0_i32, %c0_i32_0, %c0_i32_1 : i32, i32, i32
  }
  func.func @transform_2(%arg0: i32) -> (i32, i32) {
    %c0_i32 = arith.constant 0 : i32
    %c0_i32_0 = arith.constant 0 : i32
    %c0_i32_1 = arith.constant 0 : i32
    return %c0_i32, %c0_i32_0 : i32, i32
  }
  func.func @transform_3(%arg0: i32) -> (i32, i32) {
    %c0_i32 = arith.constant 0 : i32
    %c0_i32_0 = arith.constant 0 : i32
    %c0_i32_1 = arith.constant 0 : i32
    return %c0_i32, %c0_i32_0 : i32, i32
  }
  func.func @transform_4(%arg0: i32) -> (i32, i32, i32) {
    %c0_i32 = arith.constant 0 : i32
    %c0_i32_0 = arith.constant 0 : i32
    %c0_i32_1 = arith.constant 0 : i32
    %c0_i32_2 = arith.constant 0 : i32
    return %c0_i32, %c0_i32_0, %c0_i32_1 : i32, i32, i32
  }
}

module attributes {stable_mosaic.version = 11 : i64} {
  func.func @_deconv_bn_lrelu_kernel(%arg0: i32, %arg1: memref<4x128x128xbf16, #tpu.memory_space<vmem>>, %arg2: memref<4x16x128xbf16, #tpu.memory_space<vmem>>, %arg3: memref<16x1xf32, #tpu.memory_space<vmem>>, %arg4: memref<16x1xf32, #tpu.memory_space<vmem>>, %arg5: memref<4x16x128xbf16, #tpu.memory_space<vmem>>) attributes {dimension_semantics = [#tpu.dimension_semantics<arbitrary>], iteration_bounds = array<i64: 1>, scalar_prefetch = 0 : i64, scratch_operands = 0 : i64, tpu.core_type = #tpu.core_type<tc>, window_params = [{pipeline_mode = #tpu.pipeline_mode<synchronous>, transform_indices = @transform_0, window_bounds = array<i64: 4, 128, 128>}, {pipeline_mode = #tpu.pipeline_mode<synchronous>, transform_indices = @transform_1, window_bounds = array<i64: 4, 16, 128>}, {pipeline_mode = #tpu.pipeline_mode<synchronous>, transform_indices = @transform_2, window_bounds = array<i64: 16, 1>}, {pipeline_mode = #tpu.pipeline_mode<synchronous>, transform_indices = @transform_3, window_bounds = array<i64: 16, 1>}, {pipeline_mode = #tpu.pipeline_mode<synchronous>, transform_indices = @transform_4, window_bounds = array<i64: 4, 16, 128>}]} {
    %c0 = arith.constant 0 : index
    %c0_0 = arith.constant 0 : index
    %c0_1 = arith.constant 0 : index
    %0 = vector.load %arg2[%c0, %c0_0, %c0_1] : memref<4x16x128xbf16, #tpu.memory_space<vmem>>, vector<1x16x128xbf16>
    %1 = vector.shape_cast %0 : vector<1x16x128xbf16> to vector<16x128xbf16>
    %c0_2 = arith.constant 0 : index
    %c0_3 = arith.constant 0 : index
    %c0_4 = arith.constant 0 : index
    %2 = vector.load %arg1[%c0_2, %c0_3, %c0_4] : memref<4x128x128xbf16, #tpu.memory_space<vmem>>, vector<1x128x128xbf16>
    %3 = vector.shape_cast %2 : vector<1x128x128xbf16> to vector<128x128xbf16>
    %cst = arith.constant dense<0.000000e+00> : vector<16x128xf32>
    %4 = tpu.matmul %1, %3, %cst {dimension_numbers = #tpu.dot_dimension_numbers<[1], [0], [0], [1], [0, 0, 1, 1], [], []>} : vector<16x128xbf16>, vector<128x128xbf16>, vector<16x128xf32> -> vector<16x128xf32>
    %c1 = arith.constant 1 : index
    %c0_5 = arith.constant 0 : index
    %c0_6 = arith.constant 0 : index
    %5 = vector.load %arg2[%c1, %c0_5, %c0_6] : memref<4x16x128xbf16, #tpu.memory_space<vmem>>, vector<1x16x128xbf16>
    %6 = vector.shape_cast %5 : vector<1x16x128xbf16> to vector<16x128xbf16>
    %c1_7 = arith.constant 1 : index
    %c0_8 = arith.constant 0 : index
    %c0_9 = arith.constant 0 : index
    %7 = vector.load %arg1[%c1_7, %c0_8, %c0_9] : memref<4x128x128xbf16, #tpu.memory_space<vmem>>, vector<1x128x128xbf16>
    %8 = vector.shape_cast %7 : vector<1x128x128xbf16> to vector<128x128xbf16>
    %cst_10 = arith.constant dense<0.000000e+00> : vector<16x128xf32>
    %9 = tpu.matmul %6, %8, %cst_10 {dimension_numbers = #tpu.dot_dimension_numbers<[1], [0], [0], [1], [0, 0, 1, 1], [], []>} : vector<16x128xbf16>, vector<128x128xbf16>, vector<16x128xf32> -> vector<16x128xf32>
    %c2 = arith.constant 2 : index
    %c0_11 = arith.constant 0 : index
    %c0_12 = arith.constant 0 : index
    %10 = vector.load %arg2[%c2, %c0_11, %c0_12] : memref<4x16x128xbf16, #tpu.memory_space<vmem>>, vector<1x16x128xbf16>
    %11 = vector.shape_cast %10 : vector<1x16x128xbf16> to vector<16x128xbf16>
    %c2_13 = arith.constant 2 : index
    %c0_14 = arith.constant 0 : index
    %c0_15 = arith.constant 0 : index
    %12 = vector.load %arg1[%c2_13, %c0_14, %c0_15] : memref<4x128x128xbf16, #tpu.memory_space<vmem>>, vector<1x128x128xbf16>
    %13 = vector.shape_cast %12 : vector<1x128x128xbf16> to vector<128x128xbf16>
    %cst_16 = arith.constant dense<0.000000e+00> : vector<16x128xf32>
    %14 = tpu.matmul %11, %13, %cst_16 {dimension_numbers = #tpu.dot_dimension_numbers<[1], [0], [0], [1], [0, 0, 1, 1], [], []>} : vector<16x128xbf16>, vector<128x128xbf16>, vector<16x128xf32> -> vector<16x128xf32>
    %c3 = arith.constant 3 : index
    %c0_17 = arith.constant 0 : index
    %c0_18 = arith.constant 0 : index
    %15 = vector.load %arg2[%c3, %c0_17, %c0_18] : memref<4x16x128xbf16, #tpu.memory_space<vmem>>, vector<1x16x128xbf16>
    %16 = vector.shape_cast %15 : vector<1x16x128xbf16> to vector<16x128xbf16>
    %c3_19 = arith.constant 3 : index
    %c0_20 = arith.constant 0 : index
    %c0_21 = arith.constant 0 : index
    %17 = vector.load %arg1[%c3_19, %c0_20, %c0_21] : memref<4x128x128xbf16, #tpu.memory_space<vmem>>, vector<1x128x128xbf16>
    %18 = vector.shape_cast %17 : vector<1x128x128xbf16> to vector<128x128xbf16>
    %cst_22 = arith.constant dense<0.000000e+00> : vector<16x128xf32>
    %19 = tpu.matmul %16, %18, %cst_22 {dimension_numbers = #tpu.dot_dimension_numbers<[1], [0], [0], [1], [0, 0, 1, 1], [], []>} : vector<16x128xbf16>, vector<128x128xbf16>, vector<16x128xf32> -> vector<16x128xf32>
    %cst_23 = arith.constant dense<0.000000e+00> : vector<16xf32>
    %20 = vector.multi_reduction <add>, %4, %cst_23 [1] : vector<16x128xf32> to vector<16xf32>
    %21 = vector.shape_cast %20 : vector<16xf32> to vector<16x1xf32>
    %cst_24 = arith.constant 0.000000e+00 : f32
    %22 = vector.broadcast %cst_24 : f32 to vector<16x1xf32>
    %23 = arith.addf %22, %21 : vector<16x1xf32>
    %cst_25 = arith.constant dense<0.000000e+00> : vector<16xf32>
    %24 = vector.multi_reduction <add>, %9, %cst_25 [1] : vector<16x128xf32> to vector<16xf32>
    %25 = vector.shape_cast %24 : vector<16xf32> to vector<16x1xf32>
    %26 = arith.addf %23, %25 : vector<16x1xf32>
    %cst_26 = arith.constant dense<0.000000e+00> : vector<16xf32>
    %27 = vector.multi_reduction <add>, %14, %cst_26 [1] : vector<16x128xf32> to vector<16xf32>
    %28 = vector.shape_cast %27 : vector<16xf32> to vector<16x1xf32>
    %29 = arith.addf %26, %28 : vector<16x1xf32>
    %cst_27 = arith.constant dense<0.000000e+00> : vector<16xf32>
    %30 = vector.multi_reduction <add>, %19, %cst_27 [1] : vector<16x128xf32> to vector<16xf32>
    %31 = vector.shape_cast %30 : vector<16xf32> to vector<16x1xf32>
    %32 = arith.addf %29, %31 : vector<16x1xf32>
    %cst_28 = arith.constant 5.120000e+02 : f32
    %33 = vector.broadcast %cst_28 : f32 to vector<16x1xf32>
    %34 = arith.divf %32, %33 : vector<16x1xf32>
    %35 = vector.broadcast %34 : vector<16x1xf32> to vector<16x128xf32>
    %36 = arith.subf %4, %35 : vector<16x128xf32>
    %37 = arith.mulf %36, %36 : vector<16x128xf32>
    %cst_29 = arith.constant dense<0.000000e+00> : vector<16xf32>
    %38 = vector.multi_reduction <add>, %37, %cst_29 [1] : vector<16x128xf32> to vector<16xf32>
    %39 = vector.shape_cast %38 : vector<16xf32> to vector<16x1xf32>
    %cst_30 = arith.constant 0.000000e+00 : f32
    %40 = vector.broadcast %cst_30 : f32 to vector<16x1xf32>
    %41 = arith.addf %40, %39 : vector<16x1xf32>
    %42 = vector.broadcast %34 : vector<16x1xf32> to vector<16x128xf32>
    %43 = arith.subf %9, %42 : vector<16x128xf32>
    %44 = arith.mulf %43, %43 : vector<16x128xf32>
    %cst_31 = arith.constant dense<0.000000e+00> : vector<16xf32>
    %45 = vector.multi_reduction <add>, %44, %cst_31 [1] : vector<16x128xf32> to vector<16xf32>
    %46 = vector.shape_cast %45 : vector<16xf32> to vector<16x1xf32>
    %47 = arith.addf %41, %46 : vector<16x1xf32>
    %48 = vector.broadcast %34 : vector<16x1xf32> to vector<16x128xf32>
    %49 = arith.subf %14, %48 : vector<16x128xf32>
    %50 = arith.mulf %49, %49 : vector<16x128xf32>
    %cst_32 = arith.constant dense<0.000000e+00> : vector<16xf32>
    %51 = vector.multi_reduction <add>, %50, %cst_32 [1] : vector<16x128xf32> to vector<16xf32>
    %52 = vector.shape_cast %51 : vector<16xf32> to vector<16x1xf32>
    %53 = arith.addf %47, %52 : vector<16x1xf32>
    %54 = vector.broadcast %34 : vector<16x1xf32> to vector<16x128xf32>
    %55 = arith.subf %19, %54 : vector<16x128xf32>
    %56 = arith.mulf %55, %55 : vector<16x128xf32>
    %cst_33 = arith.constant dense<0.000000e+00> : vector<16xf32>
    %57 = vector.multi_reduction <add>, %56, %cst_33 [1] : vector<16x128xf32> to vector<16xf32>
    %58 = vector.shape_cast %57 : vector<16xf32> to vector<16x1xf32>
    %59 = arith.addf %53, %58 : vector<16x1xf32>
    %cst_34 = arith.constant 5.120000e+02 : f32
    %60 = vector.broadcast %cst_34 : f32 to vector<16x1xf32>
    %61 = arith.divf %59, %60 : vector<16x1xf32>
    %c0_35 = arith.constant 0 : index
    %c0_36 = arith.constant 0 : index
    %62 = vector.load %arg3[%c0_35, %c0_36] : memref<16x1xf32, #tpu.memory_space<vmem>>, vector<16x1xf32>
    %cst_37 = arith.constant 9.99999974E-6 : f32
    %63 = vector.broadcast %cst_37 : f32 to vector<16x1xf32>
    %64 = arith.addf %61, %63 : vector<16x1xf32>
    %65 = math.rsqrt %64 : vector<16x1xf32>
    %66 = arith.mulf %62, %65 : vector<16x1xf32>
    %c0_38 = arith.constant 0 : index
    %c0_39 = arith.constant 0 : index
    %67 = vector.load %arg4[%c0_38, %c0_39] : memref<16x1xf32, #tpu.memory_space<vmem>>, vector<16x1xf32>
    %68 = arith.mulf %66, %34 : vector<16x1xf32>
    %69 = arith.subf %67, %68 : vector<16x1xf32>
    %70 = vector.broadcast %66 : vector<16x1xf32> to vector<16x128xf32>
    %71 = arith.mulf %70, %4 : vector<16x128xf32>
    %72 = vector.broadcast %69 : vector<16x1xf32> to vector<16x128xf32>
    %73 = arith.addf %71, %72 : vector<16x128xf32>
    %cst_40 = arith.constant 0.000000e+00 : f32
    %74 = vector.broadcast %cst_40 : f32 to vector<16x128xf32>
    %75 = arith.cmpf oge, %73, %74 : vector<16x128xf32>
    %cst_41 = arith.constant 2.000000e-01 : f32
    %76 = vector.broadcast %cst_41 : f32 to vector<16x128xf32>
    %77 = arith.mulf %76, %73 : vector<16x128xf32>
    %78 = arith.select %75, %73, %77 : vector<16x128xi1>, vector<16x128xf32>
    %79 = arith.truncf %78 : vector<16x128xf32> to vector<16x128xbf16>
    %c0_42 = arith.constant 0 : index
    %c0_43 = arith.constant 0 : index
    %c0_44 = arith.constant 0 : index
    %80 = vector.load %arg5[%c0_42, %c0_43, %c0_44] : memref<4x16x128xbf16, #tpu.memory_space<vmem>>, vector<1x16x128xbf16>
    %81 = vector.shape_cast %80 : vector<1x16x128xbf16> to vector<16x128xbf16>
    %82 = vector.shape_cast %79 : vector<16x128xbf16> to vector<1x16x128xbf16>
    tpu.vector_store %arg5[%c0_42, %c0_43, %c0_44], %82 {strides = array<i32>} : memref<4x16x128xbf16, #tpu.memory_space<vmem>>, vector<1x16x128xbf16>,
    %83 = vector.broadcast %66 : vector<16x1xf32> to vector<16x128xf32>
    %84 = arith.mulf %83, %9 : vector<16x128xf32>
    %85 = vector.broadcast %69 : vector<16x1xf32> to vector<16x128xf32>
    %86 = arith.addf %84, %85 : vector<16x128xf32>
    %cst_45 = arith.constant 0.000000e+00 : f32
    %87 = vector.broadcast %cst_45 : f32 to vector<16x128xf32>
    %88 = arith.cmpf oge, %86, %87 : vector<16x128xf32>
    %cst_46 = arith.constant 2.000000e-01 : f32
    %89 = vector.broadcast %cst_46 : f32 to vector<16x128xf32>
    %90 = arith.mulf %89, %86 : vector<16x128xf32>
    %91 = arith.select %88, %86, %90 : vector<16x128xi1>, vector<16x128xf32>
    %92 = arith.truncf %91 : vector<16x128xf32> to vector<16x128xbf16>
    %c1_47 = arith.constant 1 : index
    %c0_48 = arith.constant 0 : index
    %c0_49 = arith.constant 0 : index
    %93 = vector.load %arg5[%c1_47, %c0_48, %c0_49] : memref<4x16x128xbf16, #tpu.memory_space<vmem>>, vector<1x16x128xbf16>
    %94 = vector.shape_cast %93 : vector<1x16x128xbf16> to vector<16x128xbf16>
    %95 = vector.shape_cast %92 : vector<16x128xbf16> to vector<1x16x128xbf16>
    tpu.vector_store %arg5[%c1_47, %c0_48, %c0_49], %95 {strides = array<i32>} : memref<4x16x128xbf16, #tpu.memory_space<vmem>>, vector<1x16x128xbf16>,
    %96 = vector.broadcast %66 : vector<16x1xf32> to vector<16x128xf32>
    %97 = arith.mulf %96, %14 : vector<16x128xf32>
    %98 = vector.broadcast %69 : vector<16x1xf32> to vector<16x128xf32>
    %99 = arith.addf %97, %98 : vector<16x128xf32>
    %cst_50 = arith.constant 0.000000e+00 : f32
    %100 = vector.broadcast %cst_50 : f32 to vector<16x128xf32>
    %101 = arith.cmpf oge, %99, %100 : vector<16x128xf32>
    %cst_51 = arith.constant 2.000000e-01 : f32
    %102 = vector.broadcast %cst_51 : f32 to vector<16x128xf32>
    %103 = arith.mulf %102, %99 : vector<16x128xf32>
    %104 = arith.select %101, %99, %103 : vector<16x128xi1>, vector<16x128xf32>
    %105 = arith.truncf %104 : vector<16x128xf32> to vector<16x128xbf16>
    %c2_52 = arith.constant 2 : index
    %c0_53 = arith.constant 0 : index
    %c0_54 = arith.constant 0 : index
    %106 = vector.load %arg5[%c2_52, %c0_53, %c0_54] : memref<4x16x128xbf16, #tpu.memory_space<vmem>>, vector<1x16x128xbf16>
    %107 = vector.shape_cast %106 : vector<1x16x128xbf16> to vector<16x128xbf16>
    %108 = vector.shape_cast %105 : vector<16x128xbf16> to vector<1x16x128xbf16>
    tpu.vector_store %arg5[%c2_52, %c0_53, %c0_54], %108 {strides = array<i32>} : memref<4x16x128xbf16, #tpu.memory_space<vmem>>, vector<1x16x128xbf16>,
    %109 = vector.broadcast %66 : vector<16x1xf32> to vector<16x128xf32>
    %110 = arith.mulf %109, %19 : vector<16x128xf32>
    %111 = vector.broadcast %69 : vector<16x1xf32> to vector<16x128xf32>
    %112 = arith.addf %110, %111 : vector<16x128xf32>
    %cst_55 = arith.constant 0.000000e+00 : f32
    %113 = vector.broadcast %cst_55 : f32 to vector<16x128xf32>
    %114 = arith.cmpf oge, %112, %113 : vector<16x128xf32>
    %cst_56 = arith.constant 2.000000e-01 : f32
    %115 = vector.broadcast %cst_56 : f32 to vector<16x128xf32>
    %116 = arith.mulf %115, %112 : vector<16x128xf32>
    %117 = arith.select %114, %112, %116 : vector<16x128xi1>, vector<16x128xf32>
    %118 = arith.truncf %117 : vector<16x128xf32> to vector<16x128xbf16>
    %c3_57 = arith.constant 3 : index
    %c0_58 = arith.constant 0 : index
    %c0_59 = arith.constant 0 : index
    %119 = vector.load %arg5[%c3_57, %c0_58, %c0_59] : memref<4x16x128xbf16, #tpu.memory_space<vmem>>, vector<1x16x128xbf16>
    %120 = vector.shape_cast %119 : vector<1x16x128xbf16> to vector<16x128xbf16>
    %121 = vector.shape_cast %118 : vector<16x128xbf16> to vector<1x16x128xbf16>
    tpu.vector_store %arg5[%c3_57, %c0_58, %c0_59], %121 {strides = array<i32>} : memref<4x16x128xbf16, #tpu.memory_space<vmem>>, vector<1x16x128xbf16>,
    return
  }
  func.func @transform_0(%arg0: i32) -> (i32, i32, i32) {
    %c0_i32 = arith.constant 0 : i32
    %c0_i32_0 = arith.constant 0 : i32
    %c0_i32_1 = arith.constant 0 : i32
    %c0_i32_2 = arith.constant 0 : i32
    return %c0_i32, %c0_i32_0, %c0_i32_1 : i32, i32, i32
  }
  func.func @transform_1(%arg0: i32) -> (i32, i32, i32) {
    %c0_i32 = arith.constant 0 : i32
    %c0_i32_0 = arith.constant 0 : i32
    %c0_i32_1 = arith.constant 0 : i32
    %c0_i32_2 = arith.constant 0 : i32
    return %c0_i32, %c0_i32_0, %c0_i32_1 : i32, i32, i32
  }
  func.func @transform_2(%arg0: i32) -> (i32, i32) {
    %c0_i32 = arith.constant 0 : i32
    %c0_i32_0 = arith.constant 0 : i32
    %c0_i32_1 = arith.constant 0 : i32
    return %c0_i32, %c0_i32_0 : i32, i32
  }
  func.func @transform_3(%arg0: i32) -> (i32, i32) {
    %c0_i32 = arith.constant 0 : i32
    %c0_i32_0 = arith.constant 0 : i32
    %c0_i32_1 = arith.constant 0 : i32
    return %c0_i32, %c0_i32_0 : i32, i32
  }
  func.func @transform_4(%arg0: i32) -> (i32, i32, i32) {
    %c0_i32 = arith.constant 0 : i32
    %c0_i32_0 = arith.constant 0 : i32
    %c0_i32_1 = arith.constant 0 : i32
    %c0_i32_2 = arith.constant 0 : i32
    return %c0_i32, %c0_i32_0, %c0_i32_1 : i32, i32, i32
  }
}

module attributes {stable_mosaic.version = 11 : i64} {
  func.func @_deconv_bn_lrelu_kernel(%arg0: i32, %arg1: memref<4x64x512xbf16, #tpu.memory_space<vmem>>, %arg2: memref<4x8x64xbf16, #tpu.memory_space<vmem>>, %arg3: memref<8x1xf32, #tpu.memory_space<vmem>>, %arg4: memref<8x1xf32, #tpu.memory_space<vmem>>, %arg5: memref<4x8x512xbf16, #tpu.memory_space<vmem>>) attributes {dimension_semantics = [#tpu.dimension_semantics<arbitrary>], iteration_bounds = array<i64: 1>, scalar_prefetch = 0 : i64, scratch_operands = 0 : i64, tpu.core_type = #tpu.core_type<tc>, window_params = [{pipeline_mode = #tpu.pipeline_mode<synchronous>, transform_indices = @transform_0, window_bounds = array<i64: 4, 64, 512>}, {pipeline_mode = #tpu.pipeline_mode<synchronous>, transform_indices = @transform_1, window_bounds = array<i64: 4, 8, 64>}, {pipeline_mode = #tpu.pipeline_mode<synchronous>, transform_indices = @transform_2, window_bounds = array<i64: 8, 1>}, {pipeline_mode = #tpu.pipeline_mode<synchronous>, transform_indices = @transform_3, window_bounds = array<i64: 8, 1>}, {pipeline_mode = #tpu.pipeline_mode<synchronous>, transform_indices = @transform_4, window_bounds = array<i64: 4, 8, 512>}]} {
    %c0 = arith.constant 0 : index
    %c0_0 = arith.constant 0 : index
    %c0_1 = arith.constant 0 : index
    %0 = vector.load %arg2[%c0, %c0_0, %c0_1] : memref<4x8x64xbf16, #tpu.memory_space<vmem>>, vector<1x8x64xbf16>
    %1 = vector.shape_cast %0 : vector<1x8x64xbf16> to vector<8x64xbf16>
    %c0_2 = arith.constant 0 : index
    %c0_3 = arith.constant 0 : index
    %c0_4 = arith.constant 0 : index
    %2 = vector.load %arg1[%c0_2, %c0_3, %c0_4] : memref<4x64x512xbf16, #tpu.memory_space<vmem>>, vector<1x64x512xbf16>
    %3 = vector.shape_cast %2 : vector<1x64x512xbf16> to vector<64x512xbf16>
    %cst = arith.constant dense<0.000000e+00> : vector<8x512xf32>
    %4 = tpu.matmul %1, %3, %cst {dimension_numbers = #tpu.dot_dimension_numbers<[1], [0], [0], [1], [0, 0, 1, 1], [], []>} : vector<8x64xbf16>, vector<64x512xbf16>, vector<8x512xf32> -> vector<8x512xf32>
    %c1 = arith.constant 1 : index
    %c0_5 = arith.constant 0 : index
    %c0_6 = arith.constant 0 : index
    %5 = vector.load %arg2[%c1, %c0_5, %c0_6] : memref<4x8x64xbf16, #tpu.memory_space<vmem>>, vector<1x8x64xbf16>
    %6 = vector.shape_cast %5 : vector<1x8x64xbf16> to vector<8x64xbf16>
    %c1_7 = arith.constant 1 : index
    %c0_8 = arith.constant 0 : index
    %c0_9 = arith.constant 0 : index
    %7 = vector.load %arg1[%c1_7, %c0_8, %c0_9] : memref<4x64x512xbf16, #tpu.memory_space<vmem>>, vector<1x64x512xbf16>
    %8 = vector.shape_cast %7 : vector<1x64x512xbf16> to vector<64x512xbf16>
    %cst_10 = arith.constant dense<0.000000e+00> : vector<8x512xf32>
    %9 = tpu.matmul %6, %8, %cst_10 {dimension_numbers = #tpu.dot_dimension_numbers<[1], [0], [0], [1], [0, 0, 1, 1], [], []>} : vector<8x64xbf16>, vector<64x512xbf16>, vector<8x512xf32> -> vector<8x512xf32>
    %c2 = arith.constant 2 : index
    %c0_11 = arith.constant 0 : index
    %c0_12 = arith.constant 0 : index
    %10 = vector.load %arg2[%c2, %c0_11, %c0_12] : memref<4x8x64xbf16, #tpu.memory_space<vmem>>, vector<1x8x64xbf16>
    %11 = vector.shape_cast %10 : vector<1x8x64xbf16> to vector<8x64xbf16>
    %c2_13 = arith.constant 2 : index
    %c0_14 = arith.constant 0 : index
    %c0_15 = arith.constant 0 : index
    %12 = vector.load %arg1[%c2_13, %c0_14, %c0_15] : memref<4x64x512xbf16, #tpu.memory_space<vmem>>, vector<1x64x512xbf16>
    %13 = vector.shape_cast %12 : vector<1x64x512xbf16> to vector<64x512xbf16>
    %cst_16 = arith.constant dense<0.000000e+00> : vector<8x512xf32>
    %14 = tpu.matmul %11, %13, %cst_16 {dimension_numbers = #tpu.dot_dimension_numbers<[1], [0], [0], [1], [0, 0, 1, 1], [], []>} : vector<8x64xbf16>, vector<64x512xbf16>, vector<8x512xf32> -> vector<8x512xf32>
    %c3 = arith.constant 3 : index
    %c0_17 = arith.constant 0 : index
    %c0_18 = arith.constant 0 : index
    %15 = vector.load %arg2[%c3, %c0_17, %c0_18] : memref<4x8x64xbf16, #tpu.memory_space<vmem>>, vector<1x8x64xbf16>
    %16 = vector.shape_cast %15 : vector<1x8x64xbf16> to vector<8x64xbf16>
    %c3_19 = arith.constant 3 : index
    %c0_20 = arith.constant 0 : index
    %c0_21 = arith.constant 0 : index
    %17 = vector.load %arg1[%c3_19, %c0_20, %c0_21] : memref<4x64x512xbf16, #tpu.memory_space<vmem>>, vector<1x64x512xbf16>
    %18 = vector.shape_cast %17 : vector<1x64x512xbf16> to vector<64x512xbf16>
    %cst_22 = arith.constant dense<0.000000e+00> : vector<8x512xf32>
    %19 = tpu.matmul %16, %18, %cst_22 {dimension_numbers = #tpu.dot_dimension_numbers<[1], [0], [0], [1], [0, 0, 1, 1], [], []>} : vector<8x64xbf16>, vector<64x512xbf16>, vector<8x512xf32> -> vector<8x512xf32>
    %cst_23 = arith.constant dense<0.000000e+00> : vector<8xf32>
    %20 = vector.multi_reduction <add>, %4, %cst_23 [1] : vector<8x512xf32> to vector<8xf32>
    %21 = vector.shape_cast %20 : vector<8xf32> to vector<8x1xf32>
    %cst_24 = arith.constant 0.000000e+00 : f32
    %22 = vector.broadcast %cst_24 : f32 to vector<8x1xf32>
    %23 = arith.addf %22, %21 : vector<8x1xf32>
    %cst_25 = arith.constant dense<0.000000e+00> : vector<8xf32>
    %24 = vector.multi_reduction <add>, %9, %cst_25 [1] : vector<8x512xf32> to vector<8xf32>
    %25 = vector.shape_cast %24 : vector<8xf32> to vector<8x1xf32>
    %26 = arith.addf %23, %25 : vector<8x1xf32>
    %cst_26 = arith.constant dense<0.000000e+00> : vector<8xf32>
    %27 = vector.multi_reduction <add>, %14, %cst_26 [1] : vector<8x512xf32> to vector<8xf32>
    %28 = vector.shape_cast %27 : vector<8xf32> to vector<8x1xf32>
    %29 = arith.addf %26, %28 : vector<8x1xf32>
    %cst_27 = arith.constant dense<0.000000e+00> : vector<8xf32>
    %30 = vector.multi_reduction <add>, %19, %cst_27 [1] : vector<8x512xf32> to vector<8xf32>
    %31 = vector.shape_cast %30 : vector<8xf32> to vector<8x1xf32>
    %32 = arith.addf %29, %31 : vector<8x1xf32>
    %cst_28 = arith.constant 2.048000e+03 : f32
    %33 = vector.broadcast %cst_28 : f32 to vector<8x1xf32>
    %34 = arith.divf %32, %33 : vector<8x1xf32>
    %35 = vector.broadcast %34 : vector<8x1xf32> to vector<8x512xf32>
    %36 = arith.subf %4, %35 : vector<8x512xf32>
    %37 = arith.mulf %36, %36 : vector<8x512xf32>
    %cst_29 = arith.constant dense<0.000000e+00> : vector<8xf32>
    %38 = vector.multi_reduction <add>, %37, %cst_29 [1] : vector<8x512xf32> to vector<8xf32>
    %39 = vector.shape_cast %38 : vector<8xf32> to vector<8x1xf32>
    %cst_30 = arith.constant 0.000000e+00 : f32
    %40 = vector.broadcast %cst_30 : f32 to vector<8x1xf32>
    %41 = arith.addf %40, %39 : vector<8x1xf32>
    %42 = vector.broadcast %34 : vector<8x1xf32> to vector<8x512xf32>
    %43 = arith.subf %9, %42 : vector<8x512xf32>
    %44 = arith.mulf %43, %43 : vector<8x512xf32>
    %cst_31 = arith.constant dense<0.000000e+00> : vector<8xf32>
    %45 = vector.multi_reduction <add>, %44, %cst_31 [1] : vector<8x512xf32> to vector<8xf32>
    %46 = vector.shape_cast %45 : vector<8xf32> to vector<8x1xf32>
    %47 = arith.addf %41, %46 : vector<8x1xf32>
    %48 = vector.broadcast %34 : vector<8x1xf32> to vector<8x512xf32>
    %49 = arith.subf %14, %48 : vector<8x512xf32>
    %50 = arith.mulf %49, %49 : vector<8x512xf32>
    %cst_32 = arith.constant dense<0.000000e+00> : vector<8xf32>
    %51 = vector.multi_reduction <add>, %50, %cst_32 [1] : vector<8x512xf32> to vector<8xf32>
    %52 = vector.shape_cast %51 : vector<8xf32> to vector<8x1xf32>
    %53 = arith.addf %47, %52 : vector<8x1xf32>
    %54 = vector.broadcast %34 : vector<8x1xf32> to vector<8x512xf32>
    %55 = arith.subf %19, %54 : vector<8x512xf32>
    %56 = arith.mulf %55, %55 : vector<8x512xf32>
    %cst_33 = arith.constant dense<0.000000e+00> : vector<8xf32>
    %57 = vector.multi_reduction <add>, %56, %cst_33 [1] : vector<8x512xf32> to vector<8xf32>
    %58 = vector.shape_cast %57 : vector<8xf32> to vector<8x1xf32>
    %59 = arith.addf %53, %58 : vector<8x1xf32>
    %cst_34 = arith.constant 2.048000e+03 : f32
    %60 = vector.broadcast %cst_34 : f32 to vector<8x1xf32>
    %61 = arith.divf %59, %60 : vector<8x1xf32>
    %c0_35 = arith.constant 0 : index
    %c0_36 = arith.constant 0 : index
    %62 = vector.load %arg3[%c0_35, %c0_36] : memref<8x1xf32, #tpu.memory_space<vmem>>, vector<8x1xf32>
    %cst_37 = arith.constant 9.99999974E-6 : f32
    %63 = vector.broadcast %cst_37 : f32 to vector<8x1xf32>
    %64 = arith.addf %61, %63 : vector<8x1xf32>
    %65 = math.rsqrt %64 : vector<8x1xf32>
    %66 = arith.mulf %62, %65 : vector<8x1xf32>
    %c0_38 = arith.constant 0 : index
    %c0_39 = arith.constant 0 : index
    %67 = vector.load %arg4[%c0_38, %c0_39] : memref<8x1xf32, #tpu.memory_space<vmem>>, vector<8x1xf32>
    %68 = arith.mulf %66, %34 : vector<8x1xf32>
    %69 = arith.subf %67, %68 : vector<8x1xf32>
    %70 = vector.broadcast %66 : vector<8x1xf32> to vector<8x512xf32>
    %71 = arith.mulf %70, %4 : vector<8x512xf32>
    %72 = vector.broadcast %69 : vector<8x1xf32> to vector<8x512xf32>
    %73 = arith.addf %71, %72 : vector<8x512xf32>
    %cst_40 = arith.constant 0.000000e+00 : f32
    %74 = vector.broadcast %cst_40 : f32 to vector<8x512xf32>
    %75 = arith.cmpf oge, %73, %74 : vector<8x512xf32>
    %cst_41 = arith.constant 2.000000e-01 : f32
    %76 = vector.broadcast %cst_41 : f32 to vector<8x512xf32>
    %77 = arith.mulf %76, %73 : vector<8x512xf32>
    %78 = arith.select %75, %73, %77 : vector<8x512xi1>, vector<8x512xf32>
    %79 = arith.truncf %78 : vector<8x512xf32> to vector<8x512xbf16>
    %c0_42 = arith.constant 0 : index
    %c0_43 = arith.constant 0 : index
    %c0_44 = arith.constant 0 : index
    %80 = vector.load %arg5[%c0_42, %c0_43, %c0_44] : memref<4x8x512xbf16, #tpu.memory_space<vmem>>, vector<1x8x512xbf16>
    %81 = vector.shape_cast %80 : vector<1x8x512xbf16> to vector<8x512xbf16>
    %82 = vector.shape_cast %79 : vector<8x512xbf16> to vector<1x8x512xbf16>
    tpu.vector_store %arg5[%c0_42, %c0_43, %c0_44], %82 {strides = array<i32>} : memref<4x8x512xbf16, #tpu.memory_space<vmem>>, vector<1x8x512xbf16>,
    %83 = vector.broadcast %66 : vector<8x1xf32> to vector<8x512xf32>
    %84 = arith.mulf %83, %9 : vector<8x512xf32>
    %85 = vector.broadcast %69 : vector<8x1xf32> to vector<8x512xf32>
    %86 = arith.addf %84, %85 : vector<8x512xf32>
    %cst_45 = arith.constant 0.000000e+00 : f32
    %87 = vector.broadcast %cst_45 : f32 to vector<8x512xf32>
    %88 = arith.cmpf oge, %86, %87 : vector<8x512xf32>
    %cst_46 = arith.constant 2.000000e-01 : f32
    %89 = vector.broadcast %cst_46 : f32 to vector<8x512xf32>
    %90 = arith.mulf %89, %86 : vector<8x512xf32>
    %91 = arith.select %88, %86, %90 : vector<8x512xi1>, vector<8x512xf32>
    %92 = arith.truncf %91 : vector<8x512xf32> to vector<8x512xbf16>
    %c1_47 = arith.constant 1 : index
    %c0_48 = arith.constant 0 : index
    %c0_49 = arith.constant 0 : index
    %93 = vector.load %arg5[%c1_47, %c0_48, %c0_49] : memref<4x8x512xbf16, #tpu.memory_space<vmem>>, vector<1x8x512xbf16>
    %94 = vector.shape_cast %93 : vector<1x8x512xbf16> to vector<8x512xbf16>
    %95 = vector.shape_cast %92 : vector<8x512xbf16> to vector<1x8x512xbf16>
    tpu.vector_store %arg5[%c1_47, %c0_48, %c0_49], %95 {strides = array<i32>} : memref<4x8x512xbf16, #tpu.memory_space<vmem>>, vector<1x8x512xbf16>,
    %96 = vector.broadcast %66 : vector<8x1xf32> to vector<8x512xf32>
    %97 = arith.mulf %96, %14 : vector<8x512xf32>
    %98 = vector.broadcast %69 : vector<8x1xf32> to vector<8x512xf32>
    %99 = arith.addf %97, %98 : vector<8x512xf32>
    %cst_50 = arith.constant 0.000000e+00 : f32
    %100 = vector.broadcast %cst_50 : f32 to vector<8x512xf32>
    %101 = arith.cmpf oge, %99, %100 : vector<8x512xf32>
    %cst_51 = arith.constant 2.000000e-01 : f32
    %102 = vector.broadcast %cst_51 : f32 to vector<8x512xf32>
    %103 = arith.mulf %102, %99 : vector<8x512xf32>
    %104 = arith.select %101, %99, %103 : vector<8x512xi1>, vector<8x512xf32>
    %105 = arith.truncf %104 : vector<8x512xf32> to vector<8x512xbf16>
    %c2_52 = arith.constant 2 : index
    %c0_53 = arith.constant 0 : index
    %c0_54 = arith.constant 0 : index
    %106 = vector.load %arg5[%c2_52, %c0_53, %c0_54] : memref<4x8x512xbf16, #tpu.memory_space<vmem>>, vector<1x8x512xbf16>
    %107 = vector.shape_cast %106 : vector<1x8x512xbf16> to vector<8x512xbf16>
    %108 = vector.shape_cast %105 : vector<8x512xbf16> to vector<1x8x512xbf16>
    tpu.vector_store %arg5[%c2_52, %c0_53, %c0_54], %108 {strides = array<i32>} : memref<4x8x512xbf16, #tpu.memory_space<vmem>>, vector<1x8x512xbf16>,
    %109 = vector.broadcast %66 : vector<8x1xf32> to vector<8x512xf32>
    %110 = arith.mulf %109, %19 : vector<8x512xf32>
    %111 = vector.broadcast %69 : vector<8x1xf32> to vector<8x512xf32>
    %112 = arith.addf %110, %111 : vector<8x512xf32>
    %cst_55 = arith.constant 0.000000e+00 : f32
    %113 = vector.broadcast %cst_55 : f32 to vector<8x512xf32>
    %114 = arith.cmpf oge, %112, %113 : vector<8x512xf32>
    %cst_56 = arith.constant 2.000000e-01 : f32
    %115 = vector.broadcast %cst_56 : f32 to vector<8x512xf32>
    %116 = arith.mulf %115, %112 : vector<8x512xf32>
    %117 = arith.select %114, %112, %116 : vector<8x512xi1>, vector<8x512xf32>
    %118 = arith.truncf %117 : vector<8x512xf32> to vector<8x512xbf16>
    %c3_57 = arith.constant 3 : index
    %c0_58 = arith.constant 0 : index
    %c0_59 = arith.constant 0 : index
    %119 = vector.load %arg5[%c3_57, %c0_58, %c0_59] : memref<4x8x512xbf16, #tpu.memory_space<vmem>>, vector<1x8x512xbf16>
    %120 = vector.shape_cast %119 : vector<1x8x512xbf16> to vector<8x512xbf16>
    %121 = vector.shape_cast %118 : vector<8x512xbf16> to vector<1x8x512xbf16>
    tpu.vector_store %arg5[%c3_57, %c0_58, %c0_59], %121 {strides = array<i32>} : memref<4x8x512xbf16, #tpu.memory_space<vmem>>, vector<1x8x512xbf16>,
    return
  }
  func.func @transform_0(%arg0: i32) -> (i32, i32, i32) {
    %c0_i32 = arith.constant 0 : i32
    %c0_i32_0 = arith.constant 0 : i32
    %c0_i32_1 = arith.constant 0 : i32
    %c0_i32_2 = arith.constant 0 : i32
    return %c0_i32, %c0_i32_0, %c0_i32_1 : i32, i32, i32
  }
  func.func @transform_1(%arg0: i32) -> (i32, i32, i32) {
    %c0_i32 = arith.constant 0 : i32
    %c0_i32_0 = arith.constant 0 : i32
    %c0_i32_1 = arith.constant 0 : i32
    %c0_i32_2 = arith.constant 0 : i32
    return %c0_i32, %c0_i32_0, %c0_i32_1 : i32, i32, i32
  }
  func.func @transform_2(%arg0: i32) -> (i32, i32) {
    %c0_i32 = arith.constant 0 : i32
    %c0_i32_0 = arith.constant 0 : i32
    %c0_i32_1 = arith.constant 0 : i32
    return %c0_i32, %c0_i32_0 : i32, i32
  }
  func.func @transform_3(%arg0: i32) -> (i32, i32) {
    %c0_i32 = arith.constant 0 : i32
    %c0_i32_0 = arith.constant 0 : i32
    %c0_i32_1 = arith.constant 0 : i32
    return %c0_i32, %c0_i32_0 : i32, i32
  }
  func.func @transform_4(%arg0: i32) -> (i32, i32, i32) {
    %c0_i32 = arith.constant 0 : i32
    %c0_i32_0 = arith.constant 0 : i32
    %c0_i32_1 = arith.constant 0 : i32
    %c0_i32_2 = arith.constant 0 : i32
    return %c0_i32, %c0_i32_0, %c0_i32_1 : i32, i32, i32
  }
}

module attributes {stable_mosaic.version = 11 : i64} {
  func.func @_deconv_tanh_kernel(%arg0: i32, %arg1: memref<1x32x2048xbf16, #tpu.memory_space<vmem>>, %arg2: memref<1x1x32xbf16, #tpu.memory_space<vmem>>, %arg3: memref<1x1xf32, #tpu.memory_space<vmem>>, %arg4: memref<1x1x2048xf32, #tpu.memory_space<vmem>>) attributes {dimension_semantics = [#tpu.dimension_semantics<parallel>], iteration_bounds = array<i64: 4>, scalar_prefetch = 0 : i64, scratch_operands = 0 : i64, tpu.core_type = #tpu.core_type<tc>, window_params = [{transform_indices = @transform_0, window_bounds = array<i64: 1, 32, 2048>}, {transform_indices = @transform_1, window_bounds = array<i64: 1, 1, 32>}, {pipeline_mode = #tpu.pipeline_mode<synchronous>, transform_indices = @transform_2, window_bounds = array<i64: 1, 1>}, {transform_indices = @transform_3, window_bounds = array<i64: 1, 1, 2048>}]} {
    %c0 = arith.constant 0 : index
    %c0_0 = arith.constant 0 : index
    %c0_1 = arith.constant 0 : index
    %0 = vector.load %arg2[%c0, %c0_0, %c0_1] : memref<1x1x32xbf16, #tpu.memory_space<vmem>>, vector<1x1x32xbf16>
    %1 = vector.shape_cast %0 : vector<1x1x32xbf16> to vector<1x32xbf16>
    %c0_2 = arith.constant 0 : index
    %c0_3 = arith.constant 0 : index
    %c0_4 = arith.constant 0 : index
    %2 = vector.load %arg1[%c0_2, %c0_3, %c0_4] : memref<1x32x2048xbf16, #tpu.memory_space<vmem>>, vector<1x32x2048xbf16>
    %3 = vector.shape_cast %2 : vector<1x32x2048xbf16> to vector<32x2048xbf16>
    %cst = arith.constant dense<0.000000e+00> : vector<1x2048xf32>
    %4 = tpu.matmul %1, %3, %cst {dimension_numbers = #tpu.dot_dimension_numbers<[1], [0], [0], [1], [0, 0, 1, 1], [], []>} : vector<1x32xbf16>, vector<32x2048xbf16>, vector<1x2048xf32> -> vector<1x2048xf32>
    %c0_5 = arith.constant 0 : index
    %c0_6 = arith.constant 0 : index
    %5 = vector.load %arg3[%c0_5, %c0_6] : memref<1x1xf32, #tpu.memory_space<vmem>>, vector<1x1xf32>
    %6 = vector.broadcast %5 : vector<1x1xf32> to vector<1x2048xf32>
    %7 = arith.addf %4, %6 : vector<1x2048xf32>
    %8 = math.tanh %7 : vector<1x2048xf32>
    %c0_7 = arith.constant 0 : index
    %c0_8 = arith.constant 0 : index
    %c0_9 = arith.constant 0 : index
    %9 = vector.load %arg4[%c0_7, %c0_8, %c0_9] : memref<1x1x2048xf32, #tpu.memory_space<vmem>>, vector<1x1x2048xf32>
    %10 = vector.shape_cast %9 : vector<1x1x2048xf32> to vector<1x2048xf32>
    %11 = vector.shape_cast %8 : vector<1x2048xf32> to vector<1x1x2048xf32>
    tpu.vector_store %arg4[%c0_7, %c0_8, %c0_9], %11 {strides = array<i32>} : memref<1x1x2048xf32, #tpu.memory_space<vmem>>, vector<1x1x2048xf32>,
    return
  }
  func.func @transform_0(%arg0: i32) -> (i32, i32, i32) {
    %c0_i32 = arith.constant 0 : i32
    %c0_i32_0 = arith.constant 0 : i32
    %c0_i32_1 = arith.constant 0 : i32
    return %arg0, %c0_i32, %c0_i32_0 : i32, i32, i32
  }
  func.func @transform_1(%arg0: i32) -> (i32, i32, i32) {
    %c0_i32 = arith.constant 0 : i32
    %c0_i32_0 = arith.constant 0 : i32
    %c0_i32_1 = arith.constant 0 : i32
    return %arg0, %c0_i32, %c0_i32_0 : i32, i32, i32
  }
  func.func @transform_2(%arg0: i32) -> (i32, i32) {
    %c0_i32 = arith.constant 0 : i32
    %c0_i32_0 = arith.constant 0 : i32
    %c0_i32_1 = arith.constant 0 : i32
    return %c0_i32, %c0_i32_0 : i32, i32
  }
  func.func @transform_3(%arg0: i32) -> (i32, i32, i32) {
    %c0_i32 = arith.constant 0 : i32
    %c0_i32_0 = arith.constant 0 : i32
    %c0_i32_1 = arith.constant 0 : i32
    return %arg0, %c0_i32, %c0_i32_0 : i32, i32, i32
  }
}

</mosaic_0001>

<llo_original>
// kernel: generator_forward.5
$region0: #{generator_forward.5}
  #allocation0 [shape = 'u32[]', space=smem, size = 0x4, offset = 0x4, fixed_abs, tag = 'smem constant byte address 0x4 - core index']
  #allocation1 [shape = 'u32[144,128]{1,0:T(1,128)}', space=vmem, size = 0x12000, scoped, tag = 'internal scratch']
  %s0 = inlined_call_operand.vmem [shape: bf16[288,32], index: 0, kind: input, shape index: {}]
  %s1 = inlined_call_operand.vmem [shape: bf16[64,288], index: 1, kind: input, shape index: {}]
  %s2 = inlined_call_operand.vmem [shape: f32[64,1], index: 2, kind: input, shape index: {}]
  %s3 = inlined_call_operand.vmem [shape: f32[64,1], index: 3, kind: input, shape index: {}]
  %s4 = inlined_call_operand.vmem [shape: bf16[64,32], index: 4, kind: output, shape index: {}]
  %s5 = sld [smem:[#allocation0]]
  $region26: #{generator_forward.5} parent=0
    _
  %s7 = ssub.s32 1, %s5
  %s8 = scalar_select 0, %s7, %s5
  // Predicated region
  $region2: #{generator_forward.5} parent=0 // pred_check
    _
  $region3: #{generator_forward.5} parent=0 // pred_check_branch
    %10 = sbr.rel (0) target = $region5
  $region4: #{generator_forward.5} parent=0 // pred_region
    _
  $region5: #{generator_forward.5} parent=0 // pred_fallthru
    _
  // Predicated region
  $region6: #{generator_forward.5} parent=0 // pred_check
    _
  $region7: #{generator_forward.5} parent=0 // pred_check_branch
    %12 = sbr.rel (0) target = $region9
  $region8: #{generator_forward.5} parent=0 // pred_region
    _
  $region9: #{generator_forward.5} parent=0 // pred_fallthru
    _
  // Predicated region
  $region10: #{generator_forward.5} parent=0 // pred_check
    _
  $region11: #{generator_forward.5} parent=0 // pred_check_branch
    %14 = sbr.rel (0) target = $region13
  $region12: #{generator_forward.5} parent=0 // pred_region
    _
  $region13: #{generator_forward.5} parent=0 // pred_fallthru
    _
  // Predicated region
  $region14: #{generator_forward.5} parent=0 // pred_check
    _
  $region15: #{generator_forward.5} parent=0 // pred_check_branch
    %16 = sbr.rel (0) target = $region17
  $region16: #{generator_forward.5} parent=0 // pred_region
    _
  $region17: #{generator_forward.5} parent=0 // pred_fallthru
    _
  %v18 = vld [vmem:[%s1] sm:$0xff]
  %v19 = vld [vmem:[%s1 + $0x8] sm:$0xf]
  %v20 = vld [vmem:[%s1 + $0xc] sm:$0xff]
  %v21 = vld [vmem:[%s1 + $0x14] sm:$0xf]
  %v22 = vld [vmem:[%s1 + $0x18] sm:$0xff]
  %v23 = vld [vmem:[%s1 + $0x20] sm:$0xf]
  %v24 = vld [vmem:[%s1 + $0x24] sm:$0xff]
  %v25 = vld [vmem:[%s1 + $0x2c] sm:$0xf]
  %v26 = vld [vmem:[%s1 + $0x30] sm:$0xff]
  %v27 = vld [vmem:[%s1 + $0x38] sm:$0xf]
  %v28 = vld [vmem:[%s1 + $0x3c] sm:$0xff]
  %v29 = vld [vmem:[%s1 + $0x44] sm:$0xf]
  %v30 = vld [vmem:[%s1 + $0x48] sm:$0xff]
  %v31 = vld [vmem:[%s1 + $0x50] sm:$0xf]
  %v32 = vld [vmem:[%s1 + $0x54] sm:$0xff]
  %v33 = vld [vmem:[%s1 + $0x5c] sm:$0xf]
  %v34 = vld [vmem:[%s0] sm:$0xf]
  %v35 = vld [vmem:[%s0 + $0x4] sm:$0xf]
  %v36 = vld [vmem:[%s0 + $0x8] sm:$0xf]
  %v37 = vld [vmem:[%s0 + $0xc] sm:$0xf]
  %v38 = vld [vmem:[%s0 + $0x10] sm:$0xf]
  %v39 = vld [vmem:[%s0 + $0x14] sm:$0xf]
  %v40 = vld [vmem:[%s0 + $0x18] sm:$0xf]
  %v41 = vld [vmem:[%s0 + $0x1c] sm:$0xf]
  %v42 = vld [vmem:[%s0 + $0x20] sm:$0xf]
  %v43 = vld [vmem:[%s0 + $0x24] sm:$0xf]
  %v44 = vld [vmem:[%s0 + $0x28] sm:$0xf]
  %v45 = vld [vmem:[%s0 + $0x2c] sm:$0xf]
  %v46 = vld [vmem:[%s0 + $0x30] sm:$0xf]
  %v47 = vld [vmem:[%s0 + $0x34] sm:$0xf]
  %v48 = vld [vmem:[%s0 + $0x38] sm:$0xf]
  %v49 = vld [vmem:[%s0 + $0x3c] sm:$0xf]
  %v50 = vld [vmem:[%s0 + $0x40] sm:$0xf]
  %v51 = vld [vmem:[%s0 + $0x44] sm:$0xf]
  %v52 = vld [vmem:[%s0 + $0x48] sm:$0xf]
  %v53 = vld [vmem:[%s0 + $0x4c] sm:$0xf]
  %v54 = vld [vmem:[%s0 + $0x50] sm:$0xf]
  %v55 = vld [vmem:[%s0 + $0x54] sm:$0xf]
  %v56 = vld [vmem:[%s0 + $0x58] sm:$0xf]
  %v57 = vld [vmem:[%s0 + $0x5c] sm:$0xf]
  %v58 = vld [vmem:[%s0 + $0x60] sm:$0xf]
  %v59 = vld [vmem:[%s0 + $0x64] sm:$0xf]
  %v60 = vld [vmem:[%s0 + $0x68] sm:$0xf]
  %v61 = vld [vmem:[%s0 + $0x6c] sm:$0xf]
  %v62 = vld [vmem:[%s0 + $0x70] sm:$0xf]
  %v63 = vld [vmem:[%s0 + $0x74] sm:$0xf]
  %v64 = vld [vmem:[%s0 + $0x78] sm:$0xf]
  %v65 = vld [vmem:[%s0 + $0x7c] sm:$0xf]
  %v66 = vld [vmem:[%s0 + $0x80] sm:$0xf]
  %v67 = vld [vmem:[%s0 + $0x84] sm:$0xf]
  %v68 = vld [vmem:[%s0 + $0x88] sm:$0xf]
  %v69 = vld [vmem:[%s0 + $0x8c] sm:$0xf]
  %v86 = vunpack.c.l.b16 %v18
  %v87 = vunpack.c.h.b16 %v18
  %v88 = vunpack.c.l.b16 %v19
  %v89 = vunpack.c.l.b16 %v20
  %v90 = vunpack.c.h.b16 %v20
  %v91 = vunpack.c.l.b16 %v21
  %v92 = vunpack.c.l.b16 %v22
  %v93 = vunpack.c.h.b16 %v22
  %v94 = vunpack.c.l.b16 %v23
  %v95 = vunpack.c.l.b16 %v24
  %v96 = vunpack.c.h.b16 %v24
  %v97 = vunpack.c.l.b16 %v25
  %v98 = vunpack.c.l.b16 %v26
  %v99 = vunpack.c.h.b16 %v26
  %v100 = vunpack.c.l.b16 %v27
  %v101 = vunpack.c.l.b16 %v28
  %v102 = vunpack.c.h.b16 %v28
  %v103 = vunpack.c.l.b16 %v29
  %v104 = vunpack.c.l.b16 %v30
  %v105 = vunpack.c.h.b16 %v30
  %v106 = vunpack.c.l.b16 %v31
  %v107 = vunpack.c.l.b16 %v32
  %v108 = vunpack.c.h.b16 %v32
  %v109 = vunpack.c.l.b16 %v33
  %v110 = vpack.c.b16 %v89, %v86
  %v111 = vpack.c.b16 %v90, %v87
  %v112 = vpack.c.b16 %v91, %v88
  %v113 = vpack.c.b16 %v95, %v92
  %v114 = vpack.c.b16 %v96, %v93
  %v115 = vpack.c.b16 %v97, %v94
  %v116 = vpack.c.b16 %v101, %v98
  %v117 = vpack.c.b16 %v102, %v99
  %v118 = vpack.c.b16 %v103, %v100
  %v119 = vpack.c.b16 %v107, %v104
  %v120 = vpack.c.b16 %v108, %v105
  %v121 = vpack.c.b16 %v109, %v106
  %v166 = vunpack.c.l.b16 %v34
  %v167 = vunpack.c.l.b16 %v35
  %v168 = vunpack.c.l.b16 %v36
  %v169 = vunpack.c.l.b16 %v37
  %v170 = vunpack.c.l.b16 %v38
  %v171 = vunpack.c.l.b16 %v39
  %v172 = vunpack.c.l.b16 %v40
  %v173 = vunpack.c.l.b16 %v41
  %v174 = vunpack.c.l.b16 %v42
  %v175 = vunpack.c.l.b16 %v43
  %v176 = vunpack.c.l.b16 %v44
  %v177 = vunpack.c.l.b16 %v45
  %v178 = vunpack.c.l.b16 %v46
  %v179 = vunpack.c.l.b16 %v47
  %v180 = vunpack.c.l.b16 %v48
  %v181 = vunpack.c.l.b16 %v49
  %v182 = vunpack.c.l.b16 %v50
  %v183 = vunpack.c.l.b16 %v51
  %v184 = vunpack.c.l.b16 %v52
  %v185 = vunpack.c.l.b16 %v53
  %v186 = vunpack.c.l.b16 %v54
  %v187 = vunpack.c.l.b16 %v55
  %v188 = vunpack.c.l.b16 %v56
  %v189 = vunpack.c.l.b16 %v57
  %v190 = vunpack.c.l.b16 %v58
  %v191 = vunpack.c.l.b16 %v59
  %v192 = vunpack.c.l.b16 %v60
  %v193 = vunpack.c.l.b16 %v61
  %v194 = vunpack.c.l.b16 %v62
  %v195 = vunpack.c.l.b16 %v63
  %v196 = vunpack.c.l.b16 %v64
  %v197 = vunpack.c.l.b16 %v65
  %v198 = vunpack.c.l.b16 %v66
  %v199 = vunpack.c.l.b16 %v67
  %v200 = vunpack.c.l.b16 %v68
  %v201 = vunpack.c.l.b16 %v69
  %v202 = vpack.c.b16 %v167, %v166
  %v203 = vpack.c.b16 %v169, %v168
  %v204 = vpack.c.b16 %v171, %v170
  %v205 = vpack.c.b16 %v173, %v172
  %v206 = vpack.c.b16 %v175, %v174
  %v207 = vpack.c.b16 %v177, %v176
  %v208 = vpack.c.b16 %v179, %v178
  %v209 = vpack.c.b16 %v181, %v180
  %v210 = vpack.c.b16 %v183, %v182
  %v211 = vpack.c.b16 %v185, %v184
  %v212 = vpack.c.b16 %v187, %v186
  %v213 = vpack.c.b16 %v189, %v188
  %v214 = vpack.c.b16 %v191, %v190
  %v215 = vpack.c.b16 %v193, %v192
  %v216 = vpack.c.b16 %v195, %v194
  %v217 = vpack.c.b16 %v197, %v196
  %v218 = vpack.c.b16 %v199, %v198
  %v219 = vpack.c.b16 %v201, %v200
  %vm238 = vcmask 261120
  %v240 = vsel %vm238, %v112, 0
  %v243 = vsel %vm238, %v115, 0
  %v246 = vsel %vm238, %v118, 0
  %v249 = vsel %vm238, %v121, 0
  %251 = vmatprep.subr.bf16.mxu0 0
  %252 = vmatpush1.bf16.msra.mxu0 %v202
  %253 = vmatprep.subr.bf16.mxu0 0
  %254 = vmatpush1.bf16.msra.mxu0 %v203
  %255 = vmatprep.subr.bf16.mxu0 0
  %256 = vmatpush1.bf16.msra.mxu0 %v204
  %257 = vmatprep.subr.bf16.mxu0 0
  %258 = vmatpush1.bf16.msra.mxu0 %v205
  %259 = vmatprep.subr.bf16.mxu0 0
  %260 = vmatpush1.bf16.msra.mxu0 %v206
  %261 = vmatprep.subr.bf16.mxu0 0
  %262 = vmatpush1.bf16.msra.mxu0 %v207
  %263 = vmatprep.subr.bf16.mxu0 0
  %264 = vmatpush1.bf16.msra.mxu0 %v208
  %265 = vmatprep.subr.bf16.mxu0 0
  %266 = vmatpush1.bf16.msra.mxu0 %v209
  %267 = vmatprep.subr.bf16.mxu0 0
  %268 = vmatpush1.bf16.msra.mxu0 %v210
  %269 = vmatprep.subr.bf16.mxu0 0
  %270 = vmatpush1.bf16.msra.mxu0 %v211
  %271 = vmatprep.subr.bf16.mxu0 0
  %272 = vmatpush1.bf16.msra.mxu0 %v212
  %273 = vmatprep.subr.bf16.mxu0 0
  %274 = vmatpush1.bf16.msra.mxu0 %v213
  %275 = vmatprep.subr.bf16.mxu0 0
  %276 = vmatpush1.bf16.msra.mxu0 %v214
  %277 = vmatprep.subr.bf16.mxu0 0
  %278 = vmatpush1.bf16.msra.mxu0 %v215
  %279 = vmatprep.subr.bf16.mxu0 0
  %280 = vmatpush1.bf16.msra.mxu0 %v216
  %281 = vmatprep.subr.bf16.mxu0 0
  %282 = vmatpush1.bf16.msra.mxu0 %v217
  %283 = vmatprep.mubr.bf16.mxu0 %v111
  %284 = vmatmul.mubr.bf16.gmra.mrb[0].mxu0 %v110
  %v285 = vpop.f32.mrb[0].mxu0
  %v286 = vadd.f32 0.0, %v285
  %v287 = vpop.f32.mrb[0].mxu0
  %v288 = vpop.f32.mrb[0].mxu0
  %v289 = vadd.f32 0.0, %v288
  %v290 = vpop.f32.mrb[0].mxu0
  %291 = vmatprep.mubr.bf16.mxu0 %v114
  %292 = vmatmul.mubr.bf16.gmra.mrb[0].mxu0 %v113
  %v293 = vpop.f32.mrb[0].mxu0
  %v294 = vadd.f32 0.0, %v293
  %v295 = vpop.f32.mrb[0].mxu0
  %v296 = vpop.f32.mrb[0].mxu0
  %v297 = vadd.f32 0.0, %v296
  %v298 = vpop.f32.mrb[0].mxu0
  %299 = vmatprep.mubr.bf16.mxu0 %v117
  %300 = vmatmul.mubr.bf16.gmra.mrb[0].mxu0 %v116
  %v301 = vpop.f32.mrb[0].mxu0
  %v302 = vadd.f32 0.0, %v301
  %v303 = vpop.f32.mrb[0].mxu0
  %v304 = vpop.f32.mrb[0].mxu0
  %v305 = vadd.f32 0.0, %v304
  %v306 = vpop.f32.mrb[0].mxu0
  %307 = vmatprep.mubr.bf16.mxu0 %v120
  %308 = vmatmul.mubr.bf16.gmra.mrb[0].mxu0 %v119
  %v309 = vpop.f32.mrb[0].mxu0
  %v310 = vadd.f32 0.0, %v309
  %v311 = vpop.f32.mrb[0].mxu0
  %v312 = vpop.f32.mrb[0].mxu0
  %v313 = vadd.f32 0.0, %v312
  %v314 = vpop.f32.mrb[0].mxu0
  %315 = vdwg.mxu0
  %316 = vmatprep.subr.bf16.mxu0 0
  %317 = vmatpush1.bf16.msra.mxu0 %v218
  %318 = vmatprep.subr.bf16.mxu0 0
  %319 = vmatpush1.bf16.msra.mxu0 %v219
  %320 = vmatprep.subr.bf16.mxu0 0
  %321 = vmatpush1.bf16.msra.mxu0 0
  %322 = vmatprep.subr.bf16.mxu0 0
  %323 = vmatpush1.bf16.msra.mxu0 0
  %324 = vmatprep.subr.bf16.mxu0 0
  %325 = vmatpush1.bf16.msra.mxu0 0
  %326 = vmatprep.subr.bf16.mxu0 0
  %327 = vmatpush1.bf16.msra.mxu0 0
  %328 = vmatprep.subr.bf16.mxu0 0
  %329 = vmatpush1.bf16.msra.mxu0 0
  %330 = vmatprep.subr.bf16.mxu0 0
  %331 = vmatpush1.bf16.msra.mxu0 0
  %332 = vmatprep.subr.bf16.mxu0 0
  %333 = vmatpush1.bf16.msra.mxu0 0
  %334 = vmatprep.subr.bf16.mxu0 0
  %335 = vmatpush1.bf16.msra.mxu0 0
  %336 = vmatprep.subr.bf16.mxu0 0
  %337 = vmatpush1.bf16.msra.mxu0 0
  %338 = vmatprep.subr.bf16.mxu0 0
  %339 = vmatpush1.bf16.msra.mxu0 0
  %340 = vmatprep.subr.bf16.mxu0 0
  %341 = vmatpush1.bf16.msra.mxu0 0
  %342 = vmatprep.subr.bf16.mxu0 0
  %343 = vmatpush1.bf16.msra.mxu0 0
  %344 = vmatprep.subr.bf16.mxu0 0
  %345 = vmatpush1.bf16.msra.mxu0 0
  %346 = vmatprep.subr.bf16.mxu0 0
  %347 = vmatpush1.bf16.msra.mxu0 0
  %348 = vmatprep.mubr.bf16.mxu0 0
  %349 = vmatmul.mubr.bf16.gmra.mrb[0].mxu0 %v240
  %v350 = vpop.f32.mrb[0].mxu0
  %v351 = vadd.f32 %v286, %v350
  %v352 = vpop.f32.mrb[0].mxu0
  %v353 = vpop.f32.mrb[0].mxu0
  %v354 = vadd.f32 %v289, %v353
  %v355 = vpop.f32.mrb[0].mxu0
  %356 = vmatprep.mubr.bf16.mxu0 0
  %357 = vmatmul.mubr.bf16.gmra.mrb[0].mxu0 %v243
  %v358 = vpop.f32.mrb[0].mxu0
  %v359 = vadd.f32 %v294, %v358
  %v360 = vpop.f32.mrb[0].mxu0
  %v361 = vpop.f32.mrb[0].mxu0
  %v362 = vadd.f32 %v297, %v361
  %v363 = vpop.f32.mrb[0].mxu0
  %364 = vmatprep.mubr.bf16.mxu0 0
  %365 = vmatmul.mubr.bf16.gmra.mrb[0].mxu0 %v246
  %v366 = vpop.f32.mrb[0].mxu0
  %v367 = vadd.f32 %v302, %v366
  %v368 = vpop.f32.mrb[0].mxu0
  %v369 = vpop.f32.mrb[0].mxu0
  %v370 = vadd.f32 %v305, %v369
  %v371 = vpop.f32.mrb[0].mxu0
  %372 = vmatprep.mubr.bf16.mxu0 0
  %373 = vmatmul.mubr.bf16.gmra.mrb[0].mxu0 %v249
  %v374 = vpop.f32.mrb[0].mxu0
  %v375 = vadd.f32 %v310, %v374
  %v376 = vpop.f32.mrb[0].mxu0
  %v377 = vpop.f32.mrb[0].mxu0
  %v378 = vadd.f32 %v313, %v377
  %v379 = vpop.f32.mrb[0].mxu0
  %380 = vdwg.mxu0
  %v381 = vsel %vm238, %v351, 0.0
  %382 = vadd.xlane.f32.xlu0 %v381
  %v383 = vpop.xlane.xlu0 %382
  %v384 = vsel %vm238, %v354, 0.0
  %385 = vadd.xlane.f32.xlu0 %v384
  %v386 = vpop.xlane.xlu0 %385
  %v387 = vsel %vm238, %v359, 0.0
  %388 = vadd.xlane.f32.xlu0 %v387
  %v389 = vpop.xlane.xlu0 %388
  %v390 = vsel %vm238, %v362, 0.0
  %391 = vadd.xlane.f32.xlu0 %v390
  %v392 = vpop.xlane.xlu0 %391
  %v393 = vsel %vm238, %v367, 0.0
  %394 = vadd.xlane.f32.xlu0 %v393
  %v395 = vpop.xlane.xlu0 %394
  %v396 = vsel %vm238, %v370, 0.0
  %397 = vadd.xlane.f32.xlu0 %v396
  %v398 = vpop.xlane.xlu0 %397
  %v399 = vsel %vm238, %v375, 0.0
  %400 = vadd.xlane.f32.xlu0 %v399
  %v401 = vpop.xlane.xlu0 %400
  %v402 = vsel %vm238, %v378, 0.0
  %403 = vadd.xlane.f32.xlu0 %v402
  %v404 = vpop.xlane.xlu0 %403
  %v405 = vrcp.pop 32.0
  %v406 = vmul.f32 %v383, %v405
  %v407 = vmul.f32 %v386, %v405
  %v408 = vmul.f32 %v389, %v405
  %v409 = vmul.f32 %v392, %v405
  %v410 = vmul.f32 %v395, %v405
  %v411 = vmul.f32 %v398, %v405
  %v412 = vmul.f32 %v401, %v405
  %v413 = vmul.f32 %v404, %v405
  %v414 = vsub.f32 %v351, %v406
  %v415 = vsub.f32 %v354, %v407
  %v416 = vsub.f32 %v359, %v408
  %v417 = vsub.f32 %v362, %v409
  %v418 = vsub.f32 %v367, %v410
  %v419 = vsub.f32 %v370, %v411
  %v420 = vsub.f32 %v375, %v412
  %v421 = vsub.f32 %v378, %v413
  %v422 = vmul.f32 %v414, %v414
  %v423 = vmul.f32 %v415, %v415
  %v424 = vmul.f32 %v416, %v416
  %v425 = vmul.f32 %v417, %v417
  %v426 = vmul.f32 %v418, %v418
  %v427 = vmul.f32 %v419, %v419
  %v428 = vmul.f32 %v420, %v420
  %v429 = vmul.f32 %v421, %v421
  %v430 = vsel %vm238, %v422, 0.0
  %431 = vadd.xlane.f32.xlu0 %v430
  %v432 = vpop.xlane.xlu0 %431
  %v433 = vsel %vm238, %v423, 0.0
  %434 = vadd.xlane.f32.xlu0 %v433
  %v435 = vpop.xlane.xlu0 %434
  %v436 = vsel %vm238, %v424, 0.0
  %437 = vadd.xlane.f32.xlu0 %v436
  %v438 = vpop.xlane.xlu0 %437
  %v439 = vsel %vm238, %v425, 0.0
  %440 = vadd.xlane.f32.xlu0 %v439
  %v441 = vpop.xlane.xlu0 %440
  %v442 = vsel %vm238, %v426, 0.0
  %443 = vadd.xlane.f32.xlu0 %v442
  %v444 = vpop.xlane.xlu0 %443
  %v445 = vsel %vm238, %v427, 0.0
  %446 = vadd.xlane.f32.xlu0 %v445
  %v447 = vpop.xlane.xlu0 %446
  %v448 = vsel %vm238, %v428, 0.0
  %449 = vadd.xlane.f32.xlu0 %v448
  %v450 = vpop.xlane.xlu0 %449
  %v451 = vsel %vm238, %v429, 0.0
  %452 = vadd.xlane.f32.xlu0 %v451
  %v453 = vpop.xlane.xlu0 %452
  %v454 = vmul.f32 %v432, %v405
  %v455 = vmul.f32 %v435, %v405
  %v456 = vmul.f32 %v438, %v405
  %v457 = vmul.f32 %v441, %v405
  %v458 = vmul.f32 %v444, %v405
  %v459 = vmul.f32 %v447, %v405
  %v460 = vmul.f32 %v450, %v405
  %v461 = vmul.f32 %v453, %v405
  %v462 = vld [vmem:[%s2] sm:$0xff]
  %v463 = vld [vmem:[%s2 + $0x8] sm:$0xff]
  %v464 = vld [vmem:[%s2 + $0x10] sm:$0xff]
  %v465 = vld [vmem:[%s2 + $0x18] sm:$0xff]
  %v466 = vld [vmem:[%s2 + $0x20] sm:$0xff]
  %v467 = vld [vmem:[%s2 + $0x28] sm:$0xff]
  %v468 = vld [vmem:[%s2 + $0x30] sm:$0xff]
  %v469 = vld [vmem:[%s2 + $0x38] sm:$0xff]
  %471 = vset.pattern.permute.xlu0 0
  %472 = vperm.xlu0 %471, %v462
  %v473 = vpop.permute.xlu0 %472
  %476 = vset.pattern.permute.xlu0 0
  %477 = vperm.xlu0 %476, %v463
  %v478 = vpop.permute.xlu0 %477
  %481 = vset.pattern.permute.xlu0 0
  %482 = vperm.xlu0 %481, %v464
  %v483 = vpop.permute.xlu0 %482
  %486 = vset.pattern.permute.xlu0 0
  %487 = vperm.xlu0 %486, %v465
  %v488 = vpop.permute.xlu0 %487
  %491 = vset.pattern.permute.xlu0 0
  %492 = vperm.xlu0 %491, %v466
  %v493 = vpop.permute.xlu0 %492
  %496 = vset.pattern.permute.xlu0 0
  %497 = vperm.xlu0 %496, %v467
  %v498 = vpop.permute.xlu0 %497
  %501 = vset.pattern.permute.xlu0 0
  %502 = vperm.xlu0 %501, %v468
  %v503 = vpop.permute.xlu0 %502
  %506 = vset.pattern.permute.xlu0 0
  %507 = vperm.xlu0 %506, %v469
  %v508 = vpop.permute.xlu0 %507
  %v510 = vmul.f32 %v473, %v414
  %v511 = vmul.f32 %v478, %v415
  %v512 = vmul.f32 %v483, %v416
  %v513 = vmul.f32 %v488, %v417
  %v514 = vmul.f32 %v493, %v418
  %v515 = vmul.f32 %v498, %v419
  %v516 = vmul.f32 %v503, %v420
  %v517 = vmul.f32 %v508, %v421
  %v518 = vadd.f32 %v454, 1e-05
  %v519 = vadd.f32 %v455, 1e-05
  %v520 = vadd.f32 %v456, 1e-05
  %v521 = vadd.f32 %v457, 1e-05
  %v522 = vadd.f32 %v458, 1e-05
  %v523 = vadd.f32 %v459, 1e-05
  %v524 = vadd.f32 %v460, 1e-05
  %v525 = vadd.f32 %v461, 1e-05
  %v526 = vrsqrt.pop %v518
  %v527 = vrsqrt.pop %v519
  %v528 = vrsqrt.pop %v520
  %v529 = vrsqrt.pop %v521
  %v530 = vrsqrt.pop %v522
  %v531 = vrsqrt.pop %v523
  %v532 = vrsqrt.pop %v524
  %v533 = vrsqrt.pop %v525
  %v534 = vmul.f32 %v510, %v526
  %v535 = vmul.f32 %v511, %v527
  %v536 = vmul.f32 %v512, %v528
  %v537 = vmul.f32 %v513, %v529
  %v538 = vmul.f32 %v514, %v530
  %v539 = vmul.f32 %v515, %v531
  %v540 = vmul.f32 %v516, %v532
  %v541 = vmul.f32 %v517, %v533
  %v542 = vld [vmem:[%s3] sm:$0xff]
  %v543 = vld [vmem:[%s3 + $0x8] sm:$0xff]
  %v544 = vld [vmem:[%s3 + $0x10] sm:$0xff]
  %v545 = vld [vmem:[%s3 + $0x18] sm:$0xff]
  %v546 = vld [vmem:[%s3 + $0x20] sm:$0xff]
  %v547 = vld [vmem:[%s3 + $0x28] sm:$0xff]
  %v548 = vld [vmem:[%s3 + $0x30] sm:$0xff]
  %v549 = vld [vmem:[%s3 + $0x38] sm:$0xff]
  %551 = vset.pattern.permute.xlu0 0
  %552 = vperm.xlu0 %551, %v542
  %v553 = vpop.permute.xlu0 %552
  %556 = vset.pattern.permute.xlu0 0
  %557 = vperm.xlu0 %556, %v543
  %v558 = vpop.permute.xlu0 %557
  %561 = vset.pattern.permute.xlu0 0
  %562 = vperm.xlu0 %561, %v544
  %v563 = vpop.permute.xlu0 %562
  %566 = vset.pattern.permute.xlu0 0
  %567 = vperm.xlu0 %566, %v545
  %v568 = vpop.permute.xlu0 %567
  %571 = vset.pattern.permute.xlu0 0
  %572 = vperm.xlu0 %571, %v546
  %v573 = vpop.permute.xlu0 %572
  %576 = vset.pattern.permute.xlu0 0
  %577 = vperm.xlu0 %576, %v547
  %v578 = vpop.permute.xlu0 %577
  %581 = vset.pattern.permute.xlu0 0
  %582 = vperm.xlu0 %581, %v548
  %v583 = vpop.permute.xlu0 %582
  %586 = vset.pattern.permute.xlu0 0
  %587 = vperm.xlu0 %586, %v549
  %v588 = vpop.permute.xlu0 %587
  %v590 = vadd.f32 %v534, %v553
  %v591 = vadd.f32 %v535, %v558
  %v592 = vadd.f32 %v536, %v563
  %v593 = vadd.f32 %v537, %v568
  %v594 = vadd.f32 %v538, %v573
  %v595 = vadd.f32 %v539, %v578
  %v596 = vadd.f32 %v540, %v583
  %v597 = vadd.f32 %v541, %v588
  %vm598 = vcmp.ge.f32.partialorder %v590, 0.0
  %vm599 = vcmp.ge.f32.partialorder %v591, 0.0
  %vm600 = vcmp.ge.f32.partialorder %v592, 0.0
  %vm601 = vcmp.ge.f32.partialorder %v593, 0.0
  %vm602 = vcmp.ge.f32.partialorder %v594, 0.0
  %vm603 = vcmp.ge.f32.partialorder %v595, 0.0
  %vm604 = vcmp.ge.f32.partialorder %v596, 0.0
  %vm605 = vcmp.ge.f32.partialorder %v597, 0.0
  %v606 = vmul.f32 %v590, 0.2
  %v607 = vmul.f32 %v591, 0.2
  %v608 = vmul.f32 %v592, 0.2
  %v609 = vmul.f32 %v593, 0.2
  %v610 = vmul.f32 %v594, 0.2
  %v611 = vmul.f32 %v595, 0.2
  %v612 = vmul.f32 %v596, 0.2
  %v613 = vmul.f32 %v597, 0.2
  %v614 = vsel %vm598, %v590, %v606
  %v615 = vsel %vm599, %v591, %v607
  %v616 = vsel %vm600, %v592, %v608
  %v617 = vsel %vm601, %v593, %v609
  %v618 = vsel %vm602, %v594, %v610
  %v619 = vsel %vm603, %v595, %v611
  %v620 = vsel %vm604, %v596, %v612
  %v621 = vsel %vm605, %v597, %v613
  %v622 = vpack.c.bf16 %v615, %v614
  %v623 = vpack.c.bf16 %v617, %v616
  %v624 = vpack.c.bf16 %v619, %v618
  %v625 = vpack.c.bf16 %v621, %v620
  %v630 = vunpack.c.l.b16 %v622
  %v631 = vunpack.c.h.b16 %v622
  %v632 = vunpack.c.l.b16 %v623
  %v633 = vunpack.c.h.b16 %v623
  %v634 = vunpack.c.l.b16 %v624
  %v635 = vunpack.c.h.b16 %v624
  %v636 = vunpack.c.l.b16 %v625
  %v637 = vunpack.c.h.b16 %v625
  %v638 = vpack.c.b16 %v630, %v630
  %v639 = vpack.c.b16 %v631, %v631
  %v640 = vpack.c.b16 %v632, %v632
  %v641 = vpack.c.b16 %v633, %v633
  %v642 = vpack.c.b16 %v634, %v634
  %v643 = vpack.c.b16 %v635, %v635
  %v644 = vpack.c.b16 %v636, %v636
  %v645 = vpack.c.b16 %v637, %v637
  %vm654 = vcmask 257024
  %655 = vst.msk [vmem:[%s4] sm:$0xf] %vm654, %v638
  %656 = vst.msk [vmem:[%s4 + $0x4] sm:$0xf] %vm654, %v639
  %657 = vst.msk [vmem:[%s4 + $0x8] sm:$0xf] %vm654, %v640
  %658 = vst.msk [vmem:[%s4 + $0xc] sm:$0xf] %vm654, %v641
  %659 = vst.msk [vmem:[%s4 + $0x10] sm:$0xf] %vm654, %v642
  %660 = vst.msk [vmem:[%s4 + $0x14] sm:$0xf] %vm654, %v643
  %661 = vst.msk [vmem:[%s4 + $0x18] sm:$0xf] %vm654, %v644
  %662 = vst.msk [vmem:[%s4 + $0x1c] sm:$0xf] %vm654, %v645
  // Predicated region
  $region18: #{generator_forward.5} parent=0 // pred_check
    _
  $region19: #{generator_forward.5} parent=0 // pred_check_branch
    %664 = sbr.rel (0) target = $region21
  $region20: #{generator_forward.5} parent=0 // pred_region
    _
  $region21: #{generator_forward.5} parent=0 // pred_fallthru
    _
  // Predicated region
  $region22: #{generator_forward.5} parent=0 // pred_check
    _
  $region23: #{generator_forward.5} parent=0 // pred_check_branch
    %666 = sbr.rel (0) target = $region25
  $region24: #{generator_forward.5} parent=0 // pred_region
    _
  $region25: #{generator_forward.5} parent=0 // pred_fallthru
    _

// kernel: generator_forward.6
$region0: #{generator_forward.6}
  #allocation0 [shape = 'u32[]', space=smem, size = 0x4, offset = 0x4, fixed_abs, tag = 'smem constant byte address 0x4 - core index']
  #allocation1 [shape = 'u32[144,128]{1,0:T(1,128)}', space=vmem, size = 0x12000, scoped, tag = 'internal scratch']
  %s0 = inlined_call_operand.vmem [shape: bf16[4,256,32], index: 0, kind: input, shape index: {}]
  %s1 = inlined_call_operand.vmem [shape: bf16[4,32,256], index: 1, kind: input, shape index: {}]
  %s2 = inlined_call_operand.vmem [shape: f32[32,1], index: 2, kind: input, shape index: {}]
  %s3 = inlined_call_operand.vmem [shape: f32[32,1], index: 3, kind: input, shape index: {}]
  %s4 = inlined_call_operand.vmem [shape: bf16[4,32,32], index: 4, kind: output, shape index: {}]
  %s5 = sld [smem:[#allocation0]]
  $region26: #{generator_forward.6} parent=0
    _
  %s7 = ssub.s32 1, %s5
  %s8 = scalar_select 0, %s7, %s5
  // Predicated region
  $region2: #{generator_forward.6} parent=0 // pred_check
    _
  $region3: #{generator_forward.6} parent=0 // pred_check_branch
    %10 = sbr.rel (0) target = $region5
  $region4: #{generator_forward.6} parent=0 // pred_region
    _
  $region5: #{generator_forward.6} parent=0 // pred_fallthru
    _
  // Predicated region
  $region6: #{generator_forward.6} parent=0 // pred_check
    _
  $region7: #{generator_forward.6} parent=0 // pred_check_branch
    %12 = sbr.rel (0) target = $region9
  $region8: #{generator_forward.6} parent=0 // pred_region
    _
  $region9: #{generator_forward.6} parent=0 // pred_fallthru
    _
  // Predicated region
  $region10: #{generator_forward.6} parent=0 // pred_check
    _
  $region11: #{generator_forward.6} parent=0 // pred_check_branch
    %14 = sbr.rel (0) target = $region13
  $region12: #{generator_forward.6} parent=0 // pred_region
    _
  $region13: #{generator_forward.6} parent=0 // pred_fallthru
    _
  // Predicated region
  $region14: #{generator_forward.6} parent=0 // pred_check
    _
  $region15: #{generator_forward.6} parent=0 // pred_check_branch
    %16 = sbr.rel (0) target = $region17
  $region16: #{generator_forward.6} parent=0 // pred_region
    _
  $region17: #{generator_forward.6} parent=0 // pred_fallthru
    _
  %v18 = vld [vmem:[%s1] sm:$0xff]
  %v19 = vld [vmem:[%s1 + $0x8] sm:$0xff]
  %v20 = vld [vmem:[%s1 + $0x10] sm:$0xff]
  %v21 = vld [vmem:[%s1 + $0x18] sm:$0xff]
  %v22 = vld [vmem:[%s0] sm:$0xf]
  %v23 = vld [vmem:[%s0 + $0x4] sm:$0xf]
  %v24 = vld [vmem:[%s0 + $0x8] sm:$0xf]
  %v25 = vld [vmem:[%s0 + $0xc] sm:$0xf]
  %v26 = vld [vmem:[%s0 + $0x10] sm:$0xf]
  %v27 = vld [vmem:[%s0 + $0x14] sm:$0xf]
  %v28 = vld [vmem:[%s0 + $0x18] sm:$0xf]
  %v29 = vld [vmem:[%s0 + $0x1c] sm:$0xf]
  %v30 = vld [vmem:[%s0 + $0x20] sm:$0xf]
  %v31 = vld [vmem:[%s0 + $0x24] sm:$0xf]
  %v32 = vld [vmem:[%s0 + $0x28] sm:$0xf]
  %v33 = vld [vmem:[%s0 + $0x2c] sm:$0xf]
  %v34 = vld [vmem:[%s0 + $0x30] sm:$0xf]
  %v35 = vld [vmem:[%s0 + $0x34] sm:$0xf]
  %v36 = vld [vmem:[%s0 + $0x38] sm:$0xf]
  %v37 = vld [vmem:[%s0 + $0x3c] sm:$0xf]
  %v38 = vld [vmem:[%s0 + $0x40] sm:$0xf]
  %v39 = vld [vmem:[%s0 + $0x44] sm:$0xf]
  %v40 = vld [vmem:[%s0 + $0x48] sm:$0xf]
  %v41 = vld [vmem:[%s0 + $0x4c] sm:$0xf]
  %v42 = vld [vmem:[%s0 + $0x50] sm:$0xf]
  %v43 = vld [vmem:[%s0 + $0x54] sm:$0xf]
  %v44 = vld [vmem:[%s0 + $0x58] sm:$0xf]
  %v45 = vld [vmem:[%s0 + $0x5c] sm:$0xf]
  %v46 = vld [vmem:[%s0 + $0x60] sm:$0xf]
  %v47 = vld [vmem:[%s0 + $0x64] sm:$0xf]
  %v48 = vld [vmem:[%s0 + $0x68] sm:$0xf]
  %v49 = vld [vmem:[%s0 + $0x6c] sm:$0xf]
  %v50 = vld [vmem:[%s0 + $0x70] sm:$0xf]
  %v51 = vld [vmem:[%s0 + $0x74] sm:$0xf]
  %v52 = vld [vmem:[%s0 + $0x78] sm:$0xf]
  %v53 = vld [vmem:[%s0 + $0x7c] sm:$0xf]
  %v58 = vunpack.c.l.b16 %v18
  %v59 = vunpack.c.h.b16 %v18
  %v60 = vunpack.c.l.b16 %v19
  %v61 = vunpack.c.h.b16 %v19
  %v62 = vunpack.c.l.b16 %v20
  %v63 = vunpack.c.h.b16 %v20
  %v64 = vunpack.c.l.b16 %v21
  %v65 = vunpack.c.h.b16 %v21
  %v66 = vpack.c.b16 %v60, %v58
  %v67 = vpack.c.b16 %v61, %v59
  %v68 = vpack.c.b16 %v64, %v62
  %v69 = vpack.c.b16 %v65, %v63
  %v106 = vunpack.c.l.b16 %v22
  %v107 = vunpack.c.l.b16 %v23
  %v108 = vunpack.c.l.b16 %v24
  %v109 = vunpack.c.l.b16 %v25
  %v110 = vunpack.c.l.b16 %v26
  %v111 = vunpack.c.l.b16 %v27
  %v112 = vunpack.c.l.b16 %v28
  %v113 = vunpack.c.l.b16 %v29
  %v114 = vunpack.c.l.b16 %v30
  %v115 = vunpack.c.l.b16 %v31
  %v116 = vunpack.c.l.b16 %v32
  %v117 = vunpack.c.l.b16 %v33
  %v118 = vunpack.c.l.b16 %v34
  %v119 = vunpack.c.l.b16 %v35
  %v120 = vunpack.c.l.b16 %v36
  %v121 = vunpack.c.l.b16 %v37
  %v122 = vunpack.c.l.b16 %v38
  %v123 = vunpack.c.l.b16 %v39
  %v124 = vunpack.c.l.b16 %v40
  %v125 = vunpack.c.l.b16 %v41
  %v126 = vunpack.c.l.b16 %v42
  %v127 = vunpack.c.l.b16 %v43
  %v128 = vunpack.c.l.b16 %v44
  %v129 = vunpack.c.l.b16 %v45
  %v130 = vunpack.c.l.b16 %v46
  %v131 = vunpack.c.l.b16 %v47
  %v132 = vunpack.c.l.b16 %v48
  %v133 = vunpack.c.l.b16 %v49
  %v134 = vunpack.c.l.b16 %v50
  %v135 = vunpack.c.l.b16 %v51
  %v136 = vunpack.c.l.b16 %v52
  %v137 = vunpack.c.l.b16 %v53
  %v138 = vpack.c.b16 %v107, %v106
  %v139 = vpack.c.b16 %v109, %v108
  %v140 = vpack.c.b16 %v111, %v110
  %v141 = vpack.c.b16 %v113, %v112
  %v142 = vpack.c.b16 %v115, %v114
  %v143 = vpack.c.b16 %v117, %v116
  %v144 = vpack.c.b16 %v119, %v118
  %v145 = vpack.c.b16 %v121, %v120
  %v146 = vpack.c.b16 %v123, %v122
  %v147 = vpack.c.b16 %v125, %v124
  %v148 = vpack.c.b16 %v127, %v126
  %v149 = vpack.c.b16 %v129, %v128
  %v150 = vpack.c.b16 %v131, %v130
  %v151 = vpack.c.b16 %v133, %v132
  %v152 = vpack.c.b16 %v135, %v134
  %v153 = vpack.c.b16 %v137, %v136
  %170 = vmatprep.subr.bf16.mxu0 0
  %171 = vmatpush1.bf16.msra.mxu0 %v138
  %172 = vmatprep.subr.bf16.mxu0 0
  %173 = vmatpush1.bf16.msra.mxu0 %v139
  %174 = vmatprep.subr.bf16.mxu0 0
  %175 = vmatpush1.bf16.msra.mxu0 %v140
  %176 = vmatprep.subr.bf16.mxu0 0
  %177 = vmatpush1.bf16.msra.mxu0 %v141
  %178 = vmatprep.subr.bf16.mxu0 0
  %179 = vmatpush1.bf16.msra.mxu0 %v142
  %180 = vmatprep.subr.bf16.mxu0 0
  %181 = vmatpush1.bf16.msra.mxu0 %v143
  %182 = vmatprep.subr.bf16.mxu0 0
  %183 = vmatpush1.bf16.msra.mxu0 %v144
  %184 = vmatprep.subr.bf16.mxu0 0
  %185 = vmatpush1.bf16.msra.mxu0 %v145
  %186 = vmatprep.subr.bf16.mxu0 0
  %187 = vmatpush1.bf16.msra.mxu0 %v146
  %188 = vmatprep.subr.bf16.mxu0 0
  %189 = vmatpush1.bf16.msra.mxu0 %v147
  %190 = vmatprep.subr.bf16.mxu0 0
  %191 = vmatpush1.bf16.msra.mxu0 %v148
  %192 = vmatprep.subr.bf16.mxu0 0
  %193 = vmatpush1.bf16.msra.mxu0 %v149
  %194 = vmatprep.subr.bf16.mxu0 0
  %195 = vmatpush1.bf16.msra.mxu0 %v150
  %196 = vmatprep.subr.bf16.mxu0 0
  %197 = vmatpush1.bf16.msra.mxu0 %v151
  %198 = vmatprep.subr.bf16.mxu0 0
  %199 = vmatpush1.bf16.msra.mxu0 %v152
  %200 = vmatprep.subr.bf16.mxu0 0
  %201 = vmatpush1.bf16.msra.mxu0 %v153
  %202 = vmatprep.mubr.bf16.mxu0 %v67
  %203 = vmatmul.mubr.bf16.gmra.mrb[0].mxu0 %v66
  %v204 = vpop.f32.mrb[0].mxu0
  %v205 = vadd.f32 0.0, %v204
  %v206 = vpop.f32.mrb[0].mxu0
  %v207 = vpop.f32.mrb[0].mxu0
  %v208 = vadd.f32 0.0, %v207
  %v209 = vpop.f32.mrb[0].mxu0
  %210 = vmatprep.mubr.bf16.mxu0 %v69
  %211 = vmatmul.mubr.bf16.gmra.mrb[0].mxu0 %v68
  %v212 = vpop.f32.mrb[0].mxu0
  %v213 = vadd.f32 0.0, %v212
  %v214 = vpop.f32.mrb[0].mxu0
  %v215 = vpop.f32.mrb[0].mxu0
  %v216 = vadd.f32 0.0, %v215
  %v217 = vpop.f32.mrb[0].mxu0
  %218 = vdwg.mxu0
  %s219 = scalar_lea.vmem %s1, 32
  %v220 = vld [vmem:[%s219] sm:$0xff]
  %v221 = vld [vmem:[%s219 + $0x8] sm:$0xff]
  %v222 = vld [vmem:[%s219 + $0x10] sm:$0xff]
  %v223 = vld [vmem:[%s219 + $0x18] sm:$0xff]
  %s224 = scalar_lea.vmem %s0, 128
  %v225 = vld [vmem:[%s224] sm:$0xf]
  %v226 = vld [vmem:[%s224 + $0x4] sm:$0xf]
  %v227 = vld [vmem:[%s224 + $0x8] sm:$0xf]
  %v228 = vld [vmem:[%s224 + $0xc] sm:$0xf]
  %v229 = vld [vmem:[%s224 + $0x10] sm:$0xf]
  %v230 = vld [vmem:[%s224 + $0x14] sm:$0xf]
  %v231 = vld [vmem:[%s224 + $0x18] sm:$0xf]
  %v232 = vld [vmem:[%s224 + $0x1c] sm:$0xf]
  %v233 = vld [vmem:[%s224 + $0x20] sm:$0xf]
  %v234 = vld [vmem:[%s224 + $0x24] sm:$0xf]
  %v235 = vld [vmem:[%s224 + $0x28] sm:$0xf]
  %v236 = vld [vmem:[%s224 + $0x2c] sm:$0xf]
  %v237 = vld [vmem:[%s224 + $0x30] sm:$0xf]
  %v238 = vld [vmem:[%s224 + $0x34] sm:$0xf]
  %v239 = vld [vmem:[%s224 + $0x38] sm:$0xf]
  %v240 = vld [vmem:[%s224 + $0x3c] sm:$0xf]
  %v241 = vld [vmem:[%s224 + $0x40] sm:$0xf]
  %v242 = vld [vmem:[%s224 + $0x44] sm:$0xf]
  %v243 = vld [vmem:[%s224 + $0x48] sm:$0xf]
  %v244 = vld [vmem:[%s224 + $0x4c] sm:$0xf]
  %v245 = vld [vmem:[%s224 + $0x50] sm:$0xf]
  %v246 = vld [vmem:[%s224 + $0x54] sm:$0xf]
  %v247 = vld [vmem:[%s224 + $0x58] sm:$0xf]
  %v248 = vld [vmem:[%s224 + $0x5c] sm:$0xf]
  %v249 = vld [vmem:[%s224 + $0x60] sm:$0xf]
  %v250 = vld [vmem:[%s224 + $0x64] sm:$0xf]
  %v251 = vld [vmem:[%s224 + $0x68] sm:$0xf]
  %v252 = vld [vmem:[%s224 + $0x6c] sm:$0xf]
  %v253 = vld [vmem:[%s224 + $0x70] sm:$0xf]
  %v254 = vld [vmem:[%s224 + $0x74] sm:$0xf]
  %v255 = vld [vmem:[%s224 + $0x78] sm:$0xf]
  %v256 = vld [vmem:[%s224 + $0x7c] sm:$0xf]
  %v261 = vunpack.c.l.b16 %v220
  %v262 = vunpack.c.h.b16 %v220
  %v263 = vunpack.c.l.b16 %v221
  %v264 = vunpack.c.h.b16 %v221
  %v265 = vunpack.c.l.b16 %v222
  %v266 = vunpack.c.h.b16 %v222
  %v267 = vunpack.c.l.b16 %v223
  %v268 = vunpack.c.h.b16 %v223
  %v269 = vpack.c.b16 %v263, %v261
  %v270 = vpack.c.b16 %v264, %v262
  %v271 = vpack.c.b16 %v267, %v265
  %v272 = vpack.c.b16 %v268, %v266
  %v309 = vunpack.c.l.b16 %v225
  %v310 = vunpack.c.l.b16 %v226
  %v311 = vunpack.c.l.b16 %v227
  %v312 = vunpack.c.l.b16 %v228
  %v313 = vunpack.c.l.b16 %v229
  %v314 = vunpack.c.l.b16 %v230
  %v315 = vunpack.c.l.b16 %v231
  %v316 = vunpack.c.l.b16 %v232
  %v317 = vunpack.c.l.b16 %v233
  %v318 = vunpack.c.l.b16 %v234
  %v319 = vunpack.c.l.b16 %v235
  %v320 = vunpack.c.l.b16 %v236
  %v321 = vunpack.c.l.b16 %v237
  %v322 = vunpack.c.l.b16 %v238
  %v323 = vunpack.c.l.b16 %v239
  %v324 = vunpack.c.l.b16 %v240
  %v325 = vunpack.c.l.b16 %v241
  %v326 = vunpack.c.l.b16 %v242
  %v327 = vunpack.c.l.b16 %v243
  %v328 = vunpack.c.l.b16 %v244
  %v329 = vunpack.c.l.b16 %v245
  %v330 = vunpack.c.l.b16 %v246
  %v331 = vunpack.c.l.b16 %v247
  %v332 = vunpack.c.l.b16 %v248
  %v333 = vunpack.c.l.b16 %v249
  %v334 = vunpack.c.l.b16 %v250
  %v335 = vunpack.c.l.b16 %v251
  %v336 = vunpack.c.l.b16 %v252
  %v337 = vunpack.c.l.b16 %v253
  %v338 = vunpack.c.l.b16 %v254
  %v339 = vunpack.c.l.b16 %v255
  %v340 = vunpack.c.l.b16 %v256
  %v341 = vpack.c.b16 %v310, %v309
  %v342 = vpack.c.b16 %v312, %v311
  %v343 = vpack.c.b16 %v314, %v313
  %v344 = vpack.c.b16 %v316, %v315
  %v345 = vpack.c.b16 %v318, %v317
  %v346 = vpack.c.b16 %v320, %v319
  %v347 = vpack.c.b16 %v322, %v321
  %v348 = vpack.c.b16 %v324, %v323
  %v349 = vpack.c.b16 %v326, %v325
  %v350 = vpack.c.b16 %v328, %v327
  %v351 = vpack.c.b16 %v330, %v329
  %v352 = vpack.c.b16 %v332, %v331
  %v353 = vpack.c.b16 %v334, %v333
  %v354 = vpack.c.b16 %v336, %v335
  %v355 = vpack.c.b16 %v338, %v337
  %v356 = vpack.c.b16 %v340, %v339
  %373 = vmatprep.subr.bf16.mxu0 0
  %374 = vmatpush1.bf16.msra.mxu0 %v341
  %375 = vmatprep.subr.bf16.mxu0 0
  %376 = vmatpush1.bf16.msra.mxu0 %v342
  %377 = vmatprep.subr.bf16.mxu0 0
  %378 = vmatpush1.bf16.msra.mxu0 %v343
  %379 = vmatprep.subr.bf16.mxu0 0
  %380 = vmatpush1.bf16.msra.mxu0 %v344
  %381 = vmatprep.subr.bf16.mxu0 0
  %382 = vmatpush1.bf16.msra.mxu0 %v345
  %383 = vmatprep.subr.bf16.mxu0 0
  %384 = vmatpush1.bf16.msra.mxu0 %v346
  %385 = vmatprep.subr.bf16.mxu0 0
  %386 = vmatpush1.bf16.msra.mxu0 %v347
  %387 = vmatprep.subr.bf16.mxu0 0
  %388 = vmatpush1.bf16.msra.mxu0 %v348
  %389 = vmatprep.subr.bf16.mxu0 0
  %390 = vmatpush1.bf16.msra.mxu0 %v349
  %391 = vmatprep.subr.bf16.mxu0 0
  %392 = vmatpush1.bf16.msra.mxu0 %v350
  %393 = vmatprep.subr.bf16.mxu0 0
  %394 = vmatpush1.bf16.msra.mxu0 %v351
  %395 = vmatprep.subr.bf16.mxu0 0
  %396 = vmatpush1.bf16.msra.mxu0 %v352
  %397 = vmatprep.subr.bf16.mxu0 0
  %398 = vmatpush1.bf16.msra.mxu0 %v353
  %399 = vmatprep.subr.bf16.mxu0 0
  %400 = vmatpush1.bf16.msra.mxu0 %v354
  %401 = vmatprep.subr.bf16.mxu0 0
  %402 = vmatpush1.bf16.msra.mxu0 %v355
  %403 = vmatprep.subr.bf16.mxu0 0
  %404 = vmatpush1.bf16.msra.mxu0 %v356
  %405 = vmatprep.mubr.bf16.mxu0 %v270
  %406 = vmatmul.mubr.bf16.gmra.mrb[0].mxu0 %v269
  %v407 = vpop.f32.mrb[0].mxu0
  %v408 = vadd.f32 0.0, %v407
  %v409 = vpop.f32.mrb[0].mxu0
  %v410 = vpop.f32.mrb[0].mxu0
  %v411 = vadd.f32 0.0, %v410
  %v412 = vpop.f32.mrb[0].mxu0
  %413 = vmatprep.mubr.bf16.mxu0 %v272
  %414 = vmatmul.mubr.bf16.gmra.mrb[0].mxu0 %v271
  %v415 = vpop.f32.mrb[0].mxu0
  %v416 = vadd.f32 0.0, %v415
  %v417 = vpop.f32.mrb[0].mxu0
  %v418 = vpop.f32.mrb[0].mxu0
  %v419 = vadd.f32 0.0, %v418
  %v420 = vpop.f32.mrb[0].mxu0
  %421 = vdwg.mxu0
  %s422 = scalar_lea.vmem %s1, 64
  %v423 = vld [vmem:[%s422] sm:$0xff]
  %v424 = vld [vmem:[%s422 + $0x8] sm:$0xff]
  %v425 = vld [vmem:[%s422 + $0x10] sm:$0xff]
  %v426 = vld [vmem:[%s422 + $0x18] sm:$0xff]
  %s427 = scalar_lea.vmem %s0, 256
  %v428 = vld [vmem:[%s427] sm:$0xf]
  %v429 = vld [vmem:[%s427 + $0x4] sm:$0xf]
  %v430 = vld [vmem:[%s427 + $0x8] sm:$0xf]
  %v431 = vld [vmem:[%s427 + $0xc] sm:$0xf]
  %v432 = vld [vmem:[%s427 + $0x10] sm:$0xf]
  %v433 = vld [vmem:[%s427 + $0x14] sm:$0xf]
  %v434 = vld [vmem:[%s427 + $0x18] sm:$0xf]
  %v435 = vld [vmem:[%s427 + $0x1c] sm:$0xf]
  %v436 = vld [vmem:[%s427 + $0x20] sm:$0xf]
  %v437 = vld [vmem:[%s427 + $0x24] sm:$0xf]
  %v438 = vld [vmem:[%s427 + $0x28] sm:$0xf]
  %v439 = vld [vmem:[%s427 + $0x2c] sm:$0xf]
  %v440 = vld [vmem:[%s427 + $0x30] sm:$0xf]
  %v441 = vld [vmem:[%s427 + $0x34] sm:$0xf]
  %v442 = vld [vmem:[%s427 + $0x38] sm:$0xf]
  %v443 = vld [vmem:[%s427 + $0x3c] sm:$0xf]
  %v444 = vld [vmem:[%s427 + $0x40] sm:$0xf]
  %v445 = vld [vmem:[%s427 + $0x44] sm:$0xf]
  %v446 = vld [vmem:[%s427 + $0x48] sm:$0xf]
  %v447 = vld [vmem:[%s427 + $0x4c] sm:$0xf]
  %v448 = vld [vmem:[%s427 + $0x50] sm:$0xf]
  %v449 = vld [vmem:[%s427 + $0x54] sm:$0xf]
  %v450 = vld [vmem:[%s427 + $0x58] sm:$0xf]
  %v451 = vld [vmem:[%s427 + $0x5c] sm:$0xf]
  %v452 = vld [vmem:[%s427 + $0x60] sm:$0xf]
  %v453 = vld [vmem:[%s427 + $0x64] sm:$0xf]
  %v454 = vld [vmem:[%s427 + $0x68] sm:$0xf]
  %v455 = vld [vmem:[%s427 + $0x6c] sm:$0xf]
  %v456 = vld [vmem:[%s427 + $0x70] sm:$0xf]
  %v457 = vld [vmem:[%s427 + $0x74] sm:$0xf]
  %v458 = vld [vmem:[%s427 + $0x78] sm:$0xf]
  %v459 = vld [vmem:[%s427 + $0x7c] sm:$0xf]
  %v464 = vunpack.c.l.b16 %v423
  %v465 = vunpack.c.h.b16 %v423
  %v466 = vunpack.c.l.b16 %v424
  %v467 = vunpack.c.h.b16 %v424
  %v468 = vunpack.c.l.b16 %v425
  %v469 = vunpack.c.h.b16 %v425
  %v470 = vunpack.c.l.b16 %v426
  %v471 = vunpack.c.h.b16 %v426
  %v472 = vpack.c.b16 %v466, %v464
  %v473 = vpack.c.b16 %v467, %v465
  %v474 = vpack.c.b16 %v470, %v468
  %v475 = vpack.c.b16 %v471, %v469
  %v512 = vunpack.c.l.b16 %v428
  %v513 = vunpack.c.l.b16 %v429
  %v514 = vunpack.c.l.b16 %v430
  %v515 = vunpack.c.l.b16 %v431
  %v516 = vunpack.c.l.b16 %v432
  %v517 = vunpack.c.l.b16 %v433
  %v518 = vunpack.c.l.b16 %v434
  %v519 = vunpack.c.l.b16 %v435
  %v520 = vunpack.c.l.b16 %v436
  %v521 = vunpack.c.l.b16 %v437
  %v522 = vunpack.c.l.b16 %v438
  %v523 = vunpack.c.l.b16 %v439
  %v524 = vunpack.c.l.b16 %v440
  %v525 = vunpack.c.l.b16 %v441
  %v526 = vunpack.c.l.b16 %v442
  %v527 = vunpack.c.l.b16 %v443
  %v528 = vunpack.c.l.b16 %v444
  %v529 = vunpack.c.l.b16 %v445
  %v530 = vunpack.c.l.b16 %v446
  %v531 = vunpack.c.l.b16 %v447
  %v532 = vunpack.c.l.b16 %v448
  %v533 = vunpack.c.l.b16 %v449
  %v534 = vunpack.c.l.b16 %v450
  %v535 = vunpack.c.l.b16 %v451
  %v536 = vunpack.c.l.b16 %v452
  %v537 = vunpack.c.l.b16 %v453
  %v538 = vunpack.c.l.b16 %v454
  %v539 = vunpack.c.l.b16 %v455
  %v540 = vunpack.c.l.b16 %v456
  %v541 = vunpack.c.l.b16 %v457
  %v542 = vunpack.c.l.b16 %v458
  %v543 = vunpack.c.l.b16 %v459
  %v544 = vpack.c.b16 %v513, %v512
  %v545 = vpack.c.b16 %v515, %v514
  %v546 = vpack.c.b16 %v517, %v516
  %v547 = vpack.c.b16 %v519, %v518
  %v548 = vpack.c.b16 %v521, %v520
  %v549 = vpack.c.b16 %v523, %v522
  %v550 = vpack.c.b16 %v525, %v524
  %v551 = vpack.c.b16 %v527, %v526
  %v552 = vpack.c.b16 %v529, %v528
  %v553 = vpack.c.b16 %v531, %v530
  %v554 = vpack.c.b16 %v533, %v532
  %v555 = vpack.c.b16 %v535, %v534
  %v556 = vpack.c.b16 %v537, %v536
  %v557 = vpack.c.b16 %v539, %v538
  %v558 = vpack.c.b16 %v541, %v540
  %v559 = vpack.c.b16 %v543, %v542
  %576 = vmatprep.subr.bf16.mxu0 0
  %577 = vmatpush1.bf16.msra.mxu0 %v544
  %578 = vmatprep.subr.bf16.mxu0 0
  %579 = vmatpush1.bf16.msra.mxu0 %v545
  %580 = vmatprep.subr.bf16.mxu0 0
  %581 = vmatpush1.bf16.msra.mxu0 %v546
  %582 = vmatprep.subr.bf16.mxu0 0
  %583 = vmatpush1.bf16.msra.mxu0 %v547
  %584 = vmatprep.subr.bf16.mxu0 0
  %585 = vmatpush1.bf16.msra.mxu0 %v548
  %586 = vmatprep.subr.bf16.mxu0 0
  %587 = vmatpush1.bf16.msra.mxu0 %v549
  %588 = vmatprep.subr.bf16.mxu0 0
  %589 = vmatpush1.bf16.msra.mxu0 %v550
  %590 = vmatprep.subr.bf16.mxu0 0
  %591 = vmatpush1.bf16.msra.mxu0 %v551
  %592 = vmatprep.subr.bf16.mxu0 0
  %593 = vmatpush1.bf16.msra.mxu0 %v552
  %594 = vmatprep.subr.bf16.mxu0 0
  %595 = vmatpush1.bf16.msra.mxu0 %v553
  %596 = vmatprep.subr.bf16.mxu0 0
  %597 = vmatpush1.bf16.msra.mxu0 %v554
  %598 = vmatprep.subr.bf16.mxu0 0
  %599 = vmatpush1.bf16.msra.mxu0 %v555
  %600 = vmatprep.subr.bf16.mxu0 0
  %601 = vmatpush1.bf16.msra.mxu0 %v556
  %602 = vmatprep.subr.bf16.mxu0 0
  %603 = vmatpush1.bf16.msra.mxu0 %v557
  %604 = vmatprep.subr.bf16.mxu0 0
  %605 = vmatpush1.bf16.msra.mxu0 %v558
  %606 = vmatprep.subr.bf16.mxu0 0
  %607 = vmatpush1.bf16.msra.mxu0 %v559
  %608 = vmatprep.mubr.bf16.mxu0 %v473
  %609 = vmatmul.mubr.bf16.gmra.mrb[0].mxu0 %v472
  %v610 = vpop.f32.mrb[0].mxu0
  %v611 = vadd.f32 0.0, %v610
  %v612 = vpop.f32.mrb[0].mxu0
  %v613 = vpop.f32.mrb[0].mxu0
  %v614 = vadd.f32 0.0, %v613
  %v615 = vpop.f32.mrb[0].mxu0
  %616 = vmatprep.mubr.bf16.mxu0 %v475
  %617 = vmatmul.mubr.bf16.gmra.mrb[0].mxu0 %v474
  %v618 = vpop.f32.mrb[0].mxu0
  %v619 = vadd.f32 0.0, %v618
  %v620 = vpop.f32.mrb[0].mxu0
  %v621 = vpop.f32.mrb[0].mxu0
  %v622 = vadd.f32 0.0, %v621
  %v623 = vpop.f32.mrb[0].mxu0
  %624 = vdwg.mxu0
  %s625 = scalar_lea.vmem %s1, 96
  %v626 = vld [vmem:[%s625] sm:$0xff]
  %v627 = vld [vmem:[%s625 + $0x8] sm:$0xff]
  %v628 = vld [vmem:[%s625 + $0x10] sm:$0xff]
  %v629 = vld [vmem:[%s625 + $0x18] sm:$0xff]
  %s630 = scalar_lea.vmem %s0, 384
  %v631 = vld [vmem:[%s630] sm:$0xf]
  %v632 = vld [vmem:[%s630 + $0x4] sm:$0xf]
  %v633 = vld [vmem:[%s630 + $0x8] sm:$0xf]
  %v634 = vld [vmem:[%s630 + $0xc] sm:$0xf]
  %v635 = vld [vmem:[%s630 + $0x10] sm:$0xf]
  %v636 = vld [vmem:[%s630 + $0x14] sm:$0xf]
  %v637 = vld [vmem:[%s630 + $0x18] sm:$0xf]
  %v638 = vld [vmem:[%s630 + $0x1c] sm:$0xf]
  %v639 = vld [vmem:[%s630 + $0x20] sm:$0xf]
  %v640 = vld [vmem:[%s630 + $0x24] sm:$0xf]
  %v641 = vld [vmem:[%s630 + $0x28] sm:$0xf]
  %v642 = vld [vmem:[%s630 + $0x2c] sm:$0xf]
  %v643 = vld [vmem:[%s630 + $0x30] sm:$0xf]
  %v644 = vld [vmem:[%s630 + $0x34] sm:$0xf]
  %v645 = vld [vmem:[%s630 + $0x38] sm:$0xf]
  %v646 = vld [vmem:[%s630 + $0x3c] sm:$0xf]
  %v647 = vld [vmem:[%s630 + $0x40] sm:$0xf]
  %v648 = vld [vmem:[%s630 + $0x44] sm:$0xf]
  %v649 = vld [vmem:[%s630 + $0x48] sm:$0xf]
  %v650 = vld [vmem:[%s630 + $0x4c] sm:$0xf]
  %v651 = vld [vmem:[%s630 + $0x50] sm:$0xf]
  %v652 = vld [vmem:[%s630 + $0x54] sm:$0xf]
  %v653 = vld [vmem:[%s630 + $0x58] sm:$0xf]
  %v654 = vld [vmem:[%s630 + $0x5c] sm:$0xf]
  %v655 = vld [vmem:[%s630 + $0x60] sm:$0xf]
  %v656 = vld [vmem:[%s630 + $0x64] sm:$0xf]
  %v657 = vld [vmem:[%s630 + $0x68] sm:$0xf]
  %v658 = vld [vmem:[%s630 + $0x6c] sm:$0xf]
  %v659 = vld [vmem:[%s630 + $0x70] sm:$0xf]
  %v660 = vld [vmem:[%s630 + $0x74] sm:$0xf]
  %v661 = vld [vmem:[%s630 + $0x78] sm:$0xf]
  %v662 = vld [vmem:[%s630 + $0x7c] sm:$0xf]
  %v667 = vunpack.c.l.b16 %v626
  %v668 = vunpack.c.h.b16 %v626
  %v669 = vunpack.c.l.b16 %v627
  %v670 = vunpack.c.h.b16 %v627
  %v671 = vunpack.c.l.b16 %v628
  %v672 = vunpack.c.h.b16 %v628
  %v673 = vunpack.c.l.b16 %v629
  %v674 = vunpack.c.h.b16 %v629
  %v675 = vpack.c.b16 %v669, %v667
  %v676 = vpack.c.b16 %v670, %v668
  %v677 = vpack.c.b16 %v673, %v671
  %v678 = vpack.c.b16 %v674, %v672
  %v715 = vunpack.c.l.b16 %v631
  %v716 = vunpack.c.l.b16 %v632
  %v717 = vunpack.c.l.b16 %v633
  %v718 = vunpack.c.l.b16 %v634
  %v719 = vunpack.c.l.b16 %v635
  %v720 = vunpack.c.l.b16 %v636
  %v721 = vunpack.c.l.b16 %v637
  %v722 = vunpack.c.l.b16 %v638
  %v723 = vunpack.c.l.b16 %v639
  %v724 = vunpack.c.l.b16 %v640
  %v725 = vunpack.c.l.b16 %v641
  %v726 = vunpack.c.l.b16 %v642
  %v727 = vunpack.c.l.b16 %v643
  %v728 = vunpack.c.l.b16 %v644
  %v729 = vunpack.c.l.b16 %v645
  %v730 = vunpack.c.l.b16 %v646
  %v731 = vunpack.c.l.b16 %v647
  %v732 = vunpack.c.l.b16 %v648
  %v733 = vunpack.c.l.b16 %v649
  %v734 = vunpack.c.l.b16 %v650
  %v735 = vunpack.c.l.b16 %v651
  %v736 = vunpack.c.l.b16 %v652
  %v737 = vunpack.c.l.b16 %v653
  %v738 = vunpack.c.l.b16 %v654
  %v739 = vunpack.c.l.b16 %v655
  %v740 = vunpack.c.l.b16 %v656
  %v741 = vunpack.c.l.b16 %v657
  %v742 = vunpack.c.l.b16 %v658
  %v743 = vunpack.c.l.b16 %v659
  %v744 = vunpack.c.l.b16 %v660
  %v745 = vunpack.c.l.b16 %v661
  %v746 = vunpack.c.l.b16 %v662
  %v747 = vpack.c.b16 %v716, %v715
  %v748 = vpack.c.b16 %v718, %v717
  %v749 = vpack.c.b16 %v720, %v719
  %v750 = vpack.c.b16 %v722, %v721
  %v751 = vpack.c.b16 %v724, %v723
  %v752 = vpack.c.b16 %v726, %v725
  %v753 = vpack.c.b16 %v728, %v727
  %v754 = vpack.c.b16 %v730, %v729
  %v755 = vpack.c.b16 %v732, %v731
  %v756 = vpack.c.b16 %v734, %v733
  %v757 = vpack.c.b16 %v736, %v735
  %v758 = vpack.c.b16 %v738, %v737
  %v759 = vpack.c.b16 %v740, %v739
  %v760 = vpack.c.b16 %v742, %v741
  %v761 = vpack.c.b16 %v744, %v743
  %v762 = vpack.c.b16 %v746, %v745
  %779 = vmatprep.subr.bf16.mxu0 0
  %780 = vmatpush1.bf16.msra.mxu0 %v747
  %781 = vmatprep.subr.bf16.mxu0 0
  %782 = vmatpush1.bf16.msra.mxu0 %v748
  %783 = vmatprep.subr.bf16.mxu0 0
  %784 = vmatpush1.bf16.msra.mxu0 %v749
  %785 = vmatprep.subr.bf16.mxu0 0
  %786 = vmatpush1.bf16.msra.mxu0 %v750
  %787 = vmatprep.subr.bf16.mxu0 0
  %788 = vmatpush1.bf16.msra.mxu0 %v751
  %789 = vmatprep.subr.bf16.mxu0 0
  %790 = vmatpush1.bf16.msra.mxu0 %v752
  %791 = vmatprep.subr.bf16.mxu0 0
  %792 = vmatpush1.bf16.msra.mxu0 %v753
  %793 = vmatprep.subr.bf16.mxu0 0
  %794 = vmatpush1.bf16.msra.mxu0 %v754
  %795 = vmatprep.subr.bf16.mxu0 0
  %796 = vmatpush1.bf16.msra.mxu0 %v755
  %797 = vmatprep.subr.bf16.mxu0 0
  %798 = vmatpush1.bf16.msra.mxu0 %v756
  %799 = vmatprep.subr.bf16.mxu0 0
  %800 = vmatpush1.bf16.msra.mxu0 %v757
  %801 = vmatprep.subr.bf16.mxu0 0
  %802 = vmatpush1.bf16.msra.mxu0 %v758
  %803 = vmatprep.subr.bf16.mxu0 0
  %804 = vmatpush1.bf16.msra.mxu0 %v759
  %805 = vmatprep.subr.bf16.mxu0 0
  %806 = vmatpush1.bf16.msra.mxu0 %v760
  %807 = vmatprep.subr.bf16.mxu0 0
  %808 = vmatpush1.bf16.msra.mxu0 %v761
  %809 = vmatprep.subr.bf16.mxu0 0
  %810 = vmatpush1.bf16.msra.mxu0 %v762
  %811 = vmatprep.mubr.bf16.mxu0 %v676
  %812 = vmatmul.mubr.bf16.gmra.mrb[0].mxu0 %v675
  %v813 = vpop.f32.mrb[0].mxu0
  %v814 = vadd.f32 0.0, %v813
  %v815 = vpop.f32.mrb[0].mxu0
  %v816 = vpop.f32.mrb[0].mxu0
  %v817 = vadd.f32 0.0, %v816
  %v818 = vpop.f32.mrb[0].mxu0
  %819 = vmatprep.mubr.bf16.mxu0 %v678
  %820 = vmatmul.mubr.bf16.gmra.mrb[0].mxu0 %v677
  %v821 = vpop.f32.mrb[0].mxu0
  %v822 = vadd.f32 0.0, %v821
  %v823 = vpop.f32.mrb[0].mxu0
  %v824 = vpop.f32.mrb[0].mxu0
  %v825 = vadd.f32 0.0, %v824
  %v826 = vpop.f32.mrb[0].mxu0
  %827 = vdwg.mxu0
  %vm828 = vcmask 261120
  %v829 = vsel %vm828, %v205, 0.0
  %830 = vadd.xlane.f32.xlu0 %v829
  %v831 = vpop.xlane.xlu0 %830
  %v832 = vsel %vm828, %v208, 0.0
  %833 = vadd.xlane.f32.xlu0 %v832
  %v834 = vpop.xlane.xlu0 %833
  %v835 = vsel %vm828, %v213, 0.0
  %836 = vadd.xlane.f32.xlu0 %v835
  %v837 = vpop.xlane.xlu0 %836
  %v838 = vsel %vm828, %v216, 0.0
  %839 = vadd.xlane.f32.xlu0 %v838
  %v840 = vpop.xlane.xlu0 %839
  %v841 = vadd.f32 %v831, 0.0
  %v842 = vadd.f32 %v834, 0.0
  %v843 = vadd.f32 %v837, 0.0
  %v844 = vadd.f32 %v840, 0.0
  %v845 = vsel %vm828, %v408, 0.0
  %846 = vadd.xlane.f32.xlu0 %v845
  %v847 = vpop.xlane.xlu0 %846
  %v848 = vsel %vm828, %v411, 0.0
  %849 = vadd.xlane.f32.xlu0 %v848
  %v850 = vpop.xlane.xlu0 %849
  %v851 = vsel %vm828, %v416, 0.0
  %852 = vadd.xlane.f32.xlu0 %v851
  %v853 = vpop.xlane.xlu0 %852
  %v854 = vsel %vm828, %v419, 0.0
  %855 = vadd.xlane.f32.xlu0 %v854
  %v856 = vpop.xlane.xlu0 %855
  %v857 = vadd.f32 %v841, %v847
  %v858 = vadd.f32 %v842, %v850
  %v859 = vadd.f32 %v843, %v853
  %v860 = vadd.f32 %v844, %v856
  %v861 = vsel %vm828, %v611, 0.0
  %862 = vadd.xlane.f32.xlu0 %v861
  %v863 = vpop.xlane.xlu0 %862
  %v864 = vsel %vm828, %v614, 0.0
  %865 = vadd.xlane.f32.xlu0 %v864
  %v866 = vpop.xlane.xlu0 %865
  %v867 = vsel %vm828, %v619, 0.0
  %868 = vadd.xlane.f32.xlu0 %v867
  %v869 = vpop.xlane.xlu0 %868
  %v870 = vsel %vm828, %v622, 0.0
  %871 = vadd.xlane.f32.xlu0 %v870
  %v872 = vpop.xlane.xlu0 %871
  %v873 = vadd.f32 %v857, %v863
  %v874 = vadd.f32 %v858, %v866
  %v875 = vadd.f32 %v859, %v869
  %v876 = vadd.f32 %v860, %v872
  %v877 = vsel %vm828, %v814, 0.0
  %878 = vadd.xlane.f32.xlu0 %v877
  %v879 = vpop.xlane.xlu0 %878
  %v880 = vsel %vm828, %v817, 0.0
  %881 = vadd.xlane.f32.xlu0 %v880
  %v882 = vpop.xlane.xlu0 %881
  %v883 = vsel %vm828, %v822, 0.0
  %884 = vadd.xlane.f32.xlu0 %v883
  %v885 = vpop.xlane.xlu0 %884
  %v886 = vsel %vm828, %v825, 0.0
  %887 = vadd.xlane.f32.xlu0 %v886
  %v888 = vpop.xlane.xlu0 %887
  %v889 = vadd.f32 %v873, %v879
  %v890 = vadd.f32 %v874, %v882
  %v891 = vadd.f32 %v875, %v885
  %v892 = vadd.f32 %v876, %v888
  %v893 = vrcp.pop 128.0
  %v894 = vmul.f32 %v889, %v893
  %v895 = vmul.f32 %v890, %v893
  %v896 = vmul.f32 %v891, %v893
  %v897 = vmul.f32 %v892, %v893
  %v898 = vsub.f32 %v205, %v894
  %v899 = vsub.f32 %v208, %v895
  %v900 = vsub.f32 %v213, %v896
  %v901 = vsub.f32 %v216, %v897
  %v902 = vmul.f32 %v898, %v898
  %v903 = vmul.f32 %v899, %v899
  %v904 = vmul.f32 %v900, %v900
  %v905 = vmul.f32 %v901, %v901
  %v906 = vsel %vm828, %v902, 0.0
  %907 = vadd.xlane.f32.xlu0 %v906
  %v908 = vpop.xlane.xlu0 %907
  %v909 = vsel %vm828, %v903, 0.0
  %910 = vadd.xlane.f32.xlu0 %v909
  %v911 = vpop.xlane.xlu0 %910
  %v912 = vsel %vm828, %v904, 0.0
  %913 = vadd.xlane.f32.xlu0 %v912
  %v914 = vpop.xlane.xlu0 %913
  %v915 = vsel %vm828, %v905, 0.0
  %916 = vadd.xlane.f32.xlu0 %v915
  %v917 = vpop.xlane.xlu0 %916
  %v918 = vadd.f32 %v908, 0.0
  %v919 = vadd.f32 %v911, 0.0
  %v920 = vadd.f32 %v914, 0.0
  %v921 = vadd.f32 %v917, 0.0
  %v922 = vsub.f32 %v408, %v894
  %v923 = vsub.f32 %v411, %v895
  %v924 = vsub.f32 %v416, %v896
  %v925 = vsub.f32 %v419, %v897
  %v926 = vmul.f32 %v922, %v922
  %v927 = vmul.f32 %v923, %v923
  %v928 = vmul.f32 %v924, %v924
  %v929 = vmul.f32 %v925, %v925
  %v930 = vsel %vm828, %v926, 0.0
  %931 = vadd.xlane.f32.xlu0 %v930
  %v932 = vpop.xlane.xlu0 %931
  %v933 = vsel %vm828, %v927, 0.0
  %934 = vadd.xlane.f32.xlu0 %v933
  %v935 = vpop.xlane.xlu0 %934
  %v936 = vsel %vm828, %v928, 0.0
  %937 = vadd.xlane.f32.xlu0 %v936
  %v938 = vpop.xlane.xlu0 %937
  %v939 = vsel %vm828, %v929, 0.0
  %940 = vadd.xlane.f32.xlu0 %v939
  %v941 = vpop.xlane.xlu0 %940
  %v942 = vadd.f32 %v918, %v932
  %v943 = vadd.f32 %v919, %v935
  %v944 = vadd.f32 %v920, %v938
  %v945 = vadd.f32 %v921, %v941
  %v946 = vsub.f32 %v611, %v894
  %v947 = vsub.f32 %v614, %v895
  %v948 = vsub.f32 %v619, %v896
  %v949 = vsub.f32 %v622, %v897
  %v950 = vmul.f32 %v946, %v946
  %v951 = vmul.f32 %v947, %v947
  %v952 = vmul.f32 %v948, %v948
  %v953 = vmul.f32 %v949, %v949
  %v954 = vsel %vm828, %v950, 0.0
  %955 = vadd.xlane.f32.xlu0 %v954
  %v956 = vpop.xlane.xlu0 %955
  %v957 = vsel %vm828, %v951, 0.0
  %958 = vadd.xlane.f32.xlu0 %v957
  %v959 = vpop.xlane.xlu0 %958
  %v960 = vsel %vm828, %v952, 0.0
  %961 = vadd.xlane.f32.xlu0 %v960
  %v962 = vpop.xlane.xlu0 %961
  %v963 = vsel %vm828, %v953, 0.0
  %964 = vadd.xlane.f32.xlu0 %v963
  %v965 = vpop.xlane.xlu0 %964
  %v966 = vadd.f32 %v942, %v956
  %v967 = vadd.f32 %v943, %v959
  %v968 = vadd.f32 %v944, %v962
  %v969 = vadd.f32 %v945, %v965
  %v970 = vsub.f32 %v814, %v894
  %v971 = vsub.f32 %v817, %v895
  %v972 = vsub.f32 %v822, %v896
  %v973 = vsub.f32 %v825, %v897
  %v974 = vmul.f32 %v970, %v970
  %v975 = vmul.f32 %v971, %v971
  %v976 = vmul.f32 %v972, %v972
  %v977 = vmul.f32 %v973, %v973
  %v978 = vsel %vm828, %v974, 0.0
  %979 = vadd.xlane.f32.xlu0 %v978
  %v980 = vpop.xlane.xlu0 %979
  %v981 = vsel %vm828, %v975, 0.0
  %982 = vadd.xlane.f32.xlu0 %v981
  %v983 = vpop.xlane.xlu0 %982
  %v984 = vsel %vm828, %v976, 0.0
  %985 = vadd.xlane.f32.xlu0 %v984
  %v986 = vpop.xlane.xlu0 %985
  %v987 = vsel %vm828, %v977, 0.0
  %988 = vadd.xlane.f32.xlu0 %v987
  %v989 = vpop.xlane.xlu0 %988
  %v990 = vadd.f32 %v966, %v980
  %v991 = vadd.f32 %v967, %v983
  %v992 = vadd.f32 %v968, %v986
  %v993 = vadd.f32 %v969, %v989
  %v994 = vmul.f32 %v990, %v893
  %v995 = vmul.f32 %v991, %v893
  %v996 = vmul.f32 %v992, %v893
  %v997 = vmul.f32 %v993, %v893
  %v998 = vld [vmem:[%s2] sm:$0xff]
  %v999 = vld [vmem:[%s2 + $0x8] sm:$0xff]
  %v1000 = vld [vmem:[%s2 + $0x10] sm:$0xff]
  %v1001 = vld [vmem:[%s2 + $0x18] sm:$0xff]
  %v1002 = vadd.f32 %v994, 1e-05
  %v1003 = vadd.f32 %v995, 1e-05
  %v1004 = vadd.f32 %v996, 1e-05
  %v1005 = vadd.f32 %v997, 1e-05
  %v1006 = vrsqrt.pop %v1002
  %v1007 = vrsqrt.pop %v1003
  %v1008 = vrsqrt.pop %v1004
  %v1009 = vrsqrt.pop %v1005
  %v1010 = vmul.f32 %v998, %v1006
  %v1011 = vmul.f32 %v999, %v1007
  %v1012 = vmul.f32 %v1000, %v1008
  %v1013 = vmul.f32 %v1001, %v1009
  %v1014 = vld [vmem:[%s3] sm:$0xff]
  %v1015 = vld [vmem:[%s3 + $0x8] sm:$0xff]
  %v1016 = vld [vmem:[%s3 + $0x10] sm:$0xff]
  %v1017 = vld [vmem:[%s3 + $0x18] sm:$0xff]
  %v1018 = vmul.f32 %v1010, %v894
  %v1019 = vmul.f32 %v1011, %v895
  %v1020 = vmul.f32 %v1012, %v896
  %v1021 = vmul.f32 %v1013, %v897
  %v1022 = vsub.f32 %v1014, %v1018
  %v1023 = vsub.f32 %v1015, %v1019
  %v1024 = vsub.f32 %v1016, %v1020
  %v1025 = vsub.f32 %v1017, %v1021
  %1027 = vset.pattern.permute.xlu0 0
  %1028 = vperm.xlu0 %1027, %v1010
  %v1029 = vpop.permute.xlu0 %1028
  %1032 = vset.pattern.permute.xlu0 0
  %1033 = vperm.xlu0 %1032, %v1011
  %v1034 = vpop.permute.xlu0 %1033
  %1037 = vset.pattern.permute.xlu0 0
  %1038 = vperm.xlu0 %1037, %v1012
  %v1039 = vpop.permute.xlu0 %1038
  %1042 = vset.pattern.permute.xlu0 0
  %1043 = vperm.xlu0 %1042, %v1013
  %v1044 = vpop.permute.xlu0 %1043
  %v1046 = vmul.f32 %v1029, %v205
  %v1047 = vmul.f32 %v1034, %v208
  %v1048 = vmul.f32 %v1039, %v213
  %v1049 = vmul.f32 %v1044, %v216
  %1051 = vset.pattern.permute.xlu0 0
  %1052 = vperm.xlu0 %1051, %v1022
  %v1053 = vpop.permute.xlu0 %1052
  %1056 = vset.pattern.permute.xlu0 0
  %1057 = vperm.xlu0 %1056, %v1023
  %v1058 = vpop.permute.xlu0 %1057
  %1061 = vset.pattern.permute.xlu0 0
  %1062 = vperm.xlu0 %1061, %v1024
  %v1063 = vpop.permute.xlu0 %1062
  %1066 = vset.pattern.permute.xlu0 0
  %1067 = vperm.xlu0 %1066, %v1025
  %v1068 = vpop.permute.xlu0 %1067
  %v1070 = vadd.f32 %v1046, %v1053
  %v1071 = vadd.f32 %v1047, %v1058
  %v1072 = vadd.f32 %v1048, %v1063
  %v1073 = vadd.f32 %v1049, %v1068
  %vm1074 = vcmp.ge.f32.partialorder %v1070, 0.0
  %vm1075 = vcmp.ge.f32.partialorder %v1071, 0.0
  %vm1076 = vcmp.ge.f32.partialorder %v1072, 0.0
  %vm1077 = vcmp.ge.f32.partialorder %v1073, 0.0
  %v1078 = vmul.f32 %v1070, 0.2
  %v1079 = vmul.f32 %v1071, 0.2
  %v1080 = vmul.f32 %v1072, 0.2
  %v1081 = vmul.f32 %v1073, 0.2
  %v1082 = vsel %vm1074, %v1070, %v1078
  %v1083 = vsel %vm1075, %v1071, %v1079
  %v1084 = vsel %vm1076, %v1072, %v1080
  %v1085 = vsel %vm1077, %v1073, %v1081
  %v1086 = vpack.c.bf16 %v1083, %v1082
  %v1087 = vpack.c.bf16 %v1085, %v1084
  %v1090 = vunpack.c.l.b16 %v1086
  %v1091 = vunpack.c.h.b16 %v1086
  %v1092 = vunpack.c.l.b16 %v1087
  %v1093 = vunpack.c.h.b16 %v1087
  %v1094 = vpack.c.b16 %v1090, %v1090
  %v1095 = vpack.c.b16 %v1091, %v1091
  %v1096 = vpack.c.b16 %v1092, %v1092
  %v1097 = vpack.c.b16 %v1093, %v1093
  %vm1102 = vcmask 257024
  %1103 = vst.msk [vmem:[%s4] sm:$0xf] %vm1102, %v1094
  %1104 = vst.msk [vmem:[%s4 + $0x4] sm:$0xf] %vm1102, %v1095
  %1105 = vst.msk [vmem:[%s4 + $0x8] sm:$0xf] %vm1102, %v1096
  %1106 = vst.msk [vmem:[%s4 + $0xc] sm:$0xf] %vm1102, %v1097
  %v1107 = vmul.f32 %v1029, %v408
  %v1108 = vmul.f32 %v1034, %v411
  %v1109 = vmul.f32 %v1039, %v416
  %v1110 = vmul.f32 %v1044, %v419
  %v1111 = vadd.f32 %v1107, %v1053
  %v1112 = vadd.f32 %v1108, %v1058
  %v1113 = vadd.f32 %v1109, %v1063
  %v1114 = vadd.f32 %v1110, %v1068
  %vm1115 = vcmp.ge.f32.partialorder %v1111, 0.0
  %vm1116 = vcmp.ge.f32.partialorder %v1112, 0.0
  %vm1117 = vcmp.ge.f32.partialorder %v1113, 0.0
  %vm1118 = vcmp.ge.f32.partialorder %v1114, 0.0
  %v1119 = vmul.f32 %v1111, 0.2
  %v1120 = vmul.f32 %v1112, 0.2
  %v1121 = vmul.f32 %v1113, 0.2
  %v1122 = vmul.f32 %v1114, 0.2
  %v1123 = vsel %vm1115, %v1111, %v1119
  %v1124 = vsel %vm1116, %v1112, %v1120
  %v1125 = vsel %vm1117, %v1113, %v1121
  %v1126 = vsel %vm1118, %v1114, %v1122
  %v1127 = vpack.c.bf16 %v1124, %v1123
  %v1128 = vpack.c.bf16 %v1126, %v1125
  %v1131 = vunpack.c.l.b16 %v1127
  %v1132 = vunpack.c.h.b16 %v1127
  %v1133 = vunpack.c.l.b16 %v1128
  %v1134 = vunpack.c.h.b16 %v1128
  %v1135 = vpack.c.b16 %v1131, %v1131
  %v1136 = vpack.c.b16 %v1132, %v1132
  %v1137 = vpack.c.b16 %v1133, %v1133
  %v1138 = vpack.c.b16 %v1134, %v1134
  %s1143 = scalar_lea.vmem %s4, 16
  %1144 = vst.msk [vmem:[%s1143] sm:$0xf] %vm1102, %v1135
  %1145 = vst.msk [vmem:[%s1143 + $0x4] sm:$0xf] %vm1102, %v1136
  %1146 = vst.msk [vmem:[%s1143 + $0x8] sm:$0xf] %vm1102, %v1137
  %1147 = vst.msk [vmem:[%s1143 + $0xc] sm:$0xf] %vm1102, %v1138
  %v1148 = vmul.f32 %v1029, %v611
  %v1149 = vmul.f32 %v1034, %v614
  %v1150 = vmul.f32 %v1039, %v619
  %v1151 = vmul.f32 %v1044, %v622
  %v1152 = vadd.f32 %v1148, %v1053
  %v1153 = vadd.f32 %v1149, %v1058
  %v1154 = vadd.f32 %v1150, %v1063
  %v1155 = vadd.f32 %v1151, %v1068
  %vm1156 = vcmp.ge.f32.partialorder %v1152, 0.0
  %vm1157 = vcmp.ge.f32.partialorder %v1153, 0.0
  %vm1158 = vcmp.ge.f32.partialorder %v1154, 0.0
  %vm1159 = vcmp.ge.f32.partialorder %v1155, 0.0
  %v1160 = vmul.f32 %v1152, 0.2
  %v1161 = vmul.f32 %v1153, 0.2
  %v1162 = vmul.f32 %v1154, 0.2
  %v1163 = vmul.f32 %v1155, 0.2
  %v1164 = vsel %vm1156, %v1152, %v1160
  %v1165 = vsel %vm1157, %v1153, %v1161
  %v1166 = vsel %vm1158, %v1154, %v1162
  %v1167 = vsel %vm1159, %v1155, %v1163
  %v1168 = vpack.c.bf16 %v1165, %v1164
  %v1169 = vpack.c.bf16 %v1167, %v1166
  %v1172 = vunpack.c.l.b16 %v1168
  %v1173 = vunpack.c.h.b16 %v1168
  %v1174 = vunpack.c.l.b16 %v1169
  %v1175 = vunpack.c.h.b16 %v1169
  %v1176 = vpack.c.b16 %v1172, %v1172
  %v1177 = vpack.c.b16 %v1173, %v1173
  %v1178 = vpack.c.b16 %v1174, %v1174
  %v1179 = vpack.c.b16 %v1175, %v1175
  %s1184 = scalar_lea.vmem %s4, 32
  %1185 = vst.msk [vmem:[%s1184] sm:$0xf] %vm1102, %v1176
  %1186 = vst.msk [vmem:[%s1184 + $0x4] sm:$0xf] %vm1102, %v1177
  %1187 = vst.msk [vmem:[%s1184 + $0x8] sm:$0xf] %vm1102, %v1178
  %1188 = vst.msk [vmem:[%s1184 + $0xc] sm:$0xf] %vm1102, %v1179
  %v1189 = vmul.f32 %v1029, %v814
  %v1190 = vmul.f32 %v1034, %v817
  %v1191 = vmul.f32 %v1039, %v822
  %v1192 = vmul.f32 %v1044, %v825
  %v1193 = vadd.f32 %v1189, %v1053
  %v1194 = vadd.f32 %v1190, %v1058
  %v1195 = vadd.f32 %v1191, %v1063
  %v1196 = vadd.f32 %v1192, %v1068
  %vm1197 = vcmp.ge.f32.partialorder %v1193, 0.0
  %vm1198 = vcmp.ge.f32.partialorder %v1194, 0.0
  %vm1199 = vcmp.ge.f32.partialorder %v1195, 0.0
  %vm1200 = vcmp.ge.f32.partialorder %v1196, 0.0
  %v1201 = vmul.f32 %v1193, 0.2
  %v1202 = vmul.f32 %v1194, 0.2
  %v1203 = vmul.f32 %v1195, 0.2
  %v1204 = vmul.f32 %v1196, 0.2
  %v1205 = vsel %vm1197, %v1193, %v1201
  %v1206 = vsel %vm1198, %v1194, %v1202
  %v1207 = vsel %vm1199, %v1195, %v1203
  %v1208 = vsel %vm1200, %v1196, %v1204
  %v1209 = vpack.c.bf16 %v1206, %v1205
  %v1210 = vpack.c.bf16 %v1208, %v1207
  %v1213 = vunpack.c.l.b16 %v1209
  %v1214 = vunpack.c.h.b16 %v1209
  %v1215 = vunpack.c.l.b16 %v1210
  %v1216 = vunpack.c.h.b16 %v1210
  %v1217 = vpack.c.b16 %v1213, %v1213
  %v1218 = vpack.c.b16 %v1214, %v1214
  %v1219 = vpack.c.b16 %v1215, %v1215
  %v1220 = vpack.c.b16 %v1216, %v1216
  %s1225 = scalar_lea.vmem %s4, 48
  %1226 = vst.msk [vmem:[%s1225] sm:$0xf] %vm1102, %v1217
  %1227 = vst.msk [vmem:[%s1225 + $0x4] sm:$0xf] %vm1102, %v1218
  %1228 = vst.msk [vmem:[%s1225 + $0x8] sm:$0xf] %vm1102, %v1219
  %1229 = vst.msk [vmem:[%s1225 + $0xc] sm:$0xf] %vm1102, %v1220
  // Predicated region
  $region18: #{generator_forward.6} parent=0 // pred_check
    _
  $region19: #{generator_forward.6} parent=0 // pred_check_branch
    %1231 = sbr.rel (0) target = $region21
  $region20: #{generator_forward.6} parent=0 // pred_region
    _
  $region21: #{generator_forward.6} parent=0 // pred_fallthru
    _
  // Predicated region
  $region22: #{generator_forward.6} parent=0 // pred_check
    _
  $region23: #{generator_forward.6} parent=0 // pred_check_branch
    %1233 = sbr.rel (0) target = $region25
  $region24: #{generator_forward.6} parent=0 // pred_region
    _
  $region25: #{generator_forward.6} parent=0 // pred_fallthru
    _

// kernel: generator_forward.7
$region0: #{generator_forward.7}
  #allocation0 [shape = 'u32[]', space=smem, size = 0x4, offset = 0x4, fixed_abs, tag = 'smem constant byte address 0x4 - core index']
  #allocation1 [shape = 'u32[144,128]{1,0:T(1,128)}', space=vmem, size = 0x12000, scoped, tag = 'internal scratch']
  %s0 = inlined_call_operand.vmem [shape: bf16[4,128,128], index: 0, kind: input, shape index: {}]
  %s1 = inlined_call_operand.vmem [shape: bf16[4,16,128], index: 1, kind: input, shape index: {}]
  %s2 = inlined_call_operand.vmem [shape: f32[16,1], index: 2, kind: input, shape index: {}]
  %s3 = inlined_call_operand.vmem [shape: f32[16,1], index: 3, kind: input, shape index: {}]
  %s4 = inlined_call_operand.vmem [shape: bf16[4,16,128], index: 4, kind: output, shape index: {}]
  %s5 = sld [smem:[#allocation0]]
  $region26: #{generator_forward.7} parent=0
    _
  %s7 = ssub.s32 1, %s5
  %s8 = scalar_select 0, %s7, %s5
  // Predicated region
  $region2: #{generator_forward.7} parent=0 // pred_check
    _
  $region3: #{generator_forward.7} parent=0 // pred_check_branch
    %10 = sbr.rel (0) target = $region5
  $region4: #{generator_forward.7} parent=0 // pred_region
    _
  $region5: #{generator_forward.7} parent=0 // pred_fallthru
    _
  // Predicated region
  $region6: #{generator_forward.7} parent=0 // pred_check
    _
  $region7: #{generator_forward.7} parent=0 // pred_check_branch
    %12 = sbr.rel (0) target = $region9
  $region8: #{generator_forward.7} parent=0 // pred_region
    _
  $region9: #{generator_forward.7} parent=0 // pred_fallthru
    _
  // Predicated region
  $region10: #{generator_forward.7} parent=0 // pred_check
    _
  $region11: #{generator_forward.7} parent=0 // pred_check_branch
    %14 = sbr.rel (0) target = $region13
  $region12: #{generator_forward.7} parent=0 // pred_region
    _
  $region13: #{generator_forward.7} parent=0 // pred_fallthru
    _
  // Predicated region
  $region14: #{generator_forward.7} parent=0 // pred_check
    _
  $region15: #{generator_forward.7} parent=0 // pred_check_branch
    %16 = sbr.rel (0) target = $region17
  $region16: #{generator_forward.7} parent=0 // pred_region
    _
  $region17: #{generator_forward.7} parent=0 // pred_fallthru
    _
  %v18 = vld [vmem:[%s1] sm:$0xf]
  %v19 = vld [vmem:[%s1 + $0x4] sm:$0xf]
  %v20 = vld [vmem:[%s0] sm:$0xf]
  %v21 = vld [vmem:[%s0 + $0x4] sm:$0xf]
  %v22 = vld [vmem:[%s0 + $0x8] sm:$0xf]
  %v23 = vld [vmem:[%s0 + $0xc] sm:$0xf]
  %v24 = vld [vmem:[%s0 + $0x10] sm:$0xf]
  %v25 = vld [vmem:[%s0 + $0x14] sm:$0xf]
  %v26 = vld [vmem:[%s0 + $0x18] sm:$0xf]
  %v27 = vld [vmem:[%s0 + $0x1c] sm:$0xf]
  %v28 = vld [vmem:[%s0 + $0x20] sm:$0xf]
  %v29 = vld [vmem:[%s0 + $0x24] sm:$0xf]
  %v30 = vld [vmem:[%s0 + $0x28] sm:$0xf]
  %v31 = vld [vmem:[%s0 + $0x2c] sm:$0xf]
  %v32 = vld [vmem:[%s0 + $0x30] sm:$0xf]
  %v33 = vld [vmem:[%s0 + $0x34] sm:$0xf]
  %v34 = vld [vmem:[%s0 + $0x38] sm:$0xf]
  %v35 = vld [vmem:[%s0 + $0x3c] sm:$0xf]
  %v38 = vunpack.c.l.b16 %v18
  %v39 = vunpack.c.l.b16 %v19
  %v40 = vpack.c.b16 %v39, %v38
  %v58 = vunpack.c.l.b16 %v20
  %v59 = vunpack.c.l.b16 %v21
  %v60 = vunpack.c.l.b16 %v22
  %v61 = vunpack.c.l.b16 %v23
  %v62 = vunpack.c.l.b16 %v24
  %v63 = vunpack.c.l.b16 %v25
  %v64 = vunpack.c.l.b16 %v26
  %v65 = vunpack.c.l.b16 %v27
  %v66 = vunpack.c.l.b16 %v28
  %v67 = vunpack.c.l.b16 %v29
  %v68 = vunpack.c.l.b16 %v30
  %v69 = vunpack.c.l.b16 %v31
  %v70 = vunpack.c.l.b16 %v32
  %v71 = vunpack.c.l.b16 %v33
  %v72 = vunpack.c.l.b16 %v34
  %v73 = vunpack.c.l.b16 %v35
  %v74 = vpack.c.b16 %v59, %v58
  %v75 = vpack.c.b16 %v61, %v60
  %v76 = vpack.c.b16 %v63, %v62
  %v77 = vpack.c.b16 %v65, %v64
  %v78 = vpack.c.b16 %v67, %v66
  %v79 = vpack.c.b16 %v69, %v68
  %v80 = vpack.c.b16 %v71, %v70
  %v81 = vpack.c.b16 %v73, %v72
  %90 = vmatprep.subr.bf16.mxu0 0
  %91 = vmatpush1.bf16.msra.mxu0 %v74
  %92 = vmatprep.subr.bf16.mxu0 0
  %93 = vmatpush1.bf16.msra.mxu0 %v75
  %94 = vmatprep.subr.bf16.mxu0 0
  %95 = vmatpush1.bf16.msra.mxu0 %v76
  %96 = vmatprep.subr.bf16.mxu0 0
  %97 = vmatpush1.bf16.msra.mxu0 %v77
  %98 = vmatprep.subr.bf16.mxu0 0
  %99 = vmatpush1.bf16.msra.mxu0 %v78
  %100 = vmatprep.subr.bf16.mxu0 0
  %101 = vmatpush1.bf16.msra.mxu0 %v79
  %102 = vmatprep.subr.bf16.mxu0 0
  %103 = vmatpush1.bf16.msra.mxu0 %v80
  %104 = vmatprep.subr.bf16.mxu0 0
  %105 = vmatpush1.bf16.msra.mxu0 %v81
  %106 = vmatprep.subr.bf16.mxu0 0
  %107 = vmatpush1.bf16.msra.mxu0 0
  %108 = vmatprep.subr.bf16.mxu0 0
  %109 = vmatpush1.bf16.msra.mxu0 0
  %110 = vmatprep.subr.bf16.mxu0 0
  %111 = vmatpush1.bf16.msra.mxu0 0
  %112 = vmatprep.subr.bf16.mxu0 0
  %113 = vmatpush1.bf16.msra.mxu0 0
  %114 = vmatprep.subr.bf16.mxu0 0
  %115 = vmatpush1.bf16.msra.mxu0 0
  %116 = vmatprep.subr.bf16.mxu0 0
  %117 = vmatpush1.bf16.msra.mxu0 0
  %118 = vmatprep.subr.bf16.mxu0 0
  %119 = vmatpush1.bf16.msra.mxu0 0
  %120 = vmatprep.subr.bf16.mxu0 0
  %121 = vmatpush1.bf16.msra.mxu0 0
  %122 = vmatprep.mubr.bf16.mxu0 0
  %123 = vmatmul.mubr.bf16.gmra.mrb[0].mxu0 %v40
  %v124 = vpop.f32.mrb[0].mxu0
  %v125 = vadd.f32 0.0, %v124
  %v126 = vpop.f32.mrb[0].mxu0
  %v127 = vpop.f32.mrb[0].mxu0
  %v128 = vadd.f32 0.0, %v127
  %v129 = vpop.f32.mrb[0].mxu0
  %130 = vdwg.mxu0
  %s131 = scalar_lea.vmem %s1, 8
  %v132 = vld [vmem:[%s131] sm:$0xf]
  %v133 = vld [vmem:[%s131 + $0x4] sm:$0xf]
  %s134 = scalar_lea.vmem %s0, 64
  %v135 = vld [vmem:[%s134] sm:$0xf]
  %v136 = vld [vmem:[%s134 + $0x4] sm:$0xf]
  %v137 = vld [vmem:[%s134 + $0x8] sm:$0xf]
  %v138 = vld [vmem:[%s134 + $0xc] sm:$0xf]
  %v139 = vld [vmem:[%s134 + $0x10] sm:$0xf]
  %v140 = vld [vmem:[%s134 + $0x14] sm:$0xf]
  %v141 = vld [vmem:[%s134 + $0x18] sm:$0xf]
  %v142 = vld [vmem:[%s134 + $0x1c] sm:$0xf]
  %v143 = vld [vmem:[%s134 + $0x20] sm:$0xf]
  %v144 = vld [vmem:[%s134 + $0x24] sm:$0xf]
  %v145 = vld [vmem:[%s134 + $0x28] sm:$0xf]
  %v146 = vld [vmem:[%s134 + $0x2c] sm:$0xf]
  %v147 = vld [vmem:[%s134 + $0x30] sm:$0xf]
  %v148 = vld [vmem:[%s134 + $0x34] sm:$0xf]
  %v149 = vld [vmem:[%s134 + $0x38] sm:$0xf]
  %v150 = vld [vmem:[%s134 + $0x3c] sm:$0xf]
  %v153 = vunpack.c.l.b16 %v132
  %v154 = vunpack.c.l.b16 %v133
  %v155 = vpack.c.b16 %v154, %v153
  %v173 = vunpack.c.l.b16 %v135
  %v174 = vunpack.c.l.b16 %v136
  %v175 = vunpack.c.l.b16 %v137
  %v176 = vunpack.c.l.b16 %v138
  %v177 = vunpack.c.l.b16 %v139
  %v178 = vunpack.c.l.b16 %v140
  %v179 = vunpack.c.l.b16 %v141
  %v180 = vunpack.c.l.b16 %v142
  %v181 = vunpack.c.l.b16 %v143
  %v182 = vunpack.c.l.b16 %v144
  %v183 = vunpack.c.l.b16 %v145
  %v184 = vunpack.c.l.b16 %v146
  %v185 = vunpack.c.l.b16 %v147
  %v186 = vunpack.c.l.b16 %v148
  %v187 = vunpack.c.l.b16 %v149
  %v188 = vunpack.c.l.b16 %v150
  %v189 = vpack.c.b16 %v174, %v173
  %v190 = vpack.c.b16 %v176, %v175
  %v191 = vpack.c.b16 %v178, %v177
  %v192 = vpack.c.b16 %v180, %v179
  %v193 = vpack.c.b16 %v182, %v181
  %v194 = vpack.c.b16 %v184, %v183
  %v195 = vpack.c.b16 %v186, %v185
  %v196 = vpack.c.b16 %v188, %v187
  %205 = vmatprep.subr.bf16.mxu0 0
  %206 = vmatpush1.bf16.msra.mxu0 %v189
  %207 = vmatprep.subr.bf16.mxu0 0
  %208 = vmatpush1.bf16.msra.mxu0 %v190
  %209 = vmatprep.subr.bf16.mxu0 0
  %210 = vmatpush1.bf16.msra.mxu0 %v191
  %211 = vmatprep.subr.bf16.mxu0 0
  %212 = vmatpush1.bf16.msra.mxu0 %v192
  %213 = vmatprep.subr.bf16.mxu0 0
  %214 = vmatpush1.bf16.msra.mxu0 %v193
  %215 = vmatprep.subr.bf16.mxu0 0
  %216 = vmatpush1.bf16.msra.mxu0 %v194
  %217 = vmatprep.subr.bf16.mxu0 0
  %218 = vmatpush1.bf16.msra.mxu0 %v195
  %219 = vmatprep.subr.bf16.mxu0 0
  %220 = vmatpush1.bf16.msra.mxu0 %v196
  %221 = vmatprep.subr.bf16.mxu0 0
  %222 = vmatpush1.bf16.msra.mxu0 0
  %223 = vmatprep.subr.bf16.mxu0 0
  %224 = vmatpush1.bf16.msra.mxu0 0
  %225 = vmatprep.subr.bf16.mxu0 0
  %226 = vmatpush1.bf16.msra.mxu0 0
  %227 = vmatprep.subr.bf16.mxu0 0
  %228 = vmatpush1.bf16.msra.mxu0 0
  %229 = vmatprep.subr.bf16.mxu0 0
  %230 = vmatpush1.bf16.msra.mxu0 0
  %231 = vmatprep.subr.bf16.mxu0 0
  %232 = vmatpush1.bf16.msra.mxu0 0
  %233 = vmatprep.subr.bf16.mxu0 0
  %234 = vmatpush1.bf16.msra.mxu0 0
  %235 = vmatprep.subr.bf16.mxu0 0
  %236 = vmatpush1.bf16.msra.mxu0 0
  %237 = vmatprep.mubr.bf16.mxu0 0
  %238 = vmatmul.mubr.bf16.gmra.mrb[0].mxu0 %v155
  %v239 = vpop.f32.mrb[0].mxu0
  %v240 = vadd.f32 0.0, %v239
  %v241 = vpop.f32.mrb[0].mxu0
  %v242 = vpop.f32.mrb[0].mxu0
  %v243 = vadd.f32 0.0, %v242
  %v244 = vpop.f32.mrb[0].mxu0
  %245 = vdwg.mxu0
  %s246 = scalar_lea.vmem %s1, 16
  %v247 = vld [vmem:[%s246] sm:$0xf]
  %v248 = vld [vmem:[%s246 + $0x4] sm:$0xf]
  %s249 = scalar_lea.vmem %s0, 128
  %v250 = vld [vmem:[%s249] sm:$0xf]
  %v251 = vld [vmem:[%s249 + $0x4] sm:$0xf]
  %v252 = vld [vmem:[%s249 + $0x8] sm:$0xf]
  %v253 = vld [vmem:[%s249 + $0xc] sm:$0xf]
  %v254 = vld [vmem:[%s249 + $0x10] sm:$0xf]
  %v255 = vld [vmem:[%s249 + $0x14] sm:$0xf]
  %v256 = vld [vmem:[%s249 + $0x18] sm:$0xf]
  %v257 = vld [vmem:[%s249 + $0x1c] sm:$0xf]
  %v258 = vld [vmem:[%s249 + $0x20] sm:$0xf]
  %v259 = vld [vmem:[%s249 + $0x24] sm:$0xf]
  %v260 = vld [vmem:[%s249 + $0x28] sm:$0xf]
  %v261 = vld [vmem:[%s249 + $0x2c] sm:$0xf]
  %v262 = vld [vmem:[%s249 + $0x30] sm:$0xf]
  %v263 = vld [vmem:[%s249 + $0x34] sm:$0xf]
  %v264 = vld [vmem:[%s249 + $0x38] sm:$0xf]
  %v265 = vld [vmem:[%s249 + $0x3c] sm:$0xf]
  %v268 = vunpack.c.l.b16 %v247
  %v269 = vunpack.c.l.b16 %v248
  %v270 = vpack.c.b16 %v269, %v268
  %v288 = vunpack.c.l.b16 %v250
  %v289 = vunpack.c.l.b16 %v251
  %v290 = vunpack.c.l.b16 %v252
  %v291 = vunpack.c.l.b16 %v253
  %v292 = vunpack.c.l.b16 %v254
  %v293 = vunpack.c.l.b16 %v255
  %v294 = vunpack.c.l.b16 %v256
  %v295 = vunpack.c.l.b16 %v257
  %v296 = vunpack.c.l.b16 %v258
  %v297 = vunpack.c.l.b16 %v259
  %v298 = vunpack.c.l.b16 %v260
  %v299 = vunpack.c.l.b16 %v261
  %v300 = vunpack.c.l.b16 %v262
  %v301 = vunpack.c.l.b16 %v263
  %v302 = vunpack.c.l.b16 %v264
  %v303 = vunpack.c.l.b16 %v265
  %v304 = vpack.c.b16 %v289, %v288
  %v305 = vpack.c.b16 %v291, %v290
  %v306 = vpack.c.b16 %v293, %v292
  %v307 = vpack.c.b16 %v295, %v294
  %v308 = vpack.c.b16 %v297, %v296
  %v309 = vpack.c.b16 %v299, %v298
  %v310 = vpack.c.b16 %v301, %v300
  %v311 = vpack.c.b16 %v303, %v302
  %320 = vmatprep.subr.bf16.mxu0 0
  %321 = vmatpush1.bf16.msra.mxu0 %v304
  %322 = vmatprep.subr.bf16.mxu0 0
  %323 = vmatpush1.bf16.msra.mxu0 %v305
  %324 = vmatprep.subr.bf16.mxu0 0
  %325 = vmatpush1.bf16.msra.mxu0 %v306
  %326 = vmatprep.subr.bf16.mxu0 0
  %327 = vmatpush1.bf16.msra.mxu0 %v307
  %328 = vmatprep.subr.bf16.mxu0 0
  %329 = vmatpush1.bf16.msra.mxu0 %v308
  %330 = vmatprep.subr.bf16.mxu0 0
  %331 = vmatpush1.bf16.msra.mxu0 %v309
  %332 = vmatprep.subr.bf16.mxu0 0
  %333 = vmatpush1.bf16.msra.mxu0 %v310
  %334 = vmatprep.subr.bf16.mxu0 0
  %335 = vmatpush1.bf16.msra.mxu0 %v311
  %336 = vmatprep.subr.bf16.mxu0 0
  %337 = vmatpush1.bf16.msra.mxu0 0
  %338 = vmatprep.subr.bf16.mxu0 0
  %339 = vmatpush1.bf16.msra.mxu0 0
  %340 = vmatprep.subr.bf16.mxu0 0
  %341 = vmatpush1.bf16.msra.mxu0 0
  %342 = vmatprep.subr.bf16.mxu0 0
  %343 = vmatpush1.bf16.msra.mxu0 0
  %344 = vmatprep.subr.bf16.mxu0 0
  %345 = vmatpush1.bf16.msra.mxu0 0
  %346 = vmatprep.subr.bf16.mxu0 0
  %347 = vmatpush1.bf16.msra.mxu0 0
  %348 = vmatprep.subr.bf16.mxu0 0
  %349 = vmatpush1.bf16.msra.mxu0 0
  %350 = vmatprep.subr.bf16.mxu0 0
  %351 = vmatpush1.bf16.msra.mxu0 0
  %352 = vmatprep.mubr.bf16.mxu0 0
  %353 = vmatmul.mubr.bf16.gmra.mrb[0].mxu0 %v270
  %v354 = vpop.f32.mrb[0].mxu0
  %v355 = vadd.f32 0.0, %v354
  %v356 = vpop.f32.mrb[0].mxu0
  %v357 = vpop.f32.mrb[0].mxu0
  %v358 = vadd.f32 0.0, %v357
  %v359 = vpop.f32.mrb[0].mxu0
  %360 = vdwg.mxu0
  %s361 = scalar_lea.vmem %s1, 24
  %v362 = vld [vmem:[%s361] sm:$0xf]
  %v363 = vld [vmem:[%s361 + $0x4] sm:$0xf]
  %s364 = scalar_lea.vmem %s0, 192
  %v365 = vld [vmem:[%s364] sm:$0xf]
  %v366 = vld [vmem:[%s364 + $0x4] sm:$0xf]
  %v367 = vld [vmem:[%s364 + $0x8] sm:$0xf]
  %v368 = vld [vmem:[%s364 + $0xc] sm:$0xf]
  %v369 = vld [vmem:[%s364 + $0x10] sm:$0xf]
  %v370 = vld [vmem:[%s364 + $0x14] sm:$0xf]
  %v371 = vld [vmem:[%s364 + $0x18] sm:$0xf]
  %v372 = vld [vmem:[%s364 + $0x1c] sm:$0xf]
  %v373 = vld [vmem:[%s364 + $0x20] sm:$0xf]
  %v374 = vld [vmem:[%s364 + $0x24] sm:$0xf]
  %v375 = vld [vmem:[%s364 + $0x28] sm:$0xf]
  %v376 = vld [vmem:[%s364 + $0x2c] sm:$0xf]
  %v377 = vld [vmem:[%s364 + $0x30] sm:$0xf]
  %v378 = vld [vmem:[%s364 + $0x34] sm:$0xf]
  %v379 = vld [vmem:[%s364 + $0x38] sm:$0xf]
  %v380 = vld [vmem:[%s364 + $0x3c] sm:$0xf]
  %v383 = vunpack.c.l.b16 %v362
  %v384 = vunpack.c.l.b16 %v363
  %v385 = vpack.c.b16 %v384, %v383
  %v403 = vunpack.c.l.b16 %v365
  %v404 = vunpack.c.l.b16 %v366
  %v405 = vunpack.c.l.b16 %v367
  %v406 = vunpack.c.l.b16 %v368
  %v407 = vunpack.c.l.b16 %v369
  %v408 = vunpack.c.l.b16 %v370
  %v409 = vunpack.c.l.b16 %v371
  %v410 = vunpack.c.l.b16 %v372
  %v411 = vunpack.c.l.b16 %v373
  %v412 = vunpack.c.l.b16 %v374
  %v413 = vunpack.c.l.b16 %v375
  %v414 = vunpack.c.l.b16 %v376
  %v415 = vunpack.c.l.b16 %v377
  %v416 = vunpack.c.l.b16 %v378
  %v417 = vunpack.c.l.b16 %v379
  %v418 = vunpack.c.l.b16 %v380
  %v419 = vpack.c.b16 %v404, %v403
  %v420 = vpack.c.b16 %v406, %v405
  %v421 = vpack.c.b16 %v408, %v407
  %v422 = vpack.c.b16 %v410, %v409
  %v423 = vpack.c.b16 %v412, %v411
  %v424 = vpack.c.b16 %v414, %v413
  %v425 = vpack.c.b16 %v416, %v415
  %v426 = vpack.c.b16 %v418, %v417
  %435 = vmatprep.subr.bf16.mxu0 0
  %436 = vmatpush1.bf16.msra.mxu0 %v419
  %437 = vmatprep.subr.bf16.mxu0 0
  %438 = vmatpush1.bf16.msra.mxu0 %v420
  %439 = vmatprep.subr.bf16.mxu0 0
  %440 = vmatpush1.bf16.msra.mxu0 %v421
  %441 = vmatprep.subr.bf16.mxu0 0
  %442 = vmatpush1.bf16.msra.mxu0 %v422
  %443 = vmatprep.subr.bf16.mxu0 0
  %444 = vmatpush1.bf16.msra.mxu0 %v423
  %445 = vmatprep.subr.bf16.mxu0 0
  %446 = vmatpush1.bf16.msra.mxu0 %v424
  %447 = vmatprep.subr.bf16.mxu0 0
  %448 = vmatpush1.bf16.msra.mxu0 %v425
  %449 = vmatprep.subr.bf16.mxu0 0
  %450 = vmatpush1.bf16.msra.mxu0 %v426
  %451 = vmatprep.subr.bf16.mxu0 0
  %452 = vmatpush1.bf16.msra.mxu0 0
  %453 = vmatprep.subr.bf16.mxu0 0
  %454 = vmatpush1.bf16.msra.mxu0 0
  %455 = vmatprep.subr.bf16.mxu0 0
  %456 = vmatpush1.bf16.msra.mxu0 0
  %457 = vmatprep.subr.bf16.mxu0 0
  %458 = vmatpush1.bf16.msra.mxu0 0
  %459 = vmatprep.subr.bf16.mxu0 0
  %460 = vmatpush1.bf16.msra.mxu0 0
  %461 = vmatprep.subr.bf16.mxu0 0
  %462 = vmatpush1.bf16.msra.mxu0 0
  %463 = vmatprep.subr.bf16.mxu0 0
  %464 = vmatpush1.bf16.msra.mxu0 0
  %465 = vmatprep.subr.bf16.mxu0 0
  %466 = vmatpush1.bf16.msra.mxu0 0
  %467 = vmatprep.mubr.bf16.mxu0 0
  %468 = vmatmul.mubr.bf16.gmra.mrb[0].mxu0 %v385
  %v469 = vpop.f32.mrb[0].mxu0
  %v470 = vadd.f32 0.0, %v469
  %v471 = vpop.f32.mrb[0].mxu0
  %v472 = vpop.f32.mrb[0].mxu0
  %v473 = vadd.f32 0.0, %v472
  %v474 = vpop.f32.mrb[0].mxu0
  %475 = vdwg.mxu0
  %476 = vadd.xlane.f32.xlu0 %v125
  %v477 = vpop.xlane.xlu0 %476
  %478 = vadd.xlane.f32.xlu0 %v128
  %v479 = vpop.xlane.xlu0 %478
  %v480 = vadd.f32 %v477, 0.0
  %v481 = vadd.f32 %v479, 0.0
  %482 = vadd.xlane.f32.xlu0 %v240
  %v483 = vpop.xlane.xlu0 %482
  %484 = vadd.xlane.f32.xlu0 %v243
  %v485 = vpop.xlane.xlu0 %484
  %v486 = vadd.f32 %v480, %v483
  %v487 = vadd.f32 %v481, %v485
  %488 = vadd.xlane.f32.xlu0 %v355
  %v489 = vpop.xlane.xlu0 %488
  %490 = vadd.xlane.f32.xlu0 %v358
  %v491 = vpop.xlane.xlu0 %490
  %v492 = vadd.f32 %v486, %v489
  %v493 = vadd.f32 %v487, %v491
  %494 = vadd.xlane.f32.xlu0 %v470
  %v495 = vpop.xlane.xlu0 %494
  %496 = vadd.xlane.f32.xlu0 %v473
  %v497 = vpop.xlane.xlu0 %496
  %v498 = vadd.f32 %v492, %v495
  %v499 = vadd.f32 %v493, %v497
  %v500 = vrcp.pop 512.0
  %v501 = vmul.f32 %v498, %v500
  %v502 = vmul.f32 %v499, %v500
  %v503 = vsub.f32 %v125, %v501
  %v504 = vsub.f32 %v128, %v502
  %v505 = vmul.f32 %v503, %v503
  %v506 = vmul.f32 %v504, %v504
  %507 = vadd.xlane.f32.xlu0 %v505
  %v508 = vpop.xlane.xlu0 %507
  %509 = vadd.xlane.f32.xlu0 %v506
  %v510 = vpop.xlane.xlu0 %509
  %v511 = vadd.f32 %v508, 0.0
  %v512 = vadd.f32 %v510, 0.0
  %v513 = vsub.f32 %v240, %v501
  %v514 = vsub.f32 %v243, %v502
  %v515 = vmul.f32 %v513, %v513
  %v516 = vmul.f32 %v514, %v514
  %517 = vadd.xlane.f32.xlu0 %v515
  %v518 = vpop.xlane.xlu0 %517
  %519 = vadd.xlane.f32.xlu0 %v516
  %v520 = vpop.xlane.xlu0 %519
  %v521 = vadd.f32 %v511, %v518
  %v522 = vadd.f32 %v512, %v520
  %v523 = vsub.f32 %v355, %v501
  %v524 = vsub.f32 %v358, %v502
  %v525 = vmul.f32 %v523, %v523
  %v526 = vmul.f32 %v524, %v524
  %527 = vadd.xlane.f32.xlu0 %v525
  %v528 = vpop.xlane.xlu0 %527
  %529 = vadd.xlane.f32.xlu0 %v526
  %v530 = vpop.xlane.xlu0 %529
  %v531 = vadd.f32 %v521, %v528
  %v532 = vadd.f32 %v522, %v530
  %v533 = vsub.f32 %v470, %v501
  %v534 = vsub.f32 %v473, %v502
  %v535 = vmul.f32 %v533, %v533
  %v536 = vmul.f32 %v534, %v534
  %537 = vadd.xlane.f32.xlu0 %v535
  %v538 = vpop.xlane.xlu0 %537
  %539 = vadd.xlane.f32.xlu0 %v536
  %v540 = vpop.xlane.xlu0 %539
  %v541 = vadd.f32 %v531, %v538
  %v542 = vadd.f32 %v532, %v540
  %v543 = vmul.f32 %v541, %v500
  %v544 = vmul.f32 %v542, %v500
  %v545 = vld [vmem:[%s2] sm:$0xff]
  %v546 = vld [vmem:[%s2 + $0x8] sm:$0xff]
  %v547 = vadd.f32 %v543, 1e-05
  %v548 = vadd.f32 %v544, 1e-05
  %v549 = vrsqrt.pop %v547
  %v550 = vrsqrt.pop %v548
  %v551 = vmul.f32 %v545, %v549
  %v552 = vmul.f32 %v546, %v550
  %v553 = vld [vmem:[%s3] sm:$0xff]
  %v554 = vld [vmem:[%s3 + $0x8] sm:$0xff]
  %v555 = vmul.f32 %v551, %v501
  %v556 = vmul.f32 %v552, %v502
  %v557 = vsub.f32 %v553, %v555
  %v558 = vsub.f32 %v554, %v556
  %560 = vset.pattern.permute.xlu0 0
  %561 = vperm.xlu0 %560, %v551
  %v562 = vpop.permute.xlu0 %561
  %565 = vset.pattern.permute.xlu0 0
  %566 = vperm.xlu0 %565, %v552
  %v567 = vpop.permute.xlu0 %566
  %v569 = vmul.f32 %v562, %v125
  %v570 = vmul.f32 %v567, %v128
  %572 = vset.pattern.permute.xlu0 0
  %573 = vperm.xlu0 %572, %v557
  %v574 = vpop.permute.xlu0 %573
  %577 = vset.pattern.permute.xlu0 0
  %578 = vperm.xlu0 %577, %v558
  %v579 = vpop.permute.xlu0 %578
  %v581 = vadd.f32 %v569, %v574
  %v582 = vadd.f32 %v570, %v579
  %vm583 = vcmp.ge.f32.partialorder %v581, 0.0
  %vm584 = vcmp.ge.f32.partialorder %v582, 0.0
  %v585 = vmul.f32 %v581, 0.2
  %v586 = vmul.f32 %v582, 0.2
  %v587 = vsel %vm583, %v581, %v585
  %v588 = vsel %vm584, %v582, %v586
  %v589 = vpack.c.bf16 %v588, %v587
  %v591 = vunpack.c.l.b16 %v589
  %v592 = vunpack.c.h.b16 %v589
  %v593 = vpack.c.b16 %v591, %v591
  %v594 = vpack.c.b16 %v592, %v592
  %597 = vst [vmem:[%s4] sm:$0xf] %v593
  %598 = vst [vmem:[%s4 + $0x4] sm:$0xf] %v594
  %v599 = vmul.f32 %v562, %v240
  %v600 = vmul.f32 %v567, %v243
  %v601 = vadd.f32 %v599, %v574
  %v602 = vadd.f32 %v600, %v579
  %vm603 = vcmp.ge.f32.partialorder %v601, 0.0
  %vm604 = vcmp.ge.f32.partialorder %v602, 0.0
  %v605 = vmul.f32 %v601, 0.2
  %v606 = vmul.f32 %v602, 0.2
  %v607 = vsel %vm603, %v601, %v605
  %v608 = vsel %vm604, %v602, %v606
  %v609 = vpack.c.bf16 %v608, %v607
  %v611 = vunpack.c.l.b16 %v609
  %v612 = vunpack.c.h.b16 %v609
  %v613 = vpack.c.b16 %v611, %v611
  %v614 = vpack.c.b16 %v612, %v612
  %s617 = scalar_lea.vmem %s4, 8
  %618 = vst [vmem:[%s617] sm:$0xf] %v613
  %619 = vst [vmem:[%s617 + $0x4] sm:$0xf] %v614
  %v620 = vmul.f32 %v562, %v355
  %v621 = vmul.f32 %v567, %v358
  %v622 = vadd.f32 %v620, %v574
  %v623 = vadd.f32 %v621, %v579
  %vm624 = vcmp.ge.f32.partialorder %v622, 0.0
  %vm625 = vcmp.ge.f32.partialorder %v623, 0.0
  %v626 = vmul.f32 %v622, 0.2
  %v627 = vmul.f32 %v623, 0.2
  %v628 = vsel %vm624, %v622, %v626
  %v629 = vsel %vm625, %v623, %v627
  %v630 = vpack.c.bf16 %v629, %v628
  %v632 = vunpack.c.l.b16 %v630
  %v633 = vunpack.c.h.b16 %v630
  %v634 = vpack.c.b16 %v632, %v632
  %v635 = vpack.c.b16 %v633, %v633
  %s638 = scalar_lea.vmem %s4, 16
  %639 = vst [vmem:[%s638] sm:$0xf] %v634
  %640 = vst [vmem:[%s638 + $0x4] sm:$0xf] %v635
  %v641 = vmul.f32 %v562, %v470
  %v642 = vmul.f32 %v567, %v473
  %v643 = vadd.f32 %v641, %v574
  %v644 = vadd.f32 %v642, %v579
  %vm645 = vcmp.ge.f32.partialorder %v643, 0.0
  %vm646 = vcmp.ge.f32.partialorder %v644, 0.0
  %v647 = vmul.f32 %v643, 0.2
  %v648 = vmul.f32 %v644, 0.2
  %v649 = vsel %vm645, %v643, %v647
  %v650 = vsel %vm646, %v644, %v648
  %v651 = vpack.c.bf16 %v650, %v649
  %v653 = vunpack.c.l.b16 %v651
  %v654 = vunpack.c.h.b16 %v651
  %v655 = vpack.c.b16 %v653, %v653
  %v656 = vpack.c.b16 %v654, %v654
  %s659 = scalar_lea.vmem %s4, 24
  %660 = vst [vmem:[%s659] sm:$0xf] %v655
  %661 = vst [vmem:[%s659 + $0x4] sm:$0xf] %v656
  // Predicated region
  $region18: #{generator_forward.7} parent=0 // pred_check
    _
  $region19: #{generator_forward.7} parent=0 // pred_check_branch
    %663 = sbr.rel (0) target = $region21
  $region20: #{generator_forward.7} parent=0 // pred_region
    _
  $region21: #{generator_forward.7} parent=0 // pred_fallthru
    _
  // Predicated region
  $region22: #{generator_forward.7} parent=0 // pred_check
    _
  $region23: #{generator_forward.7} parent=0 // pred_check_branch
    %665 = sbr.rel (0) target = $region25
  $region24: #{generator_forward.7} parent=0 // pred_region
    _
  $region25: #{generator_forward.7} parent=0 // pred_fallthru
    _

// kernel: generator_forward.8
$region0: #{generator_forward.8}
  #allocation0 [shape = 'u32[]', space=smem, size = 0x4, offset = 0x4, fixed_abs, tag = 'smem constant byte address 0x4 - core index']
  #allocation1 [shape = 'u32[144,128]{1,0:T(1,128)}', space=vmem, size = 0x12000, scoped, tag = 'internal scratch']
  %s0 = inlined_call_operand.vmem [shape: bf16[4,64,512], index: 0, kind: input, shape index: {}]
  %s1 = inlined_call_operand.vmem [shape: bf16[4,8,64], index: 1, kind: input, shape index: {}]
  %s2 = inlined_call_operand.vmem [shape: f32[8,1], index: 2, kind: input, shape index: {}]
  %s3 = inlined_call_operand.vmem [shape: f32[8,1], index: 3, kind: input, shape index: {}]
  %s4 = inlined_call_operand.vmem [shape: bf16[4,8,512], index: 4, kind: output, shape index: {}]
  %s5 = sld [smem:[#allocation0]]
  $region26: #{generator_forward.8} parent=0
    _
  %s7 = ssub.s32 1, %s5
  %s8 = scalar_select 0, %s7, %s5
  // Predicated region
  $region2: #{generator_forward.8} parent=0 // pred_check
    _
  $region3: #{generator_forward.8} parent=0 // pred_check_branch
    %10 = sbr.rel (0) target = $region5
  $region4: #{generator_forward.8} parent=0 // pred_region
    _
  $region5: #{generator_forward.8} parent=0 // pred_fallthru
    _
  // Predicated region
  $region6: #{generator_forward.8} parent=0 // pred_check
    _
  $region7: #{generator_forward.8} parent=0 // pred_check_branch
    %12 = sbr.rel (0) target = $region9
  $region8: #{generator_forward.8} parent=0 // pred_region
    _
  $region9: #{generator_forward.8} parent=0 // pred_fallthru
    _
  // Predicated region
  $region10: #{generator_forward.8} parent=0 // pred_check
    _
  $region11: #{generator_forward.8} parent=0 // pred_check_branch
    %14 = sbr.rel (0) target = $region13
  $region12: #{generator_forward.8} parent=0 // pred_region
    _
  $region13: #{generator_forward.8} parent=0 // pred_fallthru
    _
  // Predicated region
  $region14: #{generator_forward.8} parent=0 // pred_check
    _
  $region15: #{generator_forward.8} parent=0 // pred_check_branch
    %16 = sbr.rel (0) target = $region17
  $region16: #{generator_forward.8} parent=0 // pred_region
    _
  $region17: #{generator_forward.8} parent=0 // pred_fallthru
    _
  %v18 = vld [vmem:[%s1] sm:$0xf]
  %v19 = vld [vmem:[%s0] sm:$0xff]
  %v20 = vld [vmem:[%s0 + $0x8] sm:$0xff]
  %v21 = vld [vmem:[%s0 + $0x10] sm:$0xff]
  %v22 = vld [vmem:[%s0 + $0x18] sm:$0xff]
  %v23 = vld [vmem:[%s0 + $0x20] sm:$0xff]
  %v24 = vld [vmem:[%s0 + $0x28] sm:$0xff]
  %v25 = vld [vmem:[%s0 + $0x30] sm:$0xff]
  %v26 = vld [vmem:[%s0 + $0x38] sm:$0xff]
  %v27 = vld [vmem:[%s0 + $0x40] sm:$0xff]
  %v28 = vld [vmem:[%s0 + $0x48] sm:$0xff]
  %v29 = vld [vmem:[%s0 + $0x50] sm:$0xff]
  %v30 = vld [vmem:[%s0 + $0x58] sm:$0xff]
  %v31 = vld [vmem:[%s0 + $0x60] sm:$0xff]
  %v32 = vld [vmem:[%s0 + $0x68] sm:$0xff]
  %v33 = vld [vmem:[%s0 + $0x70] sm:$0xff]
  %v34 = vld [vmem:[%s0 + $0x78] sm:$0xff]
  %v51 = vunpack.c.l.b16 %v19
  %v52 = vunpack.c.h.b16 %v19
  %v53 = vunpack.c.l.b16 %v20
  %v54 = vunpack.c.h.b16 %v20
  %v55 = vunpack.c.l.b16 %v21
  %v56 = vunpack.c.h.b16 %v21
  %v57 = vunpack.c.l.b16 %v22
  %v58 = vunpack.c.h.b16 %v22
  %v59 = vunpack.c.l.b16 %v23
  %v60 = vunpack.c.h.b16 %v23
  %v61 = vunpack.c.l.b16 %v24
  %v62 = vunpack.c.h.b16 %v24
  %v63 = vunpack.c.l.b16 %v25
  %v64 = vunpack.c.h.b16 %v25
  %v65 = vunpack.c.l.b16 %v26
  %v66 = vunpack.c.h.b16 %v26
  %v67 = vunpack.c.l.b16 %v27
  %v68 = vunpack.c.h.b16 %v27
  %v69 = vunpack.c.l.b16 %v28
  %v70 = vunpack.c.h.b16 %v28
  %v71 = vunpack.c.l.b16 %v29
  %v72 = vunpack.c.h.b16 %v29
  %v73 = vunpack.c.l.b16 %v30
  %v74 = vunpack.c.h.b16 %v30
  %v75 = vunpack.c.l.b16 %v31
  %v76 = vunpack.c.h.b16 %v31
  %v77 = vunpack.c.l.b16 %v32
  %v78 = vunpack.c.h.b16 %v32
  %v79 = vunpack.c.l.b16 %v33
  %v80 = vunpack.c.h.b16 %v33
  %v81 = vunpack.c.l.b16 %v34
  %v82 = vunpack.c.h.b16 %v34
  %v83 = vpack.c.b16 %v55, %v51
  %v84 = vpack.c.b16 %v56, %v52
  %v85 = vpack.c.b16 %v57, %v53
  %v86 = vpack.c.b16 %v58, %v54
  %v87 = vpack.c.b16 %v63, %v59
  %v88 = vpack.c.b16 %v64, %v60
  %v89 = vpack.c.b16 %v65, %v61
  %v90 = vpack.c.b16 %v66, %v62
  %v91 = vpack.c.b16 %v71, %v67
  %v92 = vpack.c.b16 %v72, %v68
  %v93 = vpack.c.b16 %v73, %v69
  %v94 = vpack.c.b16 %v74, %v70
  %v95 = vpack.c.b16 %v79, %v75
  %v96 = vpack.c.b16 %v80, %v76
  %v97 = vpack.c.b16 %v81, %v77
  %v98 = vpack.c.b16 %v82, %v78
  %vm115 = vcmask 523264
  %v117 = vsel %vm115, %v18, 0
  %119 = vmatprep.subr.bf16.mxu0 %v84
  %120 = vmatpush1.bf16.msra.mxu0 %v83
  %121 = vmatprep.subr.bf16.mxu0 %v88
  %122 = vmatpush1.bf16.msra.mxu0 %v87
  %123 = vmatprep.subr.bf16.mxu0 %v92
  %124 = vmatpush1.bf16.msra.mxu0 %v91
  %125 = vmatprep.subr.bf16.mxu0 %v96
  %126 = vmatpush1.bf16.msra.mxu0 %v95
  %127 = vmatprep.subr.bf16.mxu0 0
  %128 = vmatpush1.bf16.msra.mxu0 0
  %129 = vmatprep.subr.bf16.mxu0 0
  %130 = vmatpush1.bf16.msra.mxu0 0
  %131 = vmatprep.subr.bf16.mxu0 0
  %132 = vmatpush1.bf16.msra.mxu0 0
  %133 = vmatprep.subr.bf16.mxu0 0
  %134 = vmatpush1.bf16.msra.mxu0 0
  %135 = vmatprep.subr.bf16.mxu0 0
  %136 = vmatpush1.bf16.msra.mxu0 0
  %137 = vmatprep.subr.bf16.mxu0 0
  %138 = vmatpush1.bf16.msra.mxu0 0
  %139 = vmatprep.subr.bf16.mxu0 0
  %140 = vmatpush1.bf16.msra.mxu0 0
  %141 = vmatprep.subr.bf16.mxu0 0
  %142 = vmatpush1.bf16.msra.mxu0 0
  %143 = vmatprep.subr.bf16.mxu0 0
  %144 = vmatpush1.bf16.msra.mxu0 0
  %145 = vmatprep.subr.bf16.mxu0 0
  %146 = vmatpush1.bf16.msra.mxu0 0
  %147 = vmatprep.subr.bf16.mxu0 0
  %148 = vmatpush1.bf16.msra.mxu0 0
  %149 = vmatprep.subr.bf16.mxu0 0
  %150 = vmatpush1.bf16.msra.mxu0 0
  %151 = vmatprep.mubr.bf16.mxu0 0
  %152 = vmatmul.mubr.bf16.gmra.mrb[0].mxu0 %v117
  %v153 = vpop.f32.mrb[0].mxu0
  %v154 = vadd.f32 0.0, %v153
  %v155 = vpop.f32.mrb[0].mxu0
  %v156 = vadd.f32 0.0, %v155
  %v157 = vpop.f32.mrb[0].mxu0
  %v158 = vpop.f32.mrb[0].mxu0
  %159 = vdwg.mxu0
  %160 = vmatprep.subr.bf16.mxu0 %v86
  %161 = vmatpush1.bf16.msra.mxu0 %v85
  %162 = vmatprep.subr.bf16.mxu0 %v90
  %163 = vmatpush1.bf16.msra.mxu0 %v89
  %164 = vmatprep.subr.bf16.mxu0 %v94
  %165 = vmatpush1.bf16.msra.mxu0 %v93
  %166 = vmatprep.subr.bf16.mxu0 %v98
  %167 = vmatpush1.bf16.msra.mxu0 %v97
  %168 = vmatprep.subr.bf16.mxu0 0
  %169 = vmatpush1.bf16.msra.mxu0 0
  %170 = vmatprep.subr.bf16.mxu0 0
  %171 = vmatpush1.bf16.msra.mxu0 0
  %172 = vmatprep.subr.bf16.mxu0 0
  %173 = vmatpush1.bf16.msra.mxu0 0
  %174 = vmatprep.subr.bf16.mxu0 0
  %175 = vmatpush1.bf16.msra.mxu0 0
  %176 = vmatprep.subr.bf16.mxu0 0
  %177 = vmatpush1.bf16.msra.mxu0 0
  %178 = vmatprep.subr.bf16.mxu0 0
  %179 = vmatpush1.bf16.msra.mxu0 0
  %180 = vmatprep.subr.bf16.mxu0 0
  %181 = vmatpush1.bf16.msra.mxu0 0
  %182 = vmatprep.subr.bf16.mxu0 0
  %183 = vmatpush1.bf16.msra.mxu0 0
  %184 = vmatprep.subr.bf16.mxu0 0
  %185 = vmatpush1.bf16.msra.mxu0 0
  %186 = vmatprep.subr.bf16.mxu0 0
  %187 = vmatpush1.bf16.msra.mxu0 0
  %188 = vmatprep.subr.bf16.mxu0 0
  %189 = vmatpush1.bf16.msra.mxu0 0
  %190 = vmatprep.subr.bf16.mxu0 0
  %191 = vmatpush1.bf16.msra.mxu0 0
  %192 = vmatprep.mubr.bf16.mxu0 0
  %193 = vmatmul.mubr.bf16.gmra.mrb[0].mxu0 %v117
  %v194 = vpop.f32.mrb[0].mxu0
  %v195 = vadd.f32 0.0, %v194
  %v196 = vpop.f32.mrb[0].mxu0
  %v197 = vadd.f32 0.0, %v196
  %v198 = vpop.f32.mrb[0].mxu0
  %v199 = vpop.f32.mrb[0].mxu0
  %200 = vdwg.mxu0
  %s201 = scalar_lea.vmem %s1, 4
  %v202 = vld [vmem:[%s201] sm:$0xf]
  %s203 = scalar_lea.vmem %s0, 128
  %v204 = vld [vmem:[%s203] sm:$0xff]
  %v205 = vld [vmem:[%s203 + $0x8] sm:$0xff]
  %v206 = vld [vmem:[%s203 + $0x10] sm:$0xff]
  %v207 = vld [vmem:[%s203 + $0x18] sm:$0xff]
  %v208 = vld [vmem:[%s203 + $0x20] sm:$0xff]
  %v209 = vld [vmem:[%s203 + $0x28] sm:$0xff]
  %v210 = vld [vmem:[%s203 + $0x30] sm:$0xff]
  %v211 = vld [vmem:[%s203 + $0x38] sm:$0xff]
  %v212 = vld [vmem:[%s203 + $0x40] sm:$0xff]
  %v213 = vld [vmem:[%s203 + $0x48] sm:$0xff]
  %v214 = vld [vmem:[%s203 + $0x50] sm:$0xff]
  %v215 = vld [vmem:[%s203 + $0x58] sm:$0xff]
  %v216 = vld [vmem:[%s203 + $0x60] sm:$0xff]
  %v217 = vld [vmem:[%s203 + $0x68] sm:$0xff]
  %v218 = vld [vmem:[%s203 + $0x70] sm:$0xff]
  %v219 = vld [vmem:[%s203 + $0x78] sm:$0xff]
  %v236 = vunpack.c.l.b16 %v204
  %v237 = vunpack.c.h.b16 %v204
  %v238 = vunpack.c.l.b16 %v205
  %v239 = vunpack.c.h.b16 %v205
  %v240 = vunpack.c.l.b16 %v206
  %v241 = vunpack.c.h.b16 %v206
  %v242 = vunpack.c.l.b16 %v207
  %v243 = vunpack.c.h.b16 %v207
  %v244 = vunpack.c.l.b16 %v208
  %v245 = vunpack.c.h.b16 %v208
  %v246 = vunpack.c.l.b16 %v209
  %v247 = vunpack.c.h.b16 %v209
  %v248 = vunpack.c.l.b16 %v210
  %v249 = vunpack.c.h.b16 %v210
  %v250 = vunpack.c.l.b16 %v211
  %v251 = vunpack.c.h.b16 %v211
  %v252 = vunpack.c.l.b16 %v212
  %v253 = vunpack.c.h.b16 %v212
  %v254 = vunpack.c.l.b16 %v213
  %v255 = vunpack.c.h.b16 %v213
  %v256 = vunpack.c.l.b16 %v214
  %v257 = vunpack.c.h.b16 %v214
  %v258 = vunpack.c.l.b16 %v215
  %v259 = vunpack.c.h.b16 %v215
  %v260 = vunpack.c.l.b16 %v216
  %v261 = vunpack.c.h.b16 %v216
  %v262 = vunpack.c.l.b16 %v217
  %v263 = vunpack.c.h.b16 %v217
  %v264 = vunpack.c.l.b16 %v218
  %v265 = vunpack.c.h.b16 %v218
  %v266 = vunpack.c.l.b16 %v219
  %v267 = vunpack.c.h.b16 %v219
  %v268 = vpack.c.b16 %v240, %v236
  %v269 = vpack.c.b16 %v241, %v237
  %v270 = vpack.c.b16 %v242, %v238
  %v271 = vpack.c.b16 %v243, %v239
  %v272 = vpack.c.b16 %v248, %v244
  %v273 = vpack.c.b16 %v249, %v245
  %v274 = vpack.c.b16 %v250, %v246
  %v275 = vpack.c.b16 %v251, %v247
  %v276 = vpack.c.b16 %v256, %v252
  %v277 = vpack.c.b16 %v257, %v253
  %v278 = vpack.c.b16 %v258, %v254
  %v279 = vpack.c.b16 %v259, %v255
  %v280 = vpack.c.b16 %v264, %v260
  %v281 = vpack.c.b16 %v265, %v261
  %v282 = vpack.c.b16 %v266, %v262
  %v283 = vpack.c.b16 %v267, %v263
  %v301 = vsel %vm115, %v202, 0
  %303 = vmatprep.subr.bf16.mxu0 %v269
  %304 = vmatpush1.bf16.msra.mxu0 %v268
  %305 = vmatprep.subr.bf16.mxu0 %v273
  %306 = vmatpush1.bf16.msra.mxu0 %v272
  %307 = vmatprep.subr.bf16.mxu0 %v277
  %308 = vmatpush1.bf16.msra.mxu0 %v276
  %309 = vmatprep.subr.bf16.mxu0 %v281
  %310 = vmatpush1.bf16.msra.mxu0 %v280
  %311 = vmatprep.subr.bf16.mxu0 0
  %312 = vmatpush1.bf16.msra.mxu0 0
  %313 = vmatprep.subr.bf16.mxu0 0
  %314 = vmatpush1.bf16.msra.mxu0 0
  %315 = vmatprep.subr.bf16.mxu0 0
  %316 = vmatpush1.bf16.msra.mxu0 0
  %317 = vmatprep.subr.bf16.mxu0 0
  %318 = vmatpush1.bf16.msra.mxu0 0
  %319 = vmatprep.subr.bf16.mxu0 0
  %320 = vmatpush1.bf16.msra.mxu0 0
  %321 = vmatprep.subr.bf16.mxu0 0
  %322 = vmatpush1.bf16.msra.mxu0 0
  %323 = vmatprep.subr.bf16.mxu0 0
  %324 = vmatpush1.bf16.msra.mxu0 0
  %325 = vmatprep.subr.bf16.mxu0 0
  %326 = vmatpush1.bf16.msra.mxu0 0
  %327 = vmatprep.subr.bf16.mxu0 0
  %328 = vmatpush1.bf16.msra.mxu0 0
  %329 = vmatprep.subr.bf16.mxu0 0
  %330 = vmatpush1.bf16.msra.mxu0 0
  %331 = vmatprep.subr.bf16.mxu0 0
  %332 = vmatpush1.bf16.msra.mxu0 0
  %333 = vmatprep.subr.bf16.mxu0 0
  %334 = vmatpush1.bf16.msra.mxu0 0
  %335 = vmatprep.mubr.bf16.mxu0 0
  %336 = vmatmul.mubr.bf16.gmra.mrb[0].mxu0 %v301
  %v337 = vpop.f32.mrb[0].mxu0
  %v338 = vadd.f32 0.0, %v337
  %v339 = vpop.f32.mrb[0].mxu0
  %v340 = vadd.f32 0.0, %v339
  %v341 = vpop.f32.mrb[0].mxu0
  %v342 = vpop.f32.mrb[0].mxu0
  %343 = vdwg.mxu0
  %344 = vmatprep.subr.bf16.mxu0 %v271
  %345 = vmatpush1.bf16.msra.mxu0 %v270
  %346 = vmatprep.subr.bf16.mxu0 %v275
  %347 = vmatpush1.bf16.msra.mxu0 %v274
  %348 = vmatprep.subr.bf16.mxu0 %v279
  %349 = vmatpush1.bf16.msra.mxu0 %v278
  %350 = vmatprep.subr.bf16.mxu0 %v283
  %351 = vmatpush1.bf16.msra.mxu0 %v282
  %352 = vmatprep.subr.bf16.mxu0 0
  %353 = vmatpush1.bf16.msra.mxu0 0
  %354 = vmatprep.subr.bf16.mxu0 0
  %355 = vmatpush1.bf16.msra.mxu0 0
  %356 = vmatprep.subr.bf16.mxu0 0
  %357 = vmatpush1.bf16.msra.mxu0 0
  %358 = vmatprep.subr.bf16.mxu0 0
  %359 = vmatpush1.bf16.msra.mxu0 0
  %360 = vmatprep.subr.bf16.mxu0 0
  %361 = vmatpush1.bf16.msra.mxu0 0
  %362 = vmatprep.subr.bf16.mxu0 0
  %363 = vmatpush1.bf16.msra.mxu0 0
  %364 = vmatprep.subr.bf16.mxu0 0
  %365 = vmatpush1.bf16.msra.mxu0 0
  %366 = vmatprep.subr.bf16.mxu0 0
  %367 = vmatpush1.bf16.msra.mxu0 0
  %368 = vmatprep.subr.bf16.mxu0 0
  %369 = vmatpush1.bf16.msra.mxu0 0
  %370 = vmatprep.subr.bf16.mxu0 0
  %371 = vmatpush1.bf16.msra.mxu0 0
  %372 = vmatprep.subr.bf16.mxu0 0
  %373 = vmatpush1.bf16.msra.mxu0 0
  %374 = vmatprep.subr.bf16.mxu0 0
  %375 = vmatpush1.bf16.msra.mxu0 0
  %376 = vmatprep.mubr.bf16.mxu0 0
  %377 = vmatmul.mubr.bf16.gmra.mrb[0].mxu0 %v301
  %v378 = vpop.f32.mrb[0].mxu0
  %v379 = vadd.f32 0.0, %v378
  %v380 = vpop.f32.mrb[0].mxu0
  %v381 = vadd.f32 0.0, %v380
  %v382 = vpop.f32.mrb[0].mxu0
  %v383 = vpop.f32.mrb[0].mxu0
  %384 = vdwg.mxu0
  %s385 = scalar_lea.vmem %s1, 8
  %v386 = vld [vmem:[%s385] sm:$0xf]
  %s387 = scalar_lea.vmem %s0, 256
  %v388 = vld [vmem:[%s387] sm:$0xff]
  %v389 = vld [vmem:[%s387 + $0x8] sm:$0xff]
  %v390 = vld [vmem:[%s387 + $0x10] sm:$0xff]
  %v391 = vld [vmem:[%s387 + $0x18] sm:$0xff]
  %v392 = vld [vmem:[%s387 + $0x20] sm:$0xff]
  %v393 = vld [vmem:[%s387 + $0x28] sm:$0xff]
  %v394 = vld [vmem:[%s387 + $0x30] sm:$0xff]
  %v395 = vld [vmem:[%s387 + $0x38] sm:$0xff]
  %v396 = vld [vmem:[%s387 + $0x40] sm:$0xff]
  %v397 = vld [vmem:[%s387 + $0x48] sm:$0xff]
  %v398 = vld [vmem:[%s387 + $0x50] sm:$0xff]
  %v399 = vld [vmem:[%s387 + $0x58] sm:$0xff]
  %v400 = vld [vmem:[%s387 + $0x60] sm:$0xff]
  %v401 = vld [vmem:[%s387 + $0x68] sm:$0xff]
  %v402 = vld [vmem:[%s387 + $0x70] sm:$0xff]
  %v403 = vld [vmem:[%s387 + $0x78] sm:$0xff]
  %v420 = vunpack.c.l.b16 %v388
  %v421 = vunpack.c.h.b16 %v388
  %v422 = vunpack.c.l.b16 %v389
  %v423 = vunpack.c.h.b16 %v389
  %v424 = vunpack.c.l.b16 %v390
  %v425 = vunpack.c.h.b16 %v390
  %v426 = vunpack.c.l.b16 %v391
  %v427 = vunpack.c.h.b16 %v391
  %v428 = vunpack.c.l.b16 %v392
  %v429 = vunpack.c.h.b16 %v392
  %v430 = vunpack.c.l.b16 %v393
  %v431 = vunpack.c.h.b16 %v393
  %v432 = vunpack.c.l.b16 %v394
  %v433 = vunpack.c.h.b16 %v394
  %v434 = vunpack.c.l.b16 %v395
  %v435 = vunpack.c.h.b16 %v395
  %v436 = vunpack.c.l.b16 %v396
  %v437 = vunpack.c.h.b16 %v396
  %v438 = vunpack.c.l.b16 %v397
  %v439 = vunpack.c.h.b16 %v397
  %v440 = vunpack.c.l.b16 %v398
  %v441 = vunpack.c.h.b16 %v398
  %v442 = vunpack.c.l.b16 %v399
  %v443 = vunpack.c.h.b16 %v399
  %v444 = vunpack.c.l.b16 %v400
  %v445 = vunpack.c.h.b16 %v400
  %v446 = vunpack.c.l.b16 %v401
  %v447 = vunpack.c.h.b16 %v401
  %v448 = vunpack.c.l.b16 %v402
  %v449 = vunpack.c.h.b16 %v402
  %v450 = vunpack.c.l.b16 %v403
  %v451 = vunpack.c.h.b16 %v403
  %v452 = vpack.c.b16 %v424, %v420
  %v453 = vpack.c.b16 %v425, %v421
  %v454 = vpack.c.b16 %v426, %v422
  %v455 = vpack.c.b16 %v427, %v423
  %v456 = vpack.c.b16 %v432, %v428
  %v457 = vpack.c.b16 %v433, %v429
  %v458 = vpack.c.b16 %v434, %v430
  %v459 = vpack.c.b16 %v435, %v431
  %v460 = vpack.c.b16 %v440, %v436
  %v461 = vpack.c.b16 %v441, %v437
  %v462 = vpack.c.b16 %v442, %v438
  %v463 = vpack.c.b16 %v443, %v439
  %v464 = vpack.c.b16 %v448, %v444
  %v465 = vpack.c.b16 %v449, %v445
  %v466 = vpack.c.b16 %v450, %v446
  %v467 = vpack.c.b16 %v451, %v447
  %v485 = vsel %vm115, %v386, 0
  %487 = vmatprep.subr.bf16.mxu0 %v453
  %488 = vmatpush1.bf16.msra.mxu0 %v452
  %489 = vmatprep.subr.bf16.mxu0 %v457
  %490 = vmatpush1.bf16.msra.mxu0 %v456
  %491 = vmatprep.subr.bf16.mxu0 %v461
  %492 = vmatpush1.bf16.msra.mxu0 %v460
  %493 = vmatprep.subr.bf16.mxu0 %v465
  %494 = vmatpush1.bf16.msra.mxu0 %v464
  %495 = vmatprep.subr.bf16.mxu0 0
  %496 = vmatpush1.bf16.msra.mxu0 0
  %497 = vmatprep.subr.bf16.mxu0 0
  %498 = vmatpush1.bf16.msra.mxu0 0
  %499 = vmatprep.subr.bf16.mxu0 0
  %500 = vmatpush1.bf16.msra.mxu0 0
  %501 = vmatprep.subr.bf16.mxu0 0
  %502 = vmatpush1.bf16.msra.mxu0 0
  %503 = vmatprep.subr.bf16.mxu0 0
  %504 = vmatpush1.bf16.msra.mxu0 0
  %505 = vmatprep.subr.bf16.mxu0 0
  %506 = vmatpush1.bf16.msra.mxu0 0
  %507 = vmatprep.subr.bf16.mxu0 0
  %508 = vmatpush1.bf16.msra.mxu0 0
  %509 = vmatprep.subr.bf16.mxu0 0
  %510 = vmatpush1.bf16.msra.mxu0 0
  %511 = vmatprep.subr.bf16.mxu0 0
  %512 = vmatpush1.bf16.msra.mxu0 0
  %513 = vmatprep.subr.bf16.mxu0 0
  %514 = vmatpush1.bf16.msra.mxu0 0
  %515 = vmatprep.subr.bf16.mxu0 0
  %516 = vmatpush1.bf16.msra.mxu0 0
  %517 = vmatprep.subr.bf16.mxu0 0
  %518 = vmatpush1.bf16.msra.mxu0 0
  %519 = vmatprep.mubr.bf16.mxu0 0
  %520 = vmatmul.mubr.bf16.gmra.mrb[0].mxu0 %v485
  %v521 = vpop.f32.mrb[0].mxu0
  %v522 = vadd.f32 0.0, %v521
  %v523 = vpop.f32.mrb[0].mxu0
  %v524 = vadd.f32 0.0, %v523
  %v525 = vpop.f32.mrb[0].mxu0
  %v526 = vpop.f32.mrb[0].mxu0
  %527 = vdwg.mxu0
  %528 = vmatprep.subr.bf16.mxu0 %v455
  %529 = vmatpush1.bf16.msra.mxu0 %v454
  %530 = vmatprep.subr.bf16.mxu0 %v459
  %531 = vmatpush1.bf16.msra.mxu0 %v458
  %532 = vmatprep.subr.bf16.mxu0 %v463
  %533 = vmatpush1.bf16.msra.mxu0 %v462
  %534 = vmatprep.subr.bf16.mxu0 %v467
  %535 = vmatpush1.bf16.msra.mxu0 %v466
  %536 = vmatprep.subr.bf16.mxu0 0
  %537 = vmatpush1.bf16.msra.mxu0 0
  %538 = vmatprep.subr.bf16.mxu0 0
  %539 = vmatpush1.bf16.msra.mxu0 0
  %540 = vmatprep.subr.bf16.mxu0 0
  %541 = vmatpush1.bf16.msra.mxu0 0
  %542 = vmatprep.subr.bf16.mxu0 0
  %543 = vmatpush1.bf16.msra.mxu0 0
  %544 = vmatprep.subr.bf16.mxu0 0
  %545 = vmatpush1.bf16.msra.mxu0 0
  %546 = vmatprep.subr.bf16.mxu0 0
  %547 = vmatpush1.bf16.msra.mxu0 0
  %548 = vmatprep.subr.bf16.mxu0 0
  %549 = vmatpush1.bf16.msra.mxu0 0
  %550 = vmatprep.subr.bf16.mxu0 0
  %551 = vmatpush1.bf16.msra.mxu0 0
  %552 = vmatprep.subr.bf16.mxu0 0
  %553 = vmatpush1.bf16.msra.mxu0 0
  %554 = vmatprep.subr.bf16.mxu0 0
  %555 = vmatpush1.bf16.msra.mxu0 0
  %556 = vmatprep.subr.bf16.mxu0 0
  %557 = vmatpush1.bf16.msra.mxu0 0
  %558 = vmatprep.subr.bf16.mxu0 0
  %559 = vmatpush1.bf16.msra.mxu0 0
  %560 = vmatprep.mubr.bf16.mxu0 0
  %561 = vmatmul.mubr.bf16.gmra.mrb[0].mxu0 %v485
  %v562 = vpop.f32.mrb[0].mxu0
  %v563 = vadd.f32 0.0, %v562
  %v564 = vpop.f32.mrb[0].mxu0
  %v565 = vadd.f32 0.0, %v564
  %v566 = vpop.f32.mrb[0].mxu0
  %v567 = vpop.f32.mrb[0].mxu0
  %568 = vdwg.mxu0
  %s569 = scalar_lea.vmem %s1, 12
  %v570 = vld [vmem:[%s569] sm:$0xf]
  %s571 = scalar_lea.vmem %s0, 384
  %v572 = vld [vmem:[%s571] sm:$0xff]
  %v573 = vld [vmem:[%s571 + $0x8] sm:$0xff]
  %v574 = vld [vmem:[%s571 + $0x10] sm:$0xff]
  %v575 = vld [vmem:[%s571 + $0x18] sm:$0xff]
  %v576 = vld [vmem:[%s571 + $0x20] sm:$0xff]
  %v577 = vld [vmem:[%s571 + $0x28] sm:$0xff]
  %v578 = vld [vmem:[%s571 + $0x30] sm:$0xff]
  %v579 = vld [vmem:[%s571 + $0x38] sm:$0xff]
  %v580 = vld [vmem:[%s571 + $0x40] sm:$0xff]
  %v581 = vld [vmem:[%s571 + $0x48] sm:$0xff]
  %v582 = vld [vmem:[%s571 + $0x50] sm:$0xff]
  %v583 = vld [vmem:[%s571 + $0x58] sm:$0xff]
  %v584 = vld [vmem:[%s571 + $0x60] sm:$0xff]
  %v585 = vld [vmem:[%s571 + $0x68] sm:$0xff]
  %v586 = vld [vmem:[%s571 + $0x70] sm:$0xff]
  %v587 = vld [vmem:[%s571 + $0x78] sm:$0xff]
  %v604 = vunpack.c.l.b16 %v572
  %v605 = vunpack.c.h.b16 %v572
  %v606 = vunpack.c.l.b16 %v573
  %v607 = vunpack.c.h.b16 %v573
  %v608 = vunpack.c.l.b16 %v574
  %v609 = vunpack.c.h.b16 %v574
  %v610 = vunpack.c.l.b16 %v575
  %v611 = vunpack.c.h.b16 %v575
  %v612 = vunpack.c.l.b16 %v576
  %v613 = vunpack.c.h.b16 %v576
  %v614 = vunpack.c.l.b16 %v577
  %v615 = vunpack.c.h.b16 %v577
  %v616 = vunpack.c.l.b16 %v578
  %v617 = vunpack.c.h.b16 %v578
  %v618 = vunpack.c.l.b16 %v579
  %v619 = vunpack.c.h.b16 %v579
  %v620 = vunpack.c.l.b16 %v580
  %v621 = vunpack.c.h.b16 %v580
  %v622 = vunpack.c.l.b16 %v581
  %v623 = vunpack.c.h.b16 %v581
  %v624 = vunpack.c.l.b16 %v582
  %v625 = vunpack.c.h.b16 %v582
  %v626 = vunpack.c.l.b16 %v583
  %v627 = vunpack.c.h.b16 %v583
  %v628 = vunpack.c.l.b16 %v584
  %v629 = vunpack.c.h.b16 %v584
  %v630 = vunpack.c.l.b16 %v585
  %v631 = vunpack.c.h.b16 %v585
  %v632 = vunpack.c.l.b16 %v586
  %v633 = vunpack.c.h.b16 %v586
  %v634 = vunpack.c.l.b16 %v587
  %v635 = vunpack.c.h.b16 %v587
  %v636 = vpack.c.b16 %v608, %v604
  %v637 = vpack.c.b16 %v609, %v605
  %v638 = vpack.c.b16 %v610, %v606
  %v639 = vpack.c.b16 %v611, %v607
  %v640 = vpack.c.b16 %v616, %v612
  %v641 = vpack.c.b16 %v617, %v613
  %v642 = vpack.c.b16 %v618, %v614
  %v643 = vpack.c.b16 %v619, %v615
  %v644 = vpack.c.b16 %v624, %v620
  %v645 = vpack.c.b16 %v625, %v621
  %v646 = vpack.c.b16 %v626, %v622
  %v647 = vpack.c.b16 %v627, %v623
  %v648 = vpack.c.b16 %v632, %v628
  %v649 = vpack.c.b16 %v633, %v629
  %v650 = vpack.c.b16 %v634, %v630
  %v651 = vpack.c.b16 %v635, %v631
  %v669 = vsel %vm115, %v570, 0
  %671 = vmatprep.subr.bf16.mxu0 %v637
  %672 = vmatpush1.bf16.msra.mxu0 %v636
  %673 = vmatprep.subr.bf16.mxu0 %v641
  %674 = vmatpush1.bf16.msra.mxu0 %v640
  %675 = vmatprep.subr.bf16.mxu0 %v645
  %676 = vmatpush1.bf16.msra.mxu0 %v644
  %677 = vmatprep.subr.bf16.mxu0 %v649
  %678 = vmatpush1.bf16.msra.mxu0 %v648
  %679 = vmatprep.subr.bf16.mxu0 0
  %680 = vmatpush1.bf16.msra.mxu0 0
  %681 = vmatprep.subr.bf16.mxu0 0
  %682 = vmatpush1.bf16.msra.mxu0 0
  %683 = vmatprep.subr.bf16.mxu0 0
  %684 = vmatpush1.bf16.msra.mxu0 0
  %685 = vmatprep.subr.bf16.mxu0 0
  %686 = vmatpush1.bf16.msra.mxu0 0
  %687 = vmatprep.subr.bf16.mxu0 0
  %688 = vmatpush1.bf16.msra.mxu0 0
  %689 = vmatprep.subr.bf16.mxu0 0
  %690 = vmatpush1.bf16.msra.mxu0 0
  %691 = vmatprep.subr.bf16.mxu0 0
  %692 = vmatpush1.bf16.msra.mxu0 0
  %693 = vmatprep.subr.bf16.mxu0 0
  %694 = vmatpush1.bf16.msra.mxu0 0
  %695 = vmatprep.subr.bf16.mxu0 0
  %696 = vmatpush1.bf16.msra.mxu0 0
  %697 = vmatprep.subr.bf16.mxu0 0
  %698 = vmatpush1.bf16.msra.mxu0 0
  %699 = vmatprep.subr.bf16.mxu0 0
  %700 = vmatpush1.bf16.msra.mxu0 0
  %701 = vmatprep.subr.bf16.mxu0 0
  %702 = vmatpush1.bf16.msra.mxu0 0
  %703 = vmatprep.mubr.bf16.mxu0 0
  %704 = vmatmul.mubr.bf16.gmra.mrb[0].mxu0 %v669
  %v705 = vpop.f32.mrb[0].mxu0
  %v706 = vadd.f32 0.0, %v705
  %v707 = vpop.f32.mrb[0].mxu0
  %v708 = vadd.f32 0.0, %v707
  %v709 = vpop.f32.mrb[0].mxu0
  %v710 = vpop.f32.mrb[0].mxu0
  %711 = vdwg.mxu0
  %712 = vmatprep.subr.bf16.mxu0 %v639
  %713 = vmatpush1.bf16.msra.mxu0 %v638
  %714 = vmatprep.subr.bf16.mxu0 %v643
  %715 = vmatpush1.bf16.msra.mxu0 %v642
  %716 = vmatprep.subr.bf16.mxu0 %v647
  %717 = vmatpush1.bf16.msra.mxu0 %v646
  %718 = vmatprep.subr.bf16.mxu0 %v651
  %719 = vmatpush1.bf16.msra.mxu0 %v650
  %720 = vmatprep.subr.bf16.mxu0 0
  %721 = vmatpush1.bf16.msra.mxu0 0
  %722 = vmatprep.subr.bf16.mxu0 0
  %723 = vmatpush1.bf16.msra.mxu0 0
  %724 = vmatprep.subr.bf16.mxu0 0
  %725 = vmatpush1.bf16.msra.mxu0 0
  %726 = vmatprep.subr.bf16.mxu0 0
  %727 = vmatpush1.bf16.msra.mxu0 0
  %728 = vmatprep.subr.bf16.mxu0 0
  %729 = vmatpush1.bf16.msra.mxu0 0
  %730 = vmatprep.subr.bf16.mxu0 0
  %731 = vmatpush1.bf16.msra.mxu0 0
  %732 = vmatprep.subr.bf16.mxu0 0
  %733 = vmatpush1.bf16.msra.mxu0 0
  %734 = vmatprep.subr.bf16.mxu0 0
  %735 = vmatpush1.bf16.msra.mxu0 0
  %736 = vmatprep.subr.bf16.mxu0 0
  %737 = vmatpush1.bf16.msra.mxu0 0
  %738 = vmatprep.subr.bf16.mxu0 0
  %739 = vmatpush1.bf16.msra.mxu0 0
  %740 = vmatprep.subr.bf16.mxu0 0
  %741 = vmatpush1.bf16.msra.mxu0 0
  %742 = vmatprep.subr.bf16.mxu0 0
  %743 = vmatpush1.bf16.msra.mxu0 0
  %744 = vmatprep.mubr.bf16.mxu0 0
  %745 = vmatmul.mubr.bf16.gmra.mrb[0].mxu0 %v669
  %v746 = vpop.f32.mrb[0].mxu0
  %v747 = vadd.f32 0.0, %v746
  %v748 = vpop.f32.mrb[0].mxu0
  %v749 = vadd.f32 0.0, %v748
  %v750 = vpop.f32.mrb[0].mxu0
  %v751 = vpop.f32.mrb[0].mxu0
  %752 = vdwg.mxu0
  %v753 = vadd.f32 %v154, %v156
  %v754 = vadd.f32 %v753, %v195
  %v755 = vadd.f32 %v754, %v197
  %756 = vadd.xlane.f32.xlu0 %v755
  %v757 = vpop.xlane.xlu0 %756
  %v758 = vadd.f32 %v757, 0.0
  %v759 = vadd.f32 %v338, %v340
  %v760 = vadd.f32 %v759, %v379
  %v761 = vadd.f32 %v760, %v381
  %762 = vadd.xlane.f32.xlu0 %v761
  %v763 = vpop.xlane.xlu0 %762
  %v764 = vadd.f32 %v758, %v763
  %v765 = vadd.f32 %v522, %v524
  %v766 = vadd.f32 %v765, %v563
  %v767 = vadd.f32 %v766, %v565
  %768 = vadd.xlane.f32.xlu0 %v767
  %v769 = vpop.xlane.xlu0 %768
  %v770 = vadd.f32 %v764, %v769
  %v771 = vadd.f32 %v706, %v708
  %v772 = vadd.f32 %v771, %v747
  %v773 = vadd.f32 %v772, %v749
  %774 = vadd.xlane.f32.xlu0 %v773
  %v775 = vpop.xlane.xlu0 %774
  %v776 = vadd.f32 %v770, %v775
  %v777 = vrcp.pop 2048.0
  %v778 = vmul.f32 %v776, %v777
  %v779 = vsub.f32 %v154, %v778
  %v780 = vsub.f32 %v156, %v778
  %v781 = vsub.f32 %v195, %v778
  %v782 = vsub.f32 %v197, %v778
  %v783 = vmul.f32 %v779, %v779
  %v784 = vmul.f32 %v780, %v780
  %v785 = vmul.f32 %v781, %v781
  %v786 = vmul.f32 %v782, %v782
  %v787 = vadd.f32 %v783, %v784
  %v788 = vadd.f32 %v787, %v785
  %v789 = vadd.f32 %v788, %v786
  %790 = vadd.xlane.f32.xlu0 %v789
  %v791 = vpop.xlane.xlu0 %790
  %v792 = vadd.f32 %v791, 0.0
  %v793 = vsub.f32 %v338, %v778
  %v794 = vsub.f32 %v340, %v778
  %v795 = vsub.f32 %v379, %v778
  %v796 = vsub.f32 %v381, %v778
  %v797 = vmul.f32 %v793, %v793
  %v798 = vmul.f32 %v794, %v794
  %v799 = vmul.f32 %v795, %v795
  %v800 = vmul.f32 %v796, %v796
  %v801 = vadd.f32 %v797, %v798
  %v802 = vadd.f32 %v801, %v799
  %v803 = vadd.f32 %v802, %v800
  %804 = vadd.xlane.f32.xlu0 %v803
  %v805 = vpop.xlane.xlu0 %804
  %v806 = vadd.f32 %v792, %v805
  %v807 = vsub.f32 %v522, %v778
  %v808 = vsub.f32 %v524, %v778
  %v809 = vsub.f32 %v563, %v778
  %v810 = vsub.f32 %v565, %v778
  %v811 = vmul.f32 %v807, %v807
  %v812 = vmul.f32 %v808, %v808
  %v813 = vmul.f32 %v809, %v809
  %v814 = vmul.f32 %v810, %v810
  %v815 = vadd.f32 %v811, %v812
  %v816 = vadd.f32 %v815, %v813
  %v817 = vadd.f32 %v816, %v814
  %818 = vadd.xlane.f32.xlu0 %v817
  %v819 = vpop.xlane.xlu0 %818
  %v820 = vadd.f32 %v806, %v819
  %v821 = vsub.f32 %v706, %v778
  %v822 = vsub.f32 %v708, %v778
  %v823 = vsub.f32 %v747, %v778
  %v824 = vsub.f32 %v749, %v778
  %v825 = vmul.f32 %v821, %v821
  %v826 = vmul.f32 %v822, %v822
  %v827 = vmul.f32 %v823, %v823
  %v828 = vmul.f32 %v824, %v824
  %v829 = vadd.f32 %v825, %v826
  %v830 = vadd.f32 %v829, %v827
  %v831 = vadd.f32 %v830, %v828
  %832 = vadd.xlane.f32.xlu0 %v831
  %v833 = vpop.xlane.xlu0 %832
  %v834 = vadd.f32 %v820, %v833
  %v835 = vmul.f32 %v834, %v777
  %v836 = vld [vmem:[%s2] sm:$0xff]
  %v837 = vadd.f32 %v835, 1e-05
  %v838 = vrsqrt.pop %v837
  %v839 = vmul.f32 %v836, %v838
  %v840 = vld [vmem:[%s3] sm:$0xff]
  %v841 = vmul.f32 %v839, %v778
  %v842 = vsub.f32 %v840, %v841
  %844 = vset.pattern.permute.xlu0 0
  %845 = vperm.xlu0 %844, %v839
  %v846 = vpop.permute.xlu0 %845
  %v848 = vmul.f32 %v846, %v154
  %v849 = vmul.f32 %v846, %v156
  %v850 = vmul.f32 %v846, %v195
  %v851 = vmul.f32 %v846, %v197
  %853 = vset.pattern.permute.xlu0 0
  %854 = vperm.xlu0 %853, %v842
  %v855 = vpop.permute.xlu0 %854
  %v857 = vadd.f32 %v848, %v855
  %v858 = vadd.f32 %v849, %v855
  %v859 = vadd.f32 %v850, %v855
  %v860 = vadd.f32 %v851, %v855
  %vm861 = vcmp.ge.f32.partialorder %v857, 0.0
  %vm862 = vcmp.ge.f32.partialorder %v858, 0.0
  %vm863 = vcmp.ge.f32.partialorder %v859, 0.0
  %vm864 = vcmp.ge.f32.partialorder %v860, 0.0
  %v865 = vmul.f32 %v857, 0.2
  %v866 = vmul.f32 %v858, 0.2
  %v867 = vmul.f32 %v859, 0.2
  %v868 = vmul.f32 %v860, 0.2
  %v869 = vsel %vm861, %v857, %v865
  %v870 = vsel %vm862, %v858, %v866
  %v871 = vsel %vm863, %v859, %v867
  %v872 = vsel %vm864, %v860, %v868
  %v873 = vpack.c.bf16 %v869, %v869
  %v874 = vpack.c.bf16 %v870, %v870
  %v875 = vpack.c.bf16 %v871, %v871
  %v876 = vpack.c.bf16 %v872, %v872
  %v881 = vunpack.c.l.b16 %v873
  %v882 = vunpack.c.l.b16 %v874
  %v883 = vunpack.c.l.b16 %v875
  %v884 = vunpack.c.l.b16 %v876
  %v885 = vpack.c.b16 %v882, %v881
  %v886 = vpack.c.b16 %v884, %v883
  %889 = vst [vmem:[%s4] sm:$0xff] %v885
  %890 = vst [vmem:[%s4 + $0x8] sm:$0xff] %v886
  %v891 = vmul.f32 %v846, %v338
  %v892 = vmul.f32 %v846, %v340
  %v893 = vmul.f32 %v846, %v379
  %v894 = vmul.f32 %v846, %v381
  %v895 = vadd.f32 %v891, %v855
  %v896 = vadd.f32 %v892, %v855
  %v897 = vadd.f32 %v893, %v855
  %v898 = vadd.f32 %v894, %v855
  %vm899 = vcmp.ge.f32.partialorder %v895, 0.0
  %vm900 = vcmp.ge.f32.partialorder %v896, 0.0
  %vm901 = vcmp.ge.f32.partialorder %v897, 0.0
  %vm902 = vcmp.ge.f32.partialorder %v898, 0.0
  %v903 = vmul.f32 %v895, 0.2
  %v904 = vmul.f32 %v896, 0.2
  %v905 = vmul.f32 %v897, 0.2
  %v906 = vmul.f32 %v898, 0.2
  %v907 = vsel %vm899, %v895, %v903
  %v908 = vsel %vm900, %v896, %v904
  %v909 = vsel %vm901, %v897, %v905
  %v910 = vsel %vm902, %v898, %v906
  %v911 = vpack.c.bf16 %v907, %v907
  %v912 = vpack.c.bf16 %v908, %v908
  %v913 = vpack.c.bf16 %v909, %v909
  %v914 = vpack.c.bf16 %v910, %v910
  %v919 = vunpack.c.l.b16 %v911
  %v920 = vunpack.c.l.b16 %v912
  %v921 = vunpack.c.l.b16 %v913
  %v922 = vunpack.c.l.b16 %v914
  %v923 = vpack.c.b16 %v920, %v919
  %v924 = vpack.c.b16 %v922, %v921
  %s927 = scalar_lea.vmem %s4, 16
  %928 = vst [vmem:[%s927] sm:$0xff] %v923
  %929 = vst [vmem:[%s927 + $0x8] sm:$0xff] %v924
  %v930 = vmul.f32 %v846, %v522
  %v931 = vmul.f32 %v846, %v524
  %v932 = vmul.f32 %v846, %v563
  %v933 = vmul.f32 %v846, %v565
  %v934 = vadd.f32 %v930, %v855
  %v935 = vadd.f32 %v931, %v855
  %v936 = vadd.f32 %v932, %v855
  %v937 = vadd.f32 %v933, %v855
  %vm938 = vcmp.ge.f32.partialorder %v934, 0.0
  %vm939 = vcmp.ge.f32.partialorder %v935, 0.0
  %vm940 = vcmp.ge.f32.partialorder %v936, 0.0
  %vm941 = vcmp.ge.f32.partialorder %v937, 0.0
  %v942 = vmul.f32 %v934, 0.2
  %v943 = vmul.f32 %v935, 0.2
  %v944 = vmul.f32 %v936, 0.2
  %v945 = vmul.f32 %v937, 0.2
  %v946 = vsel %vm938, %v934, %v942
  %v947 = vsel %vm939, %v935, %v943
  %v948 = vsel %vm940, %v936, %v944
  %v949 = vsel %vm941, %v937, %v945
  %v950 = vpack.c.bf16 %v946, %v946
  %v951 = vpack.c.bf16 %v947, %v947
  %v952 = vpack.c.bf16 %v948, %v948
  %v953 = vpack.c.bf16 %v949, %v949
  %v958 = vunpack.c.l.b16 %v950
  %v959 = vunpack.c.l.b16 %v951
  %v960 = vunpack.c.l.b16 %v952
  %v961 = vunpack.c.l.b16 %v953
  %v962 = vpack.c.b16 %v959, %v958
  %v963 = vpack.c.b16 %v961, %v960
  %s966 = scalar_lea.vmem %s4, 32
  %967 = vst [vmem:[%s966] sm:$0xff] %v962
  %968 = vst [vmem:[%s966 + $0x8] sm:$0xff] %v963
  %v969 = vmul.f32 %v846, %v706
  %v970 = vmul.f32 %v846, %v708
  %v971 = vmul.f32 %v846, %v747
  %v972 = vmul.f32 %v846, %v749
  %v973 = vadd.f32 %v969, %v855
  %v974 = vadd.f32 %v970, %v855
  %v975 = vadd.f32 %v971, %v855
  %v976 = vadd.f32 %v972, %v855
  %vm977 = vcmp.ge.f32.partialorder %v973, 0.0
  %vm978 = vcmp.ge.f32.partialorder %v974, 0.0
  %vm979 = vcmp.ge.f32.partialorder %v975, 0.0
  %vm980 = vcmp.ge.f32.partialorder %v976, 0.0
  %v981 = vmul.f32 %v973, 0.2
  %v982 = vmul.f32 %v974, 0.2
  %v983 = vmul.f32 %v975, 0.2
  %v984 = vmul.f32 %v976, 0.2
  %v985 = vsel %vm977, %v973, %v981
  %v986 = vsel %vm978, %v974, %v982
  %v987 = vsel %vm979, %v975, %v983
  %v988 = vsel %vm980, %v976, %v984
  %v989 = vpack.c.bf16 %v985, %v985
  %v990 = vpack.c.bf16 %v986, %v986
  %v991 = vpack.c.bf16 %v987, %v987
  %v992 = vpack.c.bf16 %v988, %v988
  %v997 = vunpack.c.l.b16 %v989
  %v998 = vunpack.c.l.b16 %v990
  %v999 = vunpack.c.l.b16 %v991
  %v1000 = vunpack.c.l.b16 %v992
  %v1001 = vpack.c.b16 %v998, %v997
  %v1002 = vpack.c.b16 %v1000, %v999
  %s1005 = scalar_lea.vmem %s4, 48
  %1006 = vst [vmem:[%s1005] sm:$0xff] %v1001
  %1007 = vst [vmem:[%s1005 + $0x8] sm:$0xff] %v1002
  // Predicated region
  $region18: #{generator_forward.8} parent=0 // pred_check
    _
  $region19: #{generator_forward.8} parent=0 // pred_check_branch
    %1009 = sbr.rel (0) target = $region21
  $region20: #{generator_forward.8} parent=0 // pred_region
    _
  $region21: #{generator_forward.8} parent=0 // pred_fallthru
    _
  // Predicated region
  $region22: #{generator_forward.8} parent=0 // pred_check
    _
  $region23: #{generator_forward.8} parent=0 // pred_check_branch
    %1011 = sbr.rel (0) target = $region25
  $region24: #{generator_forward.8} parent=0 // pred_region
    _
  $region25: #{generator_forward.8} parent=0 // pred_fallthru
    _

// kernel: generator_forward.9
$region0: #{generator_forward.9}
  #allocation0 [shape = 'u32[]', space=smem, size = 0x4, offset = 0x4, fixed_abs, tag = 'smem constant byte address 0x4 - core index']
  #allocation1 [shape = 'u32[144,128]{1,0:T(1,128)}', space=vmem, size = 0x12000, scoped, tag = 'internal scratch']
  #allocation2 [shape = 'f32[1,1]{1,0:T(1,128)S(1)}', space=vmem, size = 0x200, scoped, tag = 'scoped memory for generator_forward.9']
  %s0 = inlined_call_operand.vmem [shape: bf16[4,32,2048], index: 0, kind: input, shape index: {}]
  %s1 = inlined_call_operand.vmem [shape: bf16[4,1,32], index: 1, kind: input, shape index: {}]
  %s2 = inlined_call_operand.<no memory space> [shape: f32[1,1], index: 2, kind: input, shape index: {}]
  %s3 = inlined_call_operand.vmem [shape: f32[4,1,2048], index: 3, kind: output, shape index: {}]
  %s4 = sld [smem:[#allocation0]]
  $region45: #{generator_forward.9} parent=0
    _
  %s6 = ssub.s32 1, %s4
  %s7 = scalar_select 0, %s6, %s4
  %v8 = vstv %s2
  %9 = vst [vmem:[#allocation2] sm:$0x1] %v8
  loop: start=0, step=1, limit=6
  $region2: #{generator_forward.9} parent=0 // loop_pre_header
    _
  $region3: #{generator_forward.9} parent=0 // loop_header
    %s11 = sphi 0, %s15
    %p12 = scmp.ge.s32.totalorder %s11, 6
    %s21 = sphi 0, %s23
    %s24 = sphi 0, %s21
    %s25 = sphi 0, %s24
    %s41 = sphi 0, %s25
    %s47 = sphi 0, %s49
    %s50 = sphi 0, %s47
    %s51 = sphi 0, %s50
    %s67 = sphi 0, %s51
    %s71 = sphi 0, %s71
    %s73 = sphi 0, %s71
    %s74 = sphi 0, %s73
    %s88 = sphi 0, %s74
    %s94 = sphi 0, %s96
    %s97 = sphi 0, %s94
    %s98 = sphi 0, %s97
    %s114 = sphi 0, %s98
  $region4: #{generator_forward.9} parent=0 // loop_header_branch
    %14 = sbr.rel (%p12) target = $region8
  $region5: #{generator_forward.9} parent=0 // loop_body
    %s16 = ssub.s32 %s11, 1
    %s17 = ssub.s32 %s11, 2
    %s18 = sadd.s32 %s11, 1
    %s19 = ssub.s32 %s11, %s18
    %p20 = scmp.eq.s32.totalorder %s19, 0
    %s22 = sadd.s32 %s21, 1
    %s23 = scalar_select %p20, %s21, %s22
    %p26 = pneg %p20
    %p27 = scmp.eq.s32.totalorder %s11, 3
    %p28 = por %p26, %p27
    %p29 = scmp.ne.s32.totalorder %s21, %s24
    %p30 = scmp.eq.s32.totalorder %s11, 0
    %p31 = por %p29, %p30
    %p32 = scmp.ne.s32.totalorder %s21, %s24
    %p33 = scmp.eq.s32.totalorder %s16, 3
    %p34 = por %p32, %p33
    %p35 = scmp.ne.s32.totalorder %s24, %s25
    %p36 = scmp.eq.s32.totalorder %s16, 0
    %p37 = por %p35, %p36
    %p38 = scmp.ne.s32.totalorder %s24, %s25
    %p39 = scmp.eq.s32.totalorder %s17, 3
    %p40 = por %p38, %p39
    %p42 = scmp.ne.s32.totalorder %s25, %s41
    %p43 = scmp.eq.s32.totalorder %s17, 0
    %p44 = por %p42, %p43
    %s45 = ssub.s32 %s11, %s18
    %p46 = scmp.eq.s32.totalorder %s45, 0
    %s48 = sadd.s32 %s47, 1
    %s49 = scalar_select %p46, %s47, %s48
    %p52 = pneg %p46
    %p53 = scmp.eq.s32.totalorder %s11, 3
    %p54 = por %p52, %p53
    %p55 = scmp.ne.s32.totalorder %s47, %s50
    %p56 = scmp.eq.s32.totalorder %s11, 0
    %p57 = por %p55, %p56
    %p58 = scmp.ne.s32.totalorder %s47, %s50
    %p59 = scmp.eq.s32.totalorder %s16, 3
    %p60 = por %p58, %p59
    %p61 = scmp.ne.s32.totalorder %s50, %s51
    %p62 = scmp.eq.s32.totalorder %s16, 0
    %p63 = por %p61, %p62
    %p64 = scmp.ne.s32.totalorder %s50, %s51
    %p65 = scmp.eq.s32.totalorder %s17, 3
    %p66 = por %p64, %p65
    %p68 = scmp.ne.s32.totalorder %s51, %s67
    %p69 = scmp.eq.s32.totalorder %s17, 0
    %p70 = por %p68, %p69
    %s72 = sadd.s32 %s71, 1
    %p75 = scmp.eq.s32.totalorder %s11, 3
    %p76 = scmp.ne.s32.totalorder %s71, %s73
    %p77 = scmp.eq.s32.totalorder %s11, 0
    %p78 = por %p76, %p77
    %p79 = scmp.ne.s32.totalorder %s71, %s73
    %p80 = scmp.eq.s32.totalorder %s16, 3
    %p81 = por %p79, %p80
    %p82 = scmp.ne.s32.totalorder %s73, %s74
    %p83 = scmp.eq.s32.totalorder %s16, 0
    %p84 = por %p82, %p83
    %p85 = scmp.ne.s32.totalorder %s73, %s74
    %p86 = scmp.eq.s32.totalorder %s17, 3
    %p87 = por %p85, %p86
    %p89 = scmp.ne.s32.totalorder %s74, %s88
    %p90 = scmp.eq.s32.totalorder %s17, 0
    %p91 = por %p89, %p90
    %s92 = ssub.s32 %s11, %s18
    %p93 = scmp.eq.s32.totalorder %s92, 0
    %s95 = sadd.s32 %s94, 1
    %s96 = scalar_select %p93, %s94, %s95
    %p99 = pneg %p93
    %p100 = scmp.eq.s32.totalorder %s11, 3
    %p101 = por %p99, %p100
    %p102 = scmp.ne.s32.totalorder %s94, %s97
    %p103 = scmp.eq.s32.totalorder %s11, 0
    %p104 = por %p102, %p103
    %p105 = scmp.ne.s32.totalorder %s94, %s97
    %p106 = scmp.eq.s32.totalorder %s16, 3
    %p107 = por %p105, %p106
    %p108 = scmp.ne.s32.totalorder %s97, %s98
    %p109 = scmp.eq.s32.totalorder %s16, 0
    %p110 = por %p108, %p109
    %p111 = scmp.ne.s32.totalorder %s97, %s98
    %p112 = scmp.eq.s32.totalorder %s17, 3
    %p113 = por %p111, %p112
    %p115 = scmp.ne.s32.totalorder %s98, %s114
    %p116 = scmp.eq.s32.totalorder %s17, 0
    %p117 = por %p115, %p116
    %p118 = scmp.le.s32.totalorder 1, %s11
    %p119 = scmp.lt.s32.totalorder %s11, 5
    %p120 = pnand %p118, %p119
    %p121 = pneg %p120
    // Predicated region
    $region9: #{generator_forward.9} parent=5 // pred_check
      _
    $region10: #{generator_forward.9} parent=5 // pred_check_branch
      %123 = sbr.rel (%p120) target = $region12
    $region11: #{generator_forward.9} parent=5 // pred_region
      %s124 = ssub.s32 %s11, 1
      // Predicated region
      $region13: #{generator_forward.9} parent=11 // pred_check
        %p125 = pneg %p84
      $region14: #{generator_forward.9} parent=11 // pred_check_branch
        %127 = sbr.rel (%p125) target = $region16
      $region15: #{generator_forward.9} parent=11 // pred_region
        _
      $region16: #{generator_forward.9} parent=11 // pred_fallthru
        _
    $region12: #{generator_forward.9} parent=5 // pred_fallthru
      _
    %p128 = scmp.lt.s32.totalorder %s11, 4
    // Predicated region
    $region17: #{generator_forward.9} parent=5 // pred_check
      %p129 = pneg %p128
    $region18: #{generator_forward.9} parent=5 // pred_check_branch
      %131 = sbr.rel (%p129) target = $region20
    $region19: #{generator_forward.9} parent=5 // pred_region
      // Predicated region
      $region21: #{generator_forward.9} parent=19 // pred_check
        %p132 = pneg %p31
      $region22: #{generator_forward.9} parent=19 // pred_check_branch
        %134 = sbr.rel (%p132) target = $region24
      $region23: #{generator_forward.9} parent=19 // pred_region
        %p135 = scmp.lt.s32.totalorder %s11, 3
        %s136 = scalar_select %p135, %s11, 3
        %s137 = smul.addr %s136, 64
        %s138 = smul.addr %s137, 4
        %s139 = scalar_lea.vmem %s0, %s138
      $region24: #{generator_forward.9} parent=19 // pred_fallthru
        _
      // Predicated region
      $region25: #{generator_forward.9} parent=19 // pred_check
        %p140 = pneg %p57
      $region26: #{generator_forward.9} parent=19 // pred_check_branch
        %142 = sbr.rel (%p140) target = $region28
      $region27: #{generator_forward.9} parent=19 // pred_region
        %p143 = scmp.lt.s32.totalorder %s11, 3
        %s144 = scalar_select %p143, %s11, 3
        %s145 = scalar_lea.vmem %s1, %s144
      $region28: #{generator_forward.9} parent=19 // pred_fallthru
        _
    $region20: #{generator_forward.9} parent=5 // pred_fallthru
      _
    %p146 = scmp.le.s32.totalorder 1, %s11
    %p147 = scmp.lt.s32.totalorder %s11, 5
    %p148 = pnand %p146, %p147
    %p149 = pneg %p148
    // Predicated region
    $region29: #{generator_forward.9} parent=5 // pred_check
      _
    $region30: #{generator_forward.9} parent=5 // pred_check_branch
      %151 = sbr.rel (%p148) target = $region32
    $region31: #{generator_forward.9} parent=5 // pred_region
      %s152 = ssub.s32 %s11, 1
      %p153 = scmp.lt.s32.totalorder %s16, 3
      %s154 = scalar_select %p153, %s16, 3
      %s155 = smul.addr %s154, 64
      %s156 = smul.addr %s155, 4
      %s157 = scalar_lea.vmem %s0, %s156
      %p158 = pneg %p37
      %p159 = pneg %p34
      %p160 = scmp.lt.s32.totalorder %s16, 3
      %s161 = scalar_select %p160, %s16, 3
      %s162 = scalar_lea.vmem %s1, %s161
      %p163 = pneg %p63
      %p164 = pneg %p60
      %p165 = pneg %p84
      %p166 = pneg %p81
      %p167 = pneg %p110
      %p168 = pneg %p107
      %p169 = scmp.lt.s32.totalorder %s16, 3
      %s170 = scalar_select %p169, %s16, 3
      %s171 = smul.addr %s170, 16
      %s172 = scalar_lea.vmem %s3, %s171
      %p173 = scmp.lt.s32.totalorder %s16, 3
      %s174 = scalar_select %p173, %s16, 3
      %s175 = smul.addr %s174, 64
      %s176 = smul.addr %s175, 4
      %s177 = scalar_lea.vmem %s0, %s176
      %p178 = scmp.lt.s32.totalorder %s16, 3
      %s179 = scalar_select %p178, %s16, 3
      %s180 = scalar_lea.vmem %s1, %s179
      %p181 = scmp.lt.s32.totalorder %s16, 3
      %s182 = scalar_select %p181, %s16, 3
      %s183 = smul.addr %s182, 16
      %s184 = scalar_lea.vmem %s3, %s183
      %v186 = vld [vmem:[%s180] sm:$0x1]
      %v187 = vld [vmem:[%s177] sm:$0xff]
      %v188 = vld [vmem:[%s177 + $0x8] sm:$0xff]
      %v189 = vld [vmem:[%s177 + $0x10] sm:$0xff]
      %v190 = vld [vmem:[%s177 + $0x18] sm:$0xff]
      %v191 = vld [vmem:[%s177 + $0x20] sm:$0xff]
      %v192 = vld [vmem:[%s177 + $0x28] sm:$0xff]
      %v193 = vld [vmem:[%s177 + $0x30] sm:$0xff]
      %v194 = vld [vmem:[%s177 + $0x38] sm:$0xff]
      %v195 = vld [vmem:[%s177 + $0x40] sm:$0xff]
      %v196 = vld [vmem:[%s177 + $0x48] sm:$0xff]
      %v197 = vld [vmem:[%s177 + $0x50] sm:$0xff]
      %v198 = vld [vmem:[%s177 + $0x58] sm:$0xff]
      %v199 = vld [vmem:[%s177 + $0x60] sm:$0xff]
      %v200 = vld [vmem:[%s177 + $0x68] sm:$0xff]
      %v201 = vld [vmem:[%s177 + $0x70] sm:$0xff]
      %v202 = vld [vmem:[%s177 + $0x78] sm:$0xff]
      %v203 = vld [vmem:[%s177 + $0x80] sm:$0xff]
      %v204 = vld [vmem:[%s177 + $0x88] sm:$0xff]
      %v205 = vld [vmem:[%s177 + $0x90] sm:$0xff]
      %v206 = vld [vmem:[%s177 + $0x98] sm:$0xff]
      %v207 = vld [vmem:[%s177 + $0xa0] sm:$0xff]
      %v208 = vld [vmem:[%s177 + $0xa8] sm:$0xff]
      %v209 = vld [vmem:[%s177 + $0xb0] sm:$0xff]
      %v210 = vld [vmem:[%s177 + $0xb8] sm:$0xff]
      %v211 = vld [vmem:[%s177 + $0xc0] sm:$0xff]
      %v212 = vld [vmem:[%s177 + $0xc8] sm:$0xff]
      %v213 = vld [vmem:[%s177 + $0xd0] sm:$0xff]
      %v214 = vld [vmem:[%s177 + $0xd8] sm:$0xff]
      %v215 = vld [vmem:[%s177 + $0xe0] sm:$0xff]
      %v216 = vld [vmem:[%s177 + $0xe8] sm:$0xff]
      %v217 = vld [vmem:[%s177 + $0xf0] sm:$0xff]
      %v218 = vld [vmem:[%s177 + $0xf8] sm:$0xff]
      %v219 = vld [vmem:[#allocation2] sm:$0x1]
      %221 = vset.pattern.permute.xlu0 0
      %222 = vperm.xlu0 %221, %v219
      %v223 = vpop.permute.xlu0 %222
      %v225 = vlaneseq
      %v226 = vshrl.u32 %v225, 7
      %v227 = vsub.s32 0, %v226
      %v228 = vrot.slane %v223, %v227
      %v261 = vunpack.c.l.b16 %v187
      %v262 = vunpack.c.h.b16 %v187
      %v263 = vunpack.c.l.b16 %v188
      %v264 = vunpack.c.h.b16 %v188
      %v265 = vunpack.c.l.b16 %v189
      %v266 = vunpack.c.h.b16 %v189
      %v267 = vunpack.c.l.b16 %v190
      %v268 = vunpack.c.h.b16 %v190
      %v269 = vunpack.c.l.b16 %v191
      %v270 = vunpack.c.h.b16 %v191
      %v271 = vunpack.c.l.b16 %v192
      %v272 = vunpack.c.h.b16 %v192
      %v273 = vunpack.c.l.b16 %v193
      %v274 = vunpack.c.h.b16 %v193
      %v275 = vunpack.c.l.b16 %v194
      %v276 = vunpack.c.h.b16 %v194
      %v277 = vunpack.c.l.b16 %v195
      %v278 = vunpack.c.h.b16 %v195
      %v279 = vunpack.c.l.b16 %v196
      %v280 = vunpack.c.h.b16 %v196
      %v281 = vunpack.c.l.b16 %v197
      %v282 = vunpack.c.h.b16 %v197
      %v283 = vunpack.c.l.b16 %v198
      %v284 = vunpack.c.h.b16 %v198
      %v285 = vunpack.c.l.b16 %v199
      %v286 = vunpack.c.h.b16 %v199
      %v287 = vunpack.c.l.b16 %v200
      %v288 = vunpack.c.h.b16 %v200
      %v289 = vunpack.c.l.b16 %v201
      %v290 = vunpack.c.h.b16 %v201
      %v291 = vunpack.c.l.b16 %v202
      %v292 = vunpack.c.h.b16 %v202
      %v293 = vunpack.c.l.b16 %v203
      %v294 = vunpack.c.h.b16 %v203
      %v295 = vunpack.c.l.b16 %v204
      %v296 = vunpack.c.h.b16 %v204
      %v297 = vunpack.c.l.b16 %v205
      %v298 = vunpack.c.h.b16 %v205
      %v299 = vunpack.c.l.b16 %v206
      %v300 = vunpack.c.h.b16 %v206
      %v301 = vunpack.c.l.b16 %v207
      %v302 = vunpack.c.h.b16 %v207
      %v303 = vunpack.c.l.b16 %v208
      %v304 = vunpack.c.h.b16 %v208
      %v305 = vunpack.c.l.b16 %v209
      %v306 = vunpack.c.h.b16 %v209
      %v307 = vunpack.c.l.b16 %v210
      %v308 = vunpack.c.h.b16 %v210
      %v309 = vunpack.c.l.b16 %v211
      %v310 = vunpack.c.h.b16 %v211
      %v311 = vunpack.c.l.b16 %v212
      %v312 = vunpack.c.h.b16 %v212
      %v313 = vunpack.c.l.b16 %v213
      %v314 = vunpack.c.h.b16 %v213
      %v315 = vunpack.c.l.b16 %v214
      %v316 = vunpack.c.h.b16 %v214
      %v317 = vunpack.c.l.b16 %v215
      %v318 = vunpack.c.h.b16 %v215
      %v319 = vunpack.c.l.b16 %v216
      %v320 = vunpack.c.h.b16 %v216
      %v321 = vunpack.c.l.b16 %v217
      %v322 = vunpack.c.h.b16 %v217
      %v323 = vunpack.c.l.b16 %v218
      %v324 = vunpack.c.h.b16 %v218
      %v325 = vpack.c.b16 %v277, %v261
      %v326 = vpack.c.b16 %v278, %v262
      %v327 = vpack.c.b16 %v279, %v263
      %v328 = vpack.c.b16 %v280, %v264
      %v329 = vpack.c.b16 %v281, %v265
      %v330 = vpack.c.b16 %v282, %v266
      %v331 = vpack.c.b16 %v283, %v267
      %v332 = vpack.c.b16 %v284, %v268
      %v333 = vpack.c.b16 %v285, %v269
      %v334 = vpack.c.b16 %v286, %v270
      %v335 = vpack.c.b16 %v287, %v271
      %v336 = vpack.c.b16 %v288, %v272
      %v337 = vpack.c.b16 %v289, %v273
      %v338 = vpack.c.b16 %v290, %v274
      %v339 = vpack.c.b16 %v291, %v275
      %v340 = vpack.c.b16 %v292, %v276
      %v341 = vpack.c.b16 %v309, %v293
      %v342 = vpack.c.b16 %v310, %v294
      %v343 = vpack.c.b16 %v311, %v295
      %v344 = vpack.c.b16 %v312, %v296
      %v345 = vpack.c.b16 %v313, %v297
      %v346 = vpack.c.b16 %v314, %v298
      %v347 = vpack.c.b16 %v315, %v299
      %v348 = vpack.c.b16 %v316, %v300
      %v349 = vpack.c.b16 %v317, %v301
      %v350 = vpack.c.b16 %v318, %v302
      %v351 = vpack.c.b16 %v319, %v303
      %v352 = vpack.c.b16 %v320, %v304
      %v353 = vpack.c.b16 %v321, %v305
      %v354 = vpack.c.b16 %v322, %v306
      %v355 = vpack.c.b16 %v323, %v307
      %v356 = vpack.c.b16 %v324, %v308
      %vm389 = vcmask 261120
      %v391 = vsel %vm389, %v186, 0
      %393 = vmatprep.subr.bf16.mxu0 %v326
      %394 = vmatpush1.bf16.msra.mxu0 %v325
      %395 = vmatprep.subr.bf16.mxu0 %v342
      %396 = vmatpush1.bf16.msra.mxu0 %v341
      %397 = vmatprep.subr.bf16.mxu0 0
      %398 = vmatpush1.bf16.msra.mxu0 0
      %399 = vmatprep.subr.bf16.mxu0 0
      %400 = vmatpush1.bf16.msra.mxu0 0
      %401 = vmatprep.subr.bf16.mxu0 0
      %402 = vmatpush1.bf16.msra.mxu0 0
      %403 = vmatprep.subr.bf16.mxu0 0
      %404 = vmatpush1.bf16.msra.mxu0 0
      %405 = vmatprep.subr.bf16.mxu0 0
      %406 = vmatpush1.bf16.msra.mxu0 0
      %407 = vmatprep.subr.bf16.mxu0 0
      %408 = vmatpush1.bf16.msra.mxu0 0
      %409 = vmatprep.subr.bf16.mxu0 0
      %410 = vmatpush1.bf16.msra.mxu0 0
      %411 = vmatprep.subr.bf16.mxu0 0
      %412 = vmatpush1.bf16.msra.mxu0 0
      %413 = vmatprep.subr.bf16.mxu0 0
      %414 = vmatpush1.bf16.msra.mxu0 0
      %415 = vmatprep.subr.bf16.mxu0 0
      %416 = vmatpush1.bf16.msra.mxu0 0
      %417 = vmatprep.subr.bf16.mxu0 0
      %418 = vmatpush1.bf16.msra.mxu0 0
      %419 = vmatprep.subr.bf16.mxu0 0
      %420 = vmatpush1.bf16.msra.mxu0 0
      %421 = vmatprep.subr.bf16.mxu0 0
      %422 = vmatpush1.bf16.msra.mxu0 0
      %423 = vmatprep.subr.bf16.mxu0 0
      %424 = vmatpush1.bf16.msra.mxu0 0
      %425 = vmatprep.mubr.bf16.mxu0 0
      %426 = vmatmul.mubr.bf16.gmra.mrb[0].mxu0 %v391
      %v427 = vpop.f32.mrb[0].mxu0
      %v428 = vadd.f32 %v228, %v427
      %v429 = vpop.f32.mrb[0].mxu0
      %v430 = vadd.f32 %v228, %v429
      %v431 = vpop.f32.mrb[0].mxu0
      %v432 = vpop.f32.mrb[0].mxu0
      %433 = vdwg.mxu0
      %434 = vmatprep.subr.bf16.mxu0 %v328
      %435 = vmatpush1.bf16.msra.mxu0 %v327
      %436 = vmatprep.subr.bf16.mxu0 %v344
      %437 = vmatpush1.bf16.msra.mxu0 %v343
      %438 = vmatprep.subr.bf16.mxu0 0
      %439 = vmatpush1.bf16.msra.mxu0 0
      %440 = vmatprep.subr.bf16.mxu0 0
      %441 = vmatpush1.bf16.msra.mxu0 0
      %442 = vmatprep.subr.bf16.mxu0 0
      %443 = vmatpush1.bf16.msra.mxu0 0
      %444 = vmatprep.subr.bf16.mxu0 0
      %445 = vmatpush1.bf16.msra.mxu0 0
      %446 = vmatprep.subr.bf16.mxu0 0
      %447 = vmatpush1.bf16.msra.mxu0 0
      %448 = vmatprep.subr.bf16.mxu0 0
      %449 = vmatpush1.bf16.msra.mxu0 0
      %450 = vmatprep.subr.bf16.mxu0 0
      %451 = vmatpush1.bf16.msra.mxu0 0
      %452 = vmatprep.subr.bf16.mxu0 0
      %453 = vmatpush1.bf16.msra.mxu0 0
      %454 = vmatprep.subr.bf16.mxu0 0
      %455 = vmatpush1.bf16.msra.mxu0 0
      %456 = vmatprep.subr.bf16.mxu0 0
      %457 = vmatpush1.bf16.msra.mxu0 0
      %458 = vmatprep.subr.bf16.mxu0 0
      %459 = vmatpush1.bf16.msra.mxu0 0
      %460 = vmatprep.subr.bf16.mxu0 0
      %461 = vmatpush1.bf16.msra.mxu0 0
      %462 = vmatprep.subr.bf16.mxu0 0
      %463 = vmatpush1.bf16.msra.mxu0 0
      %464 = vmatprep.subr.bf16.mxu0 0
      %465 = vmatpush1.bf16.msra.mxu0 0
      %466 = vmatprep.mubr.bf16.mxu0 0
      %467 = vmatmul.mubr.bf16.gmra.mrb[0].mxu0 %v391
      %v468 = vpop.f32.mrb[0].mxu0
      %v469 = vadd.f32 %v228, %v468
      %v470 = vpop.f32.mrb[0].mxu0
      %v471 = vadd.f32 %v228, %v470
      %v472 = vpop.f32.mrb[0].mxu0
      %v473 = vpop.f32.mrb[0].mxu0
      %474 = vdwg.mxu0
      %475 = vmatprep.subr.bf16.mxu0 %v330
      %476 = vmatpush1.bf16.msra.mxu0 %v329
      %477 = vmatprep.subr.bf16.mxu0 %v346
      %478 = vmatpush1.bf16.msra.mxu0 %v345
      %479 = vmatprep.subr.bf16.mxu0 0
      %480 = vmatpush1.bf16.msra.mxu0 0
      %481 = vmatprep.subr.bf16.mxu0 0
      %482 = vmatpush1.bf16.msra.mxu0 0
      %483 = vmatprep.subr.bf16.mxu0 0
      %484 = vmatpush1.bf16.msra.mxu0 0
      %485 = vmatprep.subr.bf16.mxu0 0
      %486 = vmatpush1.bf16.msra.mxu0 0
      %487 = vmatprep.subr.bf16.mxu0 0
      %488 = vmatpush1.bf16.msra.mxu0 0
      %489 = vmatprep.subr.bf16.mxu0 0
      %490 = vmatpush1.bf16.msra.mxu0 0
      %491 = vmatprep.subr.bf16.mxu0 0
      %492 = vmatpush1.bf16.msra.mxu0 0
      %493 = vmatprep.subr.bf16.mxu0 0
      %494 = vmatpush1.bf16.msra.mxu0 0
      %495 = vmatprep.subr.bf16.mxu0 0
      %496 = vmatpush1.bf16.msra.mxu0 0
      %497 = vmatprep.subr.bf16.mxu0 0
      %498 = vmatpush1.bf16.msra.mxu0 0
      %499 = vmatprep.subr.bf16.mxu0 0
      %500 = vmatpush1.bf16.msra.mxu0 0
      %501 = vmatprep.subr.bf16.mxu0 0
      %502 = vmatpush1.bf16.msra.mxu0 0
      %503 = vmatprep.subr.bf16.mxu0 0
      %504 = vmatpush1.bf16.msra.mxu0 0
      %505 = vmatprep.subr.bf16.mxu0 0
      %506 = vmatpush1.bf16.msra.mxu0 0
      %507 = vmatprep.mubr.bf16.mxu0 0
      %508 = vmatmul.mubr.bf16.gmra.mrb[0].mxu0 %v391
      %v509 = vpop.f32.mrb[0].mxu0
      %v510 = vadd.f32 %v228, %v509
      %v511 = vpop.f32.mrb[0].mxu0
      %v512 = vadd.f32 %v228, %v511
      %v513 = vpop.f32.mrb[0].mxu0
      %v514 = vpop.f32.mrb[0].mxu0
      %515 = vdwg.mxu0
      %516 = vmatprep.subr.bf16.mxu0 %v332
      %517 = vmatpush1.bf16.msra.mxu0 %v331
      %518 = vmatprep.subr.bf16.mxu0 %v348
      %519 = vmatpush1.bf16.msra.mxu0 %v347
      %520 = vmatprep.subr.bf16.mxu0 0
      %521 = vmatpush1.bf16.msra.mxu0 0
      %522 = vmatprep.subr.bf16.mxu0 0
      %523 = vmatpush1.bf16.msra.mxu0 0
      %524 = vmatprep.subr.bf16.mxu0 0
      %525 = vmatpush1.bf16.msra.mxu0 0
      %526 = vmatprep.subr.bf16.mxu0 0
      %527 = vmatpush1.bf16.msra.mxu0 0
      %528 = vmatprep.subr.bf16.mxu0 0
      %529 = vmatpush1.bf16.msra.mxu0 0
      %530 = vmatprep.subr.bf16.mxu0 0
      %531 = vmatpush1.bf16.msra.mxu0 0
      %532 = vmatprep.subr.bf16.mxu0 0
      %533 = vmatpush1.bf16.msra.mxu0 0
      %534 = vmatprep.subr.bf16.mxu0 0
      %535 = vmatpush1.bf16.msra.mxu0 0
      %536 = vmatprep.subr.bf16.mxu0 0
      %537 = vmatpush1.bf16.msra.mxu0 0
      %538 = vmatprep.subr.bf16.mxu0 0
      %539 = vmatpush1.bf16.msra.mxu0 0
      %540 = vmatprep.subr.bf16.mxu0 0
      %541 = vmatpush1.bf16.msra.mxu0 0
      %542 = vmatprep.subr.bf16.mxu0 0
      %543 = vmatpush1.bf16.msra.mxu0 0
      %544 = vmatprep.subr.bf16.mxu0 0
      %545 = vmatpush1.bf16.msra.mxu0 0
      %546 = vmatprep.subr.bf16.mxu0 0
      %547 = vmatpush1.bf16.msra.mxu0 0
      %548 = vmatprep.mubr.bf16.mxu0 0
      %549 = vmatmul.mubr.bf16.gmra.mrb[0].mxu0 %v391
      %v550 = vpop.f32.mrb[0].mxu0
      %v551 = vadd.f32 %v228, %v550
      %v552 = vpop.f32.mrb[0].mxu0
      %v553 = vadd.f32 %v228, %v552
      %v554 = vpop.f32.mrb[0].mxu0
      %v555 = vpop.f32.mrb[0].mxu0
      %556 = vdwg.mxu0
      %557 = vmatprep.subr.bf16.mxu0 %v334
      %558 = vmatpush1.bf16.msra.mxu0 %v333
      %559 = vmatprep.subr.bf16.mxu0 %v350
      %560 = vmatpush1.bf16.msra.mxu0 %v349
      %561 = vmatprep.subr.bf16.mxu0 0
      %562 = vmatpush1.bf16.msra.mxu0 0
      %563 = vmatprep.subr.bf16.mxu0 0
      %564 = vmatpush1.bf16.msra.mxu0 0
      %565 = vmatprep.subr.bf16.mxu0 0
      %566 = vmatpush1.bf16.msra.mxu0 0
      %567 = vmatprep.subr.bf16.mxu0 0
      %568 = vmatpush1.bf16.msra.mxu0 0
      %569 = vmatprep.subr.bf16.mxu0 0
      %570 = vmatpush1.bf16.msra.mxu0 0
      %571 = vmatprep.subr.bf16.mxu0 0
      %572 = vmatpush1.bf16.msra.mxu0 0
      %573 = vmatprep.subr.bf16.mxu0 0
      %574 = vmatpush1.bf16.msra.mxu0 0
      %575 = vmatprep.subr.bf16.mxu0 0
      %576 = vmatpush1.bf16.msra.mxu0 0
      %577 = vmatprep.subr.bf16.mxu0 0
      %578 = vmatpush1.bf16.msra.mxu0 0
      %579 = vmatprep.subr.bf16.mxu0 0
      %580 = vmatpush1.bf16.msra.mxu0 0
      %581 = vmatprep.subr.bf16.mxu0 0
      %582 = vmatpush1.bf16.msra.mxu0 0
      %583 = vmatprep.subr.bf16.mxu0 0
      %584 = vmatpush1.bf16.msra.mxu0 0
      %585 = vmatprep.subr.bf16.mxu0 0
      %586 = vmatpush1.bf16.msra.mxu0 0
      %587 = vmatprep.subr.bf16.mxu0 0
      %588 = vmatpush1.bf16.msra.mxu0 0
      %589 = vmatprep.mubr.bf16.mxu0 0
      %590 = vmatmul.mubr.bf16.gmra.mrb[0].mxu0 %v391
      %v591 = vpop.f32.mrb[0].mxu0
      %v592 = vadd.f32 %v228, %v591
      %v593 = vpop.f32.mrb[0].mxu0
      %v594 = vadd.f32 %v228, %v593
      %v595 = vpop.f32.mrb[0].mxu0
      %v596 = vpop.f32.mrb[0].mxu0
      %597 = vdwg.mxu0
      %598 = vmatprep.subr.bf16.mxu0 %v336
      %599 = vmatpush1.bf16.msra.mxu0 %v335
      %600 = vmatprep.subr.bf16.mxu0 %v352
      %601 = vmatpush1.bf16.msra.mxu0 %v351
      %602 = vmatprep.subr.bf16.mxu0 0
      %603 = vmatpush1.bf16.msra.mxu0 0
      %604 = vmatprep.subr.bf16.mxu0 0
      %605 = vmatpush1.bf16.msra.mxu0 0
      %606 = vmatprep.subr.bf16.mxu0 0
      %607 = vmatpush1.bf16.msra.mxu0 0
      %608 = vmatprep.subr.bf16.mxu0 0
      %609 = vmatpush1.bf16.msra.mxu0 0
      %610 = vmatprep.subr.bf16.mxu0 0
      %611 = vmatpush1.bf16.msra.mxu0 0
      %612 = vmatprep.subr.bf16.mxu0 0
      %613 = vmatpush1.bf16.msra.mxu0 0
      %614 = vmatprep.subr.bf16.mxu0 0
      %615 = vmatpush1.bf16.msra.mxu0 0
      %616 = vmatprep.subr.bf16.mxu0 0
      %617 = vmatpush1.bf16.msra.mxu0 0
      %618 = vmatprep.subr.bf16.mxu0 0
      %619 = vmatpush1.bf16.msra.mxu0 0
      %620 = vmatprep.subr.bf16.mxu0 0
      %621 = vmatpush1.bf16.msra.mxu0 0
      %622 = vmatprep.subr.bf16.mxu0 0
      %623 = vmatpush1.bf16.msra.mxu0 0
      %624 = vmatprep.subr.bf16.mxu0 0
      %625 = vmatpush1.bf16.msra.mxu0 0
      %626 = vmatprep.subr.bf16.mxu0 0
      %627 = vmatpush1.bf16.msra.mxu0 0
      %628 = vmatprep.subr.bf16.mxu0 0
      %629 = vmatpush1.bf16.msra.mxu0 0
      %630 = vmatprep.mubr.bf16.mxu0 0
      %631 = vmatmul.mubr.bf16.gmra.mrb[0].mxu0 %v391
      %v632 = vpop.f32.mrb[0].mxu0
      %v633 = vadd.f32 %v228, %v632
      %v634 = vpop.f32.mrb[0].mxu0
      %v635 = vadd.f32 %v228, %v634
      %v636 = vpop.f32.mrb[0].mxu0
      %v637 = vpop.f32.mrb[0].mxu0
      %638 = vdwg.mxu0
      %639 = vmatprep.subr.bf16.mxu0 %v338
      %640 = vmatpush1.bf16.msra.mxu0 %v337
      %641 = vmatprep.subr.bf16.mxu0 %v354
      %642 = vmatpush1.bf16.msra.mxu0 %v353
      %643 = vmatprep.subr.bf16.mxu0 0
      %644 = vmatpush1.bf16.msra.mxu0 0
      %645 = vmatprep.subr.bf16.mxu0 0
      %646 = vmatpush1.bf16.msra.mxu0 0
      %647 = vmatprep.subr.bf16.mxu0 0
      %648 = vmatpush1.bf16.msra.mxu0 0
      %649 = vmatprep.subr.bf16.mxu0 0
      %650 = vmatpush1.bf16.msra.mxu0 0
      %651 = vmatprep.subr.bf16.mxu0 0
      %652 = vmatpush1.bf16.msra.mxu0 0
      %653 = vmatprep.subr.bf16.mxu0 0
      %654 = vmatpush1.bf16.msra.mxu0 0
      %655 = vmatprep.subr.bf16.mxu0 0
      %656 = vmatpush1.bf16.msra.mxu0 0
      %657 = vmatprep.subr.bf16.mxu0 0
      %658 = vmatpush1.bf16.msra.mxu0 0
      %659 = vmatprep.subr.bf16.mxu0 0
      %660 = vmatpush1.bf16.msra.mxu0 0
      %661 = vmatprep.subr.bf16.mxu0 0
      %662 = vmatpush1.bf16.msra.mxu0 0
      %663 = vmatprep.subr.bf16.mxu0 0
      %664 = vmatpush1.bf16.msra.mxu0 0
      %665 = vmatprep.subr.bf16.mxu0 0
      %666 = vmatpush1.bf16.msra.mxu0 0
      %667 = vmatprep.subr.bf16.mxu0 0
      %668 = vmatpush1.bf16.msra.mxu0 0
      %669 = vmatprep.subr.bf16.mxu0 0
      %670 = vmatpush1.bf16.msra.mxu0 0
      %671 = vmatprep.mubr.bf16.mxu0 0
      %672 = vmatmul.mubr.bf16.gmra.mrb[0].mxu0 %v391
      %v673 = vpop.f32.mrb[0].mxu0
      %v674 = vadd.f32 %v228, %v673
      %v675 = vpop.f32.mrb[0].mxu0
      %v676 = vadd.f32 %v228, %v675
      %v677 = vpop.f32.mrb[0].mxu0
      %v678 = vpop.f32.mrb[0].mxu0
      %679 = vdwg.mxu0
      %680 = vmatprep.subr.bf16.mxu0 %v340
      %681 = vmatpush1.bf16.msra.mxu0 %v339
      %682 = vmatprep.subr.bf16.mxu0 %v356
      %683 = vmatpush1.bf16.msra.mxu0 %v355
      %684 = vmatprep.subr.bf16.mxu0 0
      %685 = vmatpush1.bf16.msra.mxu0 0
      %686 = vmatprep.subr.bf16.mxu0 0
      %687 = vmatpush1.bf16.msra.mxu0 0
      %688 = vmatprep.subr.bf16.mxu0 0
      %689 = vmatpush1.bf16.msra.mxu0 0
      %690 = vmatprep.subr.bf16.mxu0 0
      %691 = vmatpush1.bf16.msra.mxu0 0
      %692 = vmatprep.subr.bf16.mxu0 0
      %693 = vmatpush1.bf16.msra.mxu0 0
      %694 = vmatprep.subr.bf16.mxu0 0
      %695 = vmatpush1.bf16.msra.mxu0 0
      %696 = vmatprep.subr.bf16.mxu0 0
      %697 = vmatpush1.bf16.msra.mxu0 0
      %698 = vmatprep.subr.bf16.mxu0 0
      %699 = vmatpush1.bf16.msra.mxu0 0
      %700 = vmatprep.subr.bf16.mxu0 0
      %701 = vmatpush1.bf16.msra.mxu0 0
      %702 = vmatprep.subr.bf16.mxu0 0
      %703 = vmatpush1.bf16.msra.mxu0 0
      %704 = vmatprep.subr.bf16.mxu0 0
      %705 = vmatpush1.bf16.msra.mxu0 0
      %706 = vmatprep.subr.bf16.mxu0 0
      %707 = vmatpush1.bf16.msra.mxu0 0
      %708 = vmatprep.subr.bf16.mxu0 0
      %709 = vmatpush1.bf16.msra.mxu0 0
      %710 = vmatprep.subr.bf16.mxu0 0
      %711 = vmatpush1.bf16.msra.mxu0 0
      %712 = vmatprep.mubr.bf16.mxu0 0
      %713 = vmatmul.mubr.bf16.gmra.mrb[0].mxu0 %v391
      %v714 = vpop.f32.mrb[0].mxu0
      %v715 = vadd.f32 %v228, %v714
      %v716 = vpop.f32.mrb[0].mxu0
      %v717 = vadd.f32 %v228, %v716
      %v718 = vpop.f32.mrb[0].mxu0
      %v719 = vpop.f32.mrb[0].mxu0
      %720 = vdwg.mxu0
      %v721 = vtanh.pop %v428
      %v722 = vtanh.pop %v430
      %v723 = vtanh.pop %v469
      %v724 = vtanh.pop %v471
      %v725 = vtanh.pop %v510
      %v726 = vtanh.pop %v512
      %v727 = vtanh.pop %v551
      %v728 = vtanh.pop %v553
      %v729 = vtanh.pop %v592
      %v730 = vtanh.pop %v594
      %v731 = vtanh.pop %v633
      %v732 = vtanh.pop %v635
      %v733 = vtanh.pop %v674
      %v734 = vtanh.pop %v676
      %v735 = vtanh.pop %v715
      %v736 = vtanh.pop %v717
      %v753 = vcombine.low %v721, %v722
      %v754 = vcombine.low %v723, %v724
      %v755 = vcombine.low %v725, %v726
      %v756 = vcombine.low %v727, %v728
      %v758 = vunpack.c.l.s4 1966171168
      %v759 = vunpack.c.0.s8 %v758
      %v760 = vlaneseq
      %v761 = vshrl.u32 %v760, 7
      %v762 = vsub.s32 %v759, %v761
      %v763 = vrot.slane %v753, %v762
      %v765 = vunpack.c.l.s4 1966171168
      %v766 = vunpack.c.0.s8 %v765
      %v767 = vlaneseq
      %v768 = vshrl.u32 %v767, 7
      %v769 = vsub.s32 %v766, %v768
      %v770 = vrot.slane %v754, %v769
      %v772 = vunpack.c.l.s4 1966171168
      %v773 = vunpack.c.0.s8 %v772
      %v774 = vlaneseq
      %v775 = vshrl.u32 %v774, 7
      %v776 = vsub.s32 %v773, %v775
      %v777 = vrot.slane %v755, %v776
      %v779 = vunpack.c.l.s4 1966171168
      %v780 = vunpack.c.0.s8 %v779
      %v781 = vlaneseq
      %v782 = vshrl.u32 %v781, 7
      %v783 = vsub.s32 %v780, %v782
      %v784 = vrot.slane %v756, %v783
      %v785 = vcombine.low %v763, %v770
      %v786 = vcombine.low %v777, %v784
      %v788 = vunpack.c.l.s4 1966171168
      %v789 = vunpack.c.0.s8 %v788
      %v790 = vlaneseq
      %v791 = vshrl.u32 %v790, 7
      %v792 = vsub.s32 %v789, %v791
      %v793 = vrot.slane %v785, %v792
      %v795 = vunpack.c.l.s4 1966171168
      %v796 = vunpack.c.0.s8 %v795
      %v797 = vlaneseq
      %v798 = vshrl.u32 %v797, 7
      %v799 = vsub.s32 %v796, %v798
      %v800 = vrot.slane %v786, %v799
      %v801 = vcombine.low %v793, %v800
      %v802 = vcombine.low %v729, %v730
      %v803 = vcombine.low %v731, %v732
      %v804 = vcombine.low %v733, %v734
      %v805 = vcombine.low %v735, %v736
      %v807 = vunpack.c.l.s4 1966171168
      %v808 = vunpack.c.0.s8 %v807
      %v809 = vlaneseq
      %v810 = vshrl.u32 %v809, 7
      %v811 = vsub.s32 %v808, %v810
      %v812 = vrot.slane %v802, %v811
      %v814 = vunpack.c.l.s4 1966171168
      %v815 = vunpack.c.0.s8 %v814
      %v816 = vlaneseq
      %v817 = vshrl.u32 %v816, 7
      %v818 = vsub.s32 %v815, %v817
      %v819 = vrot.slane %v803, %v818
      %v821 = vunpack.c.l.s4 1966171168
      %v822 = vunpack.c.0.s8 %v821
      %v823 = vlaneseq
      %v824 = vshrl.u32 %v823, 7
      %v825 = vsub.s32 %v822, %v824
      %v826 = vrot.slane %v804, %v825
      %v828 = vunpack.c.l.s4 1966171168
      %v829 = vunpack.c.0.s8 %v828
      %v830 = vlaneseq
      %v831 = vshrl.u32 %v830, 7
      %v832 = vsub.s32 %v829, %v831
      %v833 = vrot.slane %v805, %v832
      %v834 = vcombine.low %v812, %v819
      %v835 = vcombine.low %v826, %v833
      %v837 = vunpack.c.l.s4 1966171168
      %v838 = vunpack.c.0.s8 %v837
      %v839 = vlaneseq
      %v840 = vshrl.u32 %v839, 7
      %v841 = vsub.s32 %v838, %v840
      %v842 = vrot.slane %v834, %v841
      %v844 = vunpack.c.l.s4 1966171168
      %v845 = vunpack.c.0.s8 %v844
      %v846 = vlaneseq
      %v847 = vshrl.u32 %v846, 7
      %v848 = vsub.s32 %v845, %v847
      %v849 = vrot.slane %v835, %v848
      %v850 = vcombine.low %v842, %v849
      %853 = vst [vmem:[%s184] sm:$0xff] %v801
      %854 = vst [vmem:[%s184 + $0x8] sm:$0xff] %v850
      %p855 = scmp.lt.s32.totalorder %s16, 3
      %s856 = scalar_select %p855, %s16, 3
      %s857 = smul.addr %s856, 16
      %s858 = scalar_lea.vmem %s3, %s857
      // Predicated region
      $region33: #{generator_forward.9} parent=31 // pred_check
        %p859 = pneg %p107
      $region34: #{generator_forward.9} parent=31 // pred_check_branch
        %861 = sbr.rel (%p859) target = $region36
      $region35: #{generator_forward.9} parent=31 // pred_region
        _
      $region36: #{generator_forward.9} parent=31 // pred_fallthru
        _
    $region32: #{generator_forward.9} parent=5 // pred_fallthru
      _
    %p862 = scmp.le.s32.totalorder 2, %s11
    // Predicated region
    $region37: #{generator_forward.9} parent=5 // pred_check
      %p863 = pneg %p862
    $region38: #{generator_forward.9} parent=5 // pred_check_branch
      %865 = sbr.rel (%p863) target = $region40
    $region39: #{generator_forward.9} parent=5 // pred_region
      %s866 = ssub.s32 %s11, 2
      // Predicated region
      $region41: #{generator_forward.9} parent=39 // pred_check
        %p867 = pneg %p113
      $region42: #{generator_forward.9} parent=39 // pred_check_branch
        %869 = sbr.rel (%p867) target = $region44
      $region43: #{generator_forward.9} parent=39 // pred_region
        %p870 = scmp.lt.s32.totalorder %s17, 3
        %s871 = scalar_select %p870, %s17, 3
        %s872 = smul.addr %s871, 16
        %s873 = scalar_lea.vmem %s3, %s872
      $region44: #{generator_forward.9} parent=39 // pred_fallthru
        _
    $region40: #{generator_forward.9} parent=5 // pred_fallthru
      _
  $region6: #{generator_forward.9} parent=0 // loop_footer
    %s15 = sadd.s32 1, %s11
  $region7: #{generator_forward.9} parent=0 // loop_footer_branch
    %10 = sbr.rel target = $region3
  $region8: #{generator_forward.9} parent=0 // loop_exit
    _

</llo_original>
